<compile_context>
chip_gen: v7x
topology: tpu7x:2x2x1
jax: 0.10.0
libtpu: 0.0.40
codegen_flags: <defaults>
</compile_context>

<pallas_src>
import math
from functools import partial

import jax
import jax.numpy as jnp
from jax.experimental import pallas as pl
from jax.experimental.pallas import tpu as pltpu

EPS = 1e-6          # LayerNormalization eps (10**-6 in the reference module)
NEG_INF = -1e9      # masked_fill value in the reference attention

# Tile targets (f32).  (inputs + outputs) x 2 pipeline buffers stays well under
# the 32 MiB scoped-VMEM default on all of v5e/v6e/v7x.
TM, TN, TK = 256, 512, 512


def _pick_tile(dim, target, unit):
    """Largest block <= target that divides `dim` and is a multiple of `unit`;
    falls back to the full dim (always a legal BlockSpec block)."""
    if dim <= target:
        return dim
    t = (target // unit) * unit
    while t >= unit:
        if dim % t == 0:
            return t
        t -= unit
    return dim


# --------------------------- in-kernel helpers -------------------------------

def _layer_norm_rows(x, alpha, beta):
    # alpha * (x - mean) / (std + eps) + beta, std unbiased (matches torch.std)
    d = x.shape[-1]
    mean = jnp.mean(x, axis=-1, keepdims=True)
    diff = x - mean
    var = jnp.sum(diff * diff, axis=-1, keepdims=True) * (1.0 / (d - 1))
    inv = pl.reciprocal(jnp.sqrt(var) + EPS, approx=True)
    return alpha * (diff * inv) + beta


# --------------------------- Pallas kernels ----------------------------------

def _ln_qkv_kernel(x_ref, a_ref, b_ref, wq_ref, wk_ref, wv_ref,
                   q_ref, k_ref, v_ref):
    """Fused LayerNorm + Q/K/V projections (self-attention)."""
    xn = _layer_norm_rows(x_ref[...], a_ref[...], b_ref[...])
    q_ref[...] = jnp.dot(xn, wq_ref[...], preferred_element_type=jnp.float32)
    k_ref[...] = jnp.dot(xn, wk_ref[...], preferred_element_type=jnp.float32)
    v_ref[...] = jnp.dot(xn, wv_ref[...], preferred_element_type=jnp.float32)


def _ln_matmul_kernel(x_ref, a_ref, b_ref, w_ref, o_ref):
    """Fused LayerNorm + single projection (cross-attention Q)."""
    xn = _layer_norm_rows(x_ref[...], a_ref[...], b_ref[...])
    o_ref[...] = jnp.dot(xn, w_ref[...], preferred_element_type=jnp.float32)


def _ln_matmul_bias_relu_kernel(x_ref, a_ref, b_ref, w_ref, wb_ref, o_ref):
    """Fused LayerNorm + FFN first linear + bias + ReLU."""
    xn = _layer_norm_rows(x_ref[...], a_ref[...], b_ref[...])
    y = jnp.dot(xn, w_ref[...], preferred_element_type=jnp.float32) + wb_ref[...]
    o_ref[...] = jnp.maximum(y, 0.0)


def _kv_proj_kernel(x_ref, wk_ref, wv_ref, k_ref, v_ref):
    """Fused K/V projections of the encoder output (no LayerNorm)."""
    x = x_ref[...]
    k_ref[...] = jnp.dot(x, wk_ref[...], preferred_element_type=jnp.float32)
    v_ref[...] = jnp.dot(x, wv_ref[...], preferred_element_type=jnp.float32)


def _mm_bias_res_kernel(x_ref, w_ref, b_ref, r_ref, o_ref, acc_ref):
    """K-tiled matmul with f32 VMEM accumulator; bias + residual fused at the
    final K step (attention output projection and FFN second linear)."""
    @pl.when(pl.program_id(2) == 0)
    def _():
        acc_ref[...] = jnp.zeros_like(acc_ref)

    acc_ref[...] += jnp.dot(x_ref[...], w_ref[...],
                            preferred_element_type=jnp.float32)

    @pl.when(pl.program_id(2) == pl.num_programs(2) - 1)
    def _():
        o_ref[...] = acc_ref[...] + b_ref[...] + r_ref[...]


def _attention_kernel(q_ref, k_ref, v_ref, m_ref, o_ref, *, num_heads):
    """All heads of one batch element per grid step; lane-dense (Sq, H*Dh) output.
    Heads are unrolled statically; QK^T uses dot_general on native layouts."""
    # TODO(synk): for long sequences switch to a KV-tiled online-softmax (flash)
    # formulation so VMEM stays O(Sq*Dh) instead of O(Sq*Sk).
    q = q_ref[0]          # (Sq, D)  with D = H * Dh (lane dense)
    k = k_ref[0]          # (Sk, D)
    v = v_ref[0]          # (Sk, D)
    bias = m_ref[0, 0]    # (Sq, Sk) additive mask: 0 keep, -1e9 masked
    d = q.shape[-1]
    dh = d // num_heads
    scale = 1.0 / math.sqrt(dh)
    for hi in range(num_heads):
        lo = hi * dh
        qi = q[:, lo:lo + dh]
        ki = k[:, lo:lo + dh]
        vi = v[:, lo:lo + dh]
        # scores = qi @ ki^T without an explicit transpose.
        s = jax.lax.dot_general(qi, ki, (((1,), (1,)), ((), ())),
                                preferred_element_type=jnp.float32) * scale
        s = s + bias
        s = s - jnp.max(s, axis=-1, keepdims=True)
        p = jnp.exp(s)
        p = p * pl.reciprocal(jnp.sum(p, axis=-1, keepdims=True), approx=True)
        ctx = jnp.dot(p, vi, preferred_element_type=jnp.float32)
        o_ref[0, :, lo:lo + dh] = ctx.astype(o_ref.dtype)


def _layernorm_kernel(x_ref, a_ref, b_ref, o_ref):
    o_ref[...] = _layer_norm_rows(x_ref[...], a_ref[...], b_ref[...])


# --------------------------- Pallas wrappers ----------------------------------

def fused_ln_qkv(x2d, alpha, beta, wq, wk, wv):
    M, D = x2d.shape
    N = wq.shape[1]
    tm = _pick_tile(M, TM, 8)
    tn = _pick_tile(N, TN, 128)
    grid = (M // tm, N // tn)
    row_spec = pl.BlockSpec((tm, D), lambda i, j: (i, 0))
    vec_spec = pl.BlockSpec((1, D), lambda i, j: (0, 0))
    w_spec = pl.BlockSpec((D, tn), lambda i, j: (0, j))
    out_spec = pl.BlockSpec((tm, tn), lambda i, j: (i, j))
    out_shape = jax.ShapeDtypeStruct((M, N), jnp.float32)
    return pl.pallas_call(
        _ln_qkv_kernel,
        grid=grid,
        in_specs=[row_spec, vec_spec, vec_spec, w_spec, w_spec, w_spec],
        out_specs=(out_spec, out_spec, out_spec),
        out_shape=(out_shape, out_shape, out_shape),
        compiler_params=pltpu.CompilerParams(
            dimension_semantics=("parallel", "parallel")),
    )(x2d, alpha, beta, wq, wk, wv)


def fused_ln_matmul(x2d, alpha, beta, w, wb=None):
    """LayerNorm + matmul; if wb is given, also + bias + ReLU (FFN first layer)."""
    M, D = x2d.shape
    N = w.shape[1]
    tm = _pick_tile(M, TM, 8)
    tn = _pick_tile(N, TN, 128)
    grid = (M // tm, N // tn)
    in_specs = [
        pl.BlockSpec((tm, D), lambda i, j: (i, 0)),
        pl.BlockSpec((1, D), lambda i, j: (0, 0)),
        pl.BlockSpec((1, D), lambda i, j: (0, 0)),
        pl.BlockSpec((D, tn), lambda i, j: (0, j)),
    ]
    args = [x2d, alpha, beta, w]
    if wb is None:
        kern = _ln_matmul_kernel
    else:
        kern = _ln_matmul_bias_relu_kernel
        in_specs.append(pl.BlockSpec((1, tn), lambda i, j: (0, j)))
        args.append(wb)
    return pl.pallas_call(
        kern,
        grid=grid,
        in_specs=in_specs,
        out_specs=pl.BlockSpec((tm, tn), lambda i, j: (i, j)),
        out_shape=jax.ShapeDtypeStruct((M, N), jnp.float32),
        compiler_params=pltpu.CompilerParams(
            dimension_semantics=("parallel", "parallel")),
    )(*args)


def kv_projection(x2d, wk, wv):
    M, D = x2d.shape
    N = wk.shape[1]
    tm = _pick_tile(M, TM, 8)
    tn = _pick_tile(N, TN, 128)
    grid = (M // tm, N // tn)
    out_shape = jax.ShapeDtypeStruct((M, N), jnp.float32)
    out_spec = pl.BlockSpec((tm, tn), lambda i, j: (i, j))
    return pl.pallas_call(
        _kv_proj_kernel,
        grid=grid,
        in_specs=[pl.BlockSpec((tm, D), lambda i, j: (i, 0)),
                  pl.BlockSpec((D, tn), lambda i, j: (0, j)),
                  pl.BlockSpec((D, tn), lambda i, j: (0, j))],
        out_specs=(out_spec, out_spec),
        out_shape=(out_shape, out_shape),
        compiler_params=pltpu.CompilerParams(
            dimension_semantics=("parallel", "parallel")),
    )(x2d, wk, wv)


def matmul_bias_residual(x2d, w, bias, residual):
    """K-tiled matmul + bias + residual (accumulator pattern)."""
    M, K = x2d.shape
    N = w.shape[1]
    tm = _pick_tile(M, TM, 8)
    tn = _pick_tile(N, TN, 128)
    tk = _pick_tile(K, TK, 128)
    grid = (M // tm, N // tn, K // tk)
    return pl.pallas_call(
        _mm_bias_res_kernel,
        grid=grid,
        in_specs=[pl.BlockSpec((tm, tk), lambda i, j, k: (i, k)),
                  pl.BlockSpec((tk, tn), lambda i, j, k: (k, j)),
                  pl.BlockSpec((1, tn), lambda i, j, k: (0, j)),
                  pl.BlockSpec((tm, tn), lambda i, j, k: (i, j))],
        out_specs=pl.BlockSpec((tm, tn), lambda i, j, k: (i, j)),
        out_shape=jax.ShapeDtypeStruct((M, N), jnp.float32),
        scratch_shapes=[pltpu.VMEM((tm, tn), jnp.float32)],
        compiler_params=pltpu.CompilerParams(
            dimension_semantics=("parallel", "parallel", "arbitrary")),
    )(x2d, w, bias, residual)


def pallas_attention(q, k, v, add_mask, num_heads):
    """q,k,v: (B, S, D) lane-dense; add_mask: (B, 1, Sq, Sk) additive 0/-1e9."""
    B, Sq, D = q.shape
    Sk = k.shape[1]
    kern = partial(_attention_kernel, num_heads=num_heads)
    return pl.pallas_call(
        kern,
        grid=(B,),
        in_specs=[pl.BlockSpec((1, Sq, D), lambda b: (b, 0, 0)),
                  pl.BlockSpec((1, Sk, D), lambda b: (b, 0, 0)),
                  pl.BlockSpec((1, Sk, D), lambda b: (b, 0, 0)),
                  pl.BlockSpec((1, 1, Sq, Sk), lambda b: (b, 0, 0, 0))],
        out_specs=pl.BlockSpec((1, Sq, D), lambda b: (b, 0, 0)),
        out_shape=jax.ShapeDtypeStruct((B, Sq, D), jnp.float32),
        compiler_params=pltpu.CompilerParams(
            dimension_semantics=("parallel",)),
    )(q, k, v, add_mask)


def pallas_layernorm(x2d, alpha, beta):
    M, D = x2d.shape
    tm = _pick_tile(M, TM, 8)
    return pl.pallas_call(
        _layernorm_kernel,
        grid=(M // tm,),
        in_specs=[pl.BlockSpec((tm, D), lambda i: (i, 0)),
                  pl.BlockSpec((1, D), lambda i: (0, 0)),
                  pl.BlockSpec((1, D), lambda i: (0, 0))],
        out_specs=pl.BlockSpec((tm, D), lambda i: (i, 0)),
        out_shape=jax.ShapeDtypeStruct((M, D), jnp.float32),
        compiler_params=pltpu.CompilerParams(
            dimension_semantics=("parallel",)),
    )(x2d, alpha, beta)


# --------------------------- Model glue (plain JAX) ---------------------------

def decoder_block(p, x, enc, src_bias, tgt_bias, num_heads):
    # ResidualConnection: x + dropout(sublayer(norm(x))); dropout == identity (eval).
    B, S, D = x.shape
    Se = enc.shape[1]
    zero_bias = jnp.zeros((1, D), jnp.float32)
    x2 = x.reshape(B * S, D)

    # --- masked self-attention sublayer ---
    q, k, v = fused_ln_qkv(x2, p["ln1_a"], p["ln1_b"],
                           p["sa"]["wq"], p["sa"]["wk"], p["sa"]["wv"])
    ctx = pallas_attention(q.reshape(B, S, D), k.reshape(B, S, D),
                           v.reshape(B, S, D), tgt_bias, num_heads)
    x2 = matmul_bias_residual(ctx.reshape(B * S, D), p["sa"]["wo"], zero_bias, x2)

    # --- cross-attention sublayer (K/V from encoder output, no norm on enc) ---
    q = fused_ln_matmul(x2, p["ln2_a"], p["ln2_b"], p["ca"]["wq"])
    k, v = kv_projection(enc.reshape(B * Se, D), p["ca"]["wk"], p["ca"]["wv"])
    ctx = pallas_attention(q.reshape(B, S, D), k.reshape(B, Se, D),
                           v.reshape(B, Se, D), src_bias, num_heads)
    x2 = matmul_bias_residual(ctx.reshape(B * S, D), p["ca"]["wo"], zero_bias, x2)

    # --- feed-forward sublayer ---
    hdn = fused_ln_matmul(x2, p["ln3_a"], p["ln3_b"], p["ff"]["w1"], wb=p["ff"]["b1"])
    x2 = matmul_bias_residual(hdn, p["ff"]["w2"], p["ff"]["b2"], x2)

    return x2.reshape(B, S, D)


def decoder_forward(params, x, encoder_output, src_mask, tgt_mask, num_heads):
    # Convert 0/1 masks once into additive biases (0 keep, -1e9 masked) so the
    # attention kernels do a single add instead of a compare+select per element.
    src_bias = jnp.where(src_mask == 0, NEG_INF, 0.0).astype(jnp.float32)
    tgt_bias = jnp.where(tgt_mask == 0, NEG_INF, 0.0).astype(jnp.float32)
    for p in params["layers"]:
        x = decoder_block(p, x, encoder_output, src_bias, tgt_bias, num_heads)
    B, S, D = x.shape
    return pallas_layernorm(x.reshape(B * S, D),
                            params["norm_a"], params["norm_b"]).reshape(B, S, D)


# --------------------------- Deterministic param init -------------------------

def init_params(key, n_layers, d_model, d_ff):
    def dense(k, din, dout):
        return 0.02 * jax.random.normal(k, (din, dout), jnp.float32)

    def ln(d):
        return jnp.ones((1, d), jnp.float32), jnp.zeros((1, d), jnp.float32)

    layers = []
    for _ in range(n_layers):
        key, *ks = jax.random.split(key, 11)
        ln1_a, ln1_b = ln(d_model)
        ln2_a, ln2_b = ln(d_model)
        ln3_a, ln3_b = ln(d_model)
        layers.append({
            "sa": {"wq": dense(ks[0], d_model, d_model),
                   "wk": dense(ks[1], d_model, d_model),
                   "wv": dense(ks[2], d_model, d_model),
                   "wo": dense(ks[3], d_model, d_model)},
            "ca": {"wq": dense(ks[4], d_model, d_model),
                   "wk": dense(ks[5], d_model, d_model),
                   "wv": dense(ks[6], d_model, d_model),
                   "wo": dense(ks[7], d_model, d_model)},
            "ff": {"w1": dense(ks[8], d_model, d_ff),
                   "b1": jnp.zeros((1, d_ff), jnp.float32),
                   "w2": dense(ks[9], d_ff, d_model),
                   "b2": jnp.zeros((1, d_model), jnp.float32)},
            "ln1_a": ln1_a, "ln1_b": ln1_b,
            "ln2_a": ln2_a, "ln2_b": ln2_b,
            "ln3_a": ln3_a, "ln3_b": ln3_b,
        })
    norm_a, norm_b = ln(d_model)
    return {"layers": layers, "norm_a": norm_a, "norm_b": norm_b}


# --------------------------------- Main ----------------------------------------

if __name__ == "__main__":
    B, S, D, H, DFF, NLAYERS = 2, 8, 32, 4, 64, 2

    key = jax.random.PRNGKey(0)
    kx, ke, kp = jax.random.split(key, 3)
    x = jax.random.normal(kx, (B, S, D), jnp.float32)
    encoder_output = jax.random.normal(ke, (B, S, D), jnp.float32)

    causal = jnp.tril(jnp.ones((S, S), jnp.float32))
    tgt_mask = jnp.broadcast_to(causal, (B, 1, S, S)).astype(jnp.float32)
    src_mask = jnp.ones((B, 1, S, S), jnp.float32)

    params = init_params(kp, NLAYERS, D, DFF)

    fwd = jax.jit(partial(decoder_forward, num_heads=H))
    out = fwd(params, x, encoder_output, src_mask, tgt_mask)
    jax.block_until_ready(out)
    assert out.shape == (B, S, D)
    print("KERNEL_OK")
</pallas_src>

<mosaic_0001>
module attributes {stable_mosaic.version = 11 : i64} {
  func.func @_attention_kernel(%arg0: i32, %arg1: memref<1x8x32xf32, #tpu.memory_space<vmem>>, %arg2: memref<1x8x32xf32, #tpu.memory_space<vmem>>, %arg3: memref<1x8x32xf32, #tpu.memory_space<vmem>>, %arg4: memref<1x1x8x8xf32, #tpu.memory_space<vmem>>, %arg5: memref<1x8x32xf32, #tpu.memory_space<vmem>>) attributes {dimension_semantics = [#tpu.dimension_semantics<parallel>], iteration_bounds = array<i64: 2>, scalar_prefetch = 0 : i64, scratch_operands = 0 : i64, tpu.core_type = #tpu.core_type<tc>, window_params = [{transform_indices = @transform_0, window_bounds = array<i64: 1, 8, 32>}, {transform_indices = @transform_1, window_bounds = array<i64: 1, 8, 32>}, {transform_indices = @transform_2, window_bounds = array<i64: 1, 8, 32>}, {transform_indices = @transform_3, window_bounds = array<i64: 1, 1, 8, 8>}, {transform_indices = @transform_4, window_bounds = array<i64: 1, 8, 32>}]} {
    %c0 = arith.constant 0 : index
    %c0_0 = arith.constant 0 : index
    %c0_1 = arith.constant 0 : index
    %0 = vector.load %arg1[%c0, %c0_0, %c0_1] : memref<1x8x32xf32, #tpu.memory_space<vmem>>, vector<1x8x32xf32>
    %1 = vector.shape_cast %0 : vector<1x8x32xf32> to vector<8x32xf32>
    %c0_2 = arith.constant 0 : index
    %c0_3 = arith.constant 0 : index
    %c0_4 = arith.constant 0 : index
    %2 = vector.load %arg2[%c0_2, %c0_3, %c0_4] : memref<1x8x32xf32, #tpu.memory_space<vmem>>, vector<1x8x32xf32>
    %3 = vector.shape_cast %2 : vector<1x8x32xf32> to vector<8x32xf32>
    %c0_5 = arith.constant 0 : index
    %c0_6 = arith.constant 0 : index
    %c0_7 = arith.constant 0 : index
    %4 = vector.load %arg3[%c0_5, %c0_6, %c0_7] : memref<1x8x32xf32, #tpu.memory_space<vmem>>, vector<1x8x32xf32>
    %5 = vector.shape_cast %4 : vector<1x8x32xf32> to vector<8x32xf32>
    %c0_8 = arith.constant 0 : index
    %c0_9 = arith.constant 0 : index
    %c0_10 = arith.constant 0 : index
    %c0_11 = arith.constant 0 : index
    %6 = vector.load %arg4[%c0_8, %c0_9, %c0_10, %c0_11] : memref<1x1x8x8xf32, #tpu.memory_space<vmem>>, vector<1x1x8x8xf32>
    %7 = vector.shape_cast %6 : vector<1x1x8x8xf32> to vector<8x8xf32>
    %8 = vector.extract_strided_slice %1 {offsets = [0, 0], sizes = [8, 8], strides = [1, 1]} : vector<8x32xf32> to vector<8x8xf32>
    %9 = vector.extract_strided_slice %3 {offsets = [0, 0], sizes = [8, 8], strides = [1, 1]} : vector<8x32xf32> to vector<8x8xf32>
    %10 = vector.extract_strided_slice %5 {offsets = [0, 0], sizes = [8, 8], strides = [1, 1]} : vector<8x32xf32> to vector<8x8xf32>
    %cst = arith.constant dense<0.000000e+00> : vector<8x8xf32>
    %11 = tpu.matmul %8, %9, %cst {dimension_numbers = #tpu.dot_dimension_numbers<[1], [1], [0], [0], [0, 0, 1, 0], [], []>} : vector<8x8xf32>, vector<8x8xf32>, vector<8x8xf32> -> vector<8x8xf32>
    %cst_12 = arith.constant 0.353553385 : f32
    %12 = vector.broadcast %cst_12 : f32 to vector<8x8xf32>
    %13 = arith.mulf %11, %12 : vector<8x8xf32>
    %14 = arith.addf %13, %7 : vector<8x8xf32>
    %cst_13 = arith.constant dense<0xFF800000> : vector<8xf32>
    %15 = vector.multi_reduction <maximumf>, %14, %cst_13 [1] : vector<8x8xf32> to vector<8xf32>
    %16 = vector.shape_cast %15 : vector<8xf32> to vector<8x1xf32>
    %17 = vector.broadcast %16 : vector<8x1xf32> to vector<8x8xf32>
    %18 = arith.subf %14, %17 : vector<8x8xf32>
    %19 = math.exp %18 : vector<8x8xf32>
    %cst_14 = arith.constant dense<0.000000e+00> : vector<8xf32>
    %20 = vector.multi_reduction <add>, %19, %cst_14 [1] : vector<8x8xf32> to vector<8xf32>
    %21 = vector.shape_cast %20 : vector<8xf32> to vector<8x1xf32>
    %22 = tpu.reciprocal %21 {approx = true} : vector<8x1xf32> -> vector<8x1xf32>
    %23 = vector.broadcast %22 : vector<8x1xf32> to vector<8x8xf32>
    %24 = arith.mulf %19, %23 : vector<8x8xf32>
    %cst_15 = arith.constant dense<0.000000e+00> : vector<8x8xf32>
    %25 = tpu.matmul %24, %10, %cst_15 {dimension_numbers = #tpu.dot_dimension_numbers<[1], [0], [0], [1], [0, 0, 1, 1], [], []>} : vector<8x8xf32>, vector<8x8xf32>, vector<8x8xf32> -> vector<8x8xf32>
    %c0_16 = arith.constant 0 : index
    %c0_17 = arith.constant 0 : index
    %c0_18 = arith.constant 0 : index
    %26 = vector.load %arg5[%c0_16, %c0_17, %c0_18] : memref<1x8x32xf32, #tpu.memory_space<vmem>>, vector<1x8x8xf32>
    %27 = vector.shape_cast %26 : vector<1x8x8xf32> to vector<8x8xf32>
    %28 = vector.shape_cast %25 : vector<8x8xf32> to vector<1x8x8xf32>
    tpu.vector_store %arg5[%c0_16, %c0_17, %c0_18], %28 {strides = array<i32>} : memref<1x8x32xf32, #tpu.memory_space<vmem>>, vector<1x8x8xf32>,
    %29 = vector.extract_strided_slice %1 {offsets = [0, 8], sizes = [8, 8], strides = [1, 1]} : vector<8x32xf32> to vector<8x8xf32>
    %30 = vector.extract_strided_slice %3 {offsets = [0, 8], sizes = [8, 8], strides = [1, 1]} : vector<8x32xf32> to vector<8x8xf32>
    %31 = vector.extract_strided_slice %5 {offsets = [0, 8], sizes = [8, 8], strides = [1, 1]} : vector<8x32xf32> to vector<8x8xf32>
    %cst_19 = arith.constant dense<0.000000e+00> : vector<8x8xf32>
    %32 = tpu.matmul %29, %30, %cst_19 {dimension_numbers = #tpu.dot_dimension_numbers<[1], [1], [0], [0], [0, 0, 1, 0], [], []>} : vector<8x8xf32>, vector<8x8xf32>, vector<8x8xf32> -> vector<8x8xf32>
    %cst_20 = arith.constant 0.353553385 : f32
    %33 = vector.broadcast %cst_20 : f32 to vector<8x8xf32>
    %34 = arith.mulf %32, %33 : vector<8x8xf32>
    %35 = arith.addf %34, %7 : vector<8x8xf32>
    %cst_21 = arith.constant dense<0xFF800000> : vector<8xf32>
    %36 = vector.multi_reduction <maximumf>, %35, %cst_21 [1] : vector<8x8xf32> to vector<8xf32>
    %37 = vector.shape_cast %36 : vector<8xf32> to vector<8x1xf32>
    %38 = vector.broadcast %37 : vector<8x1xf32> to vector<8x8xf32>
    %39 = arith.subf %35, %38 : vector<8x8xf32>
    %40 = math.exp %39 : vector<8x8xf32>
    %cst_22 = arith.constant dense<0.000000e+00> : vector<8xf32>
    %41 = vector.multi_reduction <add>, %40, %cst_22 [1] : vector<8x8xf32> to vector<8xf32>
    %42 = vector.shape_cast %41 : vector<8xf32> to vector<8x1xf32>
    %43 = tpu.reciprocal %42 {approx = true} : vector<8x1xf32> -> vector<8x1xf32>
    %44 = vector.broadcast %43 : vector<8x1xf32> to vector<8x8xf32>
    %45 = arith.mulf %40, %44 : vector<8x8xf32>
    %cst_23 = arith.constant dense<0.000000e+00> : vector<8x8xf32>
    %46 = tpu.matmul %45, %31, %cst_23 {dimension_numbers = #tpu.dot_dimension_numbers<[1], [0], [0], [1], [0, 0, 1, 1], [], []>} : vector<8x8xf32>, vector<8x8xf32>, vector<8x8xf32> -> vector<8x8xf32>
    %c0_24 = arith.constant 0 : index
    %c0_25 = arith.constant 0 : index
    %c8 = arith.constant 8 : index
    %47 = vector.load %arg5[%c0_24, %c0_25, %c8] : memref<1x8x32xf32, #tpu.memory_space<vmem>>, vector<1x8x8xf32>
    %48 = vector.shape_cast %47 : vector<1x8x8xf32> to vector<8x8xf32>
    %49 = vector.shape_cast %46 : vector<8x8xf32> to vector<1x8x8xf32>
    tpu.vector_store %arg5[%c0_24, %c0_25, %c8], %49 {strides = array<i32>} : memref<1x8x32xf32, #tpu.memory_space<vmem>>, vector<1x8x8xf32>,
    %50 = vector.extract_strided_slice %1 {offsets = [0, 16], sizes = [8, 8], strides = [1, 1]} : vector<8x32xf32> to vector<8x8xf32>
    %51 = vector.extract_strided_slice %3 {offsets = [0, 16], sizes = [8, 8], strides = [1, 1]} : vector<8x32xf32> to vector<8x8xf32>
    %52 = vector.extract_strided_slice %5 {offsets = [0, 16], sizes = [8, 8], strides = [1, 1]} : vector<8x32xf32> to vector<8x8xf32>
    %cst_26 = arith.constant dense<0.000000e+00> : vector<8x8xf32>
    %53 = tpu.matmul %50, %51, %cst_26 {dimension_numbers = #tpu.dot_dimension_numbers<[1], [1], [0], [0], [0, 0, 1, 0], [], []>} : vector<8x8xf32>, vector<8x8xf32>, vector<8x8xf32> -> vector<8x8xf32>
    %cst_27 = arith.constant 0.353553385 : f32
    %54 = vector.broadcast %cst_27 : f32 to vector<8x8xf32>
    %55 = arith.mulf %53, %54 : vector<8x8xf32>
    %56 = arith.addf %55, %7 : vector<8x8xf32>
    %cst_28 = arith.constant dense<0xFF800000> : vector<8xf32>
    %57 = vector.multi_reduction <maximumf>, %56, %cst_28 [1] : vector<8x8xf32> to vector<8xf32>
    %58 = vector.shape_cast %57 : vector<8xf32> to vector<8x1xf32>
    %59 = vector.broadcast %58 : vector<8x1xf32> to vector<8x8xf32>
    %60 = arith.subf %56, %59 : vector<8x8xf32>
    %61 = math.exp %60 : vector<8x8xf32>
    %cst_29 = arith.constant dense<0.000000e+00> : vector<8xf32>
    %62 = vector.multi_reduction <add>, %61, %cst_29 [1] : vector<8x8xf32> to vector<8xf32>
    %63 = vector.shape_cast %62 : vector<8xf32> to vector<8x1xf32>
    %64 = tpu.reciprocal %63 {approx = true} : vector<8x1xf32> -> vector<8x1xf32>
    %65 = vector.broadcast %64 : vector<8x1xf32> to vector<8x8xf32>
    %66 = arith.mulf %61, %65 : vector<8x8xf32>
    %cst_30 = arith.constant dense<0.000000e+00> : vector<8x8xf32>
    %67 = tpu.matmul %66, %52, %cst_30 {dimension_numbers = #tpu.dot_dimension_numbers<[1], [0], [0], [1], [0, 0, 1, 1], [], []>} : vector<8x8xf32>, vector<8x8xf32>, vector<8x8xf32> -> vector<8x8xf32>
    %c0_31 = arith.constant 0 : index
    %c0_32 = arith.constant 0 : index
    %c16 = arith.constant 16 : index
    %68 = vector.load %arg5[%c0_31, %c0_32, %c16] : memref<1x8x32xf32, #tpu.memory_space<vmem>>, vector<1x8x8xf32>
    %69 = vector.shape_cast %68 : vector<1x8x8xf32> to vector<8x8xf32>
    %70 = vector.shape_cast %67 : vector<8x8xf32> to vector<1x8x8xf32>
    tpu.vector_store %arg5[%c0_31, %c0_32, %c16], %70 {strides = array<i32>} : memref<1x8x32xf32, #tpu.memory_space<vmem>>, vector<1x8x8xf32>,
    %71 = vector.extract_strided_slice %1 {offsets = [0, 24], sizes = [8, 8], strides = [1, 1]} : vector<8x32xf32> to vector<8x8xf32>
    %72 = vector.extract_strided_slice %3 {offsets = [0, 24], sizes = [8, 8], strides = [1, 1]} : vector<8x32xf32> to vector<8x8xf32>
    %73 = vector.extract_strided_slice %5 {offsets = [0, 24], sizes = [8, 8], strides = [1, 1]} : vector<8x32xf32> to vector<8x8xf32>
    %cst_33 = arith.constant dense<0.000000e+00> : vector<8x8xf32>
    %74 = tpu.matmul %71, %72, %cst_33 {dimension_numbers = #tpu.dot_dimension_numbers<[1], [1], [0], [0], [0, 0, 1, 0], [], []>} : vector<8x8xf32>, vector<8x8xf32>, vector<8x8xf32> -> vector<8x8xf32>
    %cst_34 = arith.constant 0.353553385 : f32
    %75 = vector.broadcast %cst_34 : f32 to vector<8x8xf32>
    %76 = arith.mulf %74, %75 : vector<8x8xf32>
    %77 = arith.addf %76, %7 : vector<8x8xf32>
    %cst_35 = arith.constant dense<0xFF800000> : vector<8xf32>
    %78 = vector.multi_reduction <maximumf>, %77, %cst_35 [1] : vector<8x8xf32> to vector<8xf32>
    %79 = vector.shape_cast %78 : vector<8xf32> to vector<8x1xf32>
    %80 = vector.broadcast %79 : vector<8x1xf32> to vector<8x8xf32>
    %81 = arith.subf %77, %80 : vector<8x8xf32>
    %82 = math.exp %81 : vector<8x8xf32>
    %cst_36 = arith.constant dense<0.000000e+00> : vector<8xf32>
    %83 = vector.multi_reduction <add>, %82, %cst_36 [1] : vector<8x8xf32> to vector<8xf32>
    %84 = vector.shape_cast %83 : vector<8xf32> to vector<8x1xf32>
    %85 = tpu.reciprocal %84 {approx = true} : vector<8x1xf32> -> vector<8x1xf32>
    %86 = vector.broadcast %85 : vector<8x1xf32> to vector<8x8xf32>
    %87 = arith.mulf %82, %86 : vector<8x8xf32>
    %cst_37 = arith.constant dense<0.000000e+00> : vector<8x8xf32>
    %88 = tpu.matmul %87, %73, %cst_37 {dimension_numbers = #tpu.dot_dimension_numbers<[1], [0], [0], [1], [0, 0, 1, 1], [], []>} : vector<8x8xf32>, vector<8x8xf32>, vector<8x8xf32> -> vector<8x8xf32>
    %c0_38 = arith.constant 0 : index
    %c0_39 = arith.constant 0 : index
    %c24 = arith.constant 24 : index
    %89 = vector.load %arg5[%c0_38, %c0_39, %c24] : memref<1x8x32xf32, #tpu.memory_space<vmem>>, vector<1x8x8xf32>
    %90 = vector.shape_cast %89 : vector<1x8x8xf32> to vector<8x8xf32>
    %91 = vector.shape_cast %88 : vector<8x8xf32> to vector<1x8x8xf32>
    tpu.vector_store %arg5[%c0_38, %c0_39, %c24], %91 {strides = array<i32>} : memref<1x8x32xf32, #tpu.memory_space<vmem>>, vector<1x8x8xf32>,
    return
  }
  func.func @transform_0(%arg0: i32) -> (i32, i32, i32) {
    %c0_i32 = arith.constant 0 : i32
    %c0_i32_0 = arith.constant 0 : i32
    %c0_i32_1 = arith.constant 0 : i32
    return %arg0, %c0_i32, %c0_i32_0 : i32, i32, i32
  }
  func.func @transform_1(%arg0: i32) -> (i32, i32, i32) {
    %c0_i32 = arith.constant 0 : i32
    %c0_i32_0 = arith.constant 0 : i32
    %c0_i32_1 = arith.constant 0 : i32
    return %arg0, %c0_i32, %c0_i32_0 : i32, i32, i32
  }
  func.func @transform_2(%arg0: i32) -> (i32, i32, i32) {
    %c0_i32 = arith.constant 0 : i32
    %c0_i32_0 = arith.constant 0 : i32
    %c0_i32_1 = arith.constant 0 : i32
    return %arg0, %c0_i32, %c0_i32_0 : i32, i32, i32
  }
  func.func @transform_3(%arg0: i32) -> (i32, i32, i32, i32) {
    %c0_i32 = arith.constant 0 : i32
    %c0_i32_0 = arith.constant 0 : i32
    %c0_i32_1 = arith.constant 0 : i32
    %c0_i32_2 = arith.constant 0 : i32
    return %arg0, %c0_i32, %c0_i32_0, %c0_i32_1 : i32, i32, i32, i32
  }
  func.func @transform_4(%arg0: i32) -> (i32, i32, i32) {
    %c0_i32 = arith.constant 0 : i32
    %c0_i32_0 = arith.constant 0 : i32
    %c0_i32_1 = arith.constant 0 : i32
    return %arg0, %c0_i32, %c0_i32_0 : i32, i32, i32
  }
}

module attributes {stable_mosaic.version = 11 : i64} {
  func.func @_ln_qkv_kernel(%arg0: i32, %arg1: i32, %arg2: memref<16x32xf32, #tpu.memory_space<vmem>>, %arg3: memref<1x32xf32, #tpu.memory_space<vmem>>, %arg4: memref<1x32xf32, #tpu.memory_space<vmem>>, %arg5: memref<32x32xf32, #tpu.memory_space<vmem>>, %arg6: memref<32x32xf32, #tpu.memory_space<vmem>>, %arg7: memref<32x32xf32, #tpu.memory_space<vmem>>, %arg8: memref<16x32xf32, #tpu.memory_space<vmem>>, %arg9: memref<16x32xf32, #tpu.memory_space<vmem>>, %arg10: memref<16x32xf32, #tpu.memory_space<vmem>>) attributes {dimension_semantics = [#tpu.dimension_semantics<parallel>, #tpu.dimension_semantics<parallel>], iteration_bounds = array<i64: 1, 1>, scalar_prefetch = 0 : i64, scratch_operands = 0 : i64, tpu.core_type = #tpu.core_type<tc>, window_params = [{transform_indices = @transform_0, window_bounds = array<i64: 16, 32>}, {pipeline_mode = #tpu.pipeline_mode<synchronous>, transform_indices = @transform_1, window_bounds = array<i64: 1, 32>}, {pipeline_mode = #tpu.pipeline_mode<synchronous>, transform_indices = @transform_2, window_bounds = array<i64: 1, 32>}, {transform_indices = @transform_3, window_bounds = array<i64: 32, 32>}, {transform_indices = @transform_4, window_bounds = array<i64: 32, 32>}, {transform_indices = @transform_5, window_bounds = array<i64: 32, 32>}, {transform_indices = @transform_6, window_bounds = array<i64: 16, 32>}, {transform_indices = @transform_7, window_bounds = array<i64: 16, 32>}, {transform_indices = @transform_8, window_bounds = array<i64: 16, 32>}]} {
    %c0 = arith.constant 0 : index
    %c0_0 = arith.constant 0 : index
    %0 = vector.load %arg2[%c0, %c0_0] : memref<16x32xf32, #tpu.memory_space<vmem>>, vector<16x32xf32>
    %c0_1 = arith.constant 0 : index
    %c0_2 = arith.constant 0 : index
    %1 = vector.load %arg3[%c0_1, %c0_2] : memref<1x32xf32, #tpu.memory_space<vmem>>, vector<1x32xf32>
    %c0_3 = arith.constant 0 : index
    %c0_4 = arith.constant 0 : index
    %2 = vector.load %arg4[%c0_3, %c0_4] : memref<1x32xf32, #tpu.memory_space<vmem>>, vector<1x32xf32>
    %cst = arith.constant dense<0.000000e+00> : vector<16xf32>
    %3 = vector.multi_reduction <add>, %0, %cst [1] : vector<16x32xf32> to vector<16xf32>
    %4 = vector.shape_cast %3 : vector<16xf32> to vector<16x1xf32>
    %cst_5 = arith.constant 3.200000e+01 : f32
    %5 = vector.broadcast %cst_5 : f32 to vector<16x1xf32>
    %6 = arith.divf %4, %5 : vector<16x1xf32>
    %7 = vector.broadcast %6 : vector<16x1xf32> to vector<16x32xf32>
    %8 = arith.subf %0, %7 : vector<16x32xf32>
    %9 = arith.mulf %8, %8 : vector<16x32xf32>
    %cst_6 = arith.constant dense<0.000000e+00> : vector<16xf32>
    %10 = vector.multi_reduction <add>, %9, %cst_6 [1] : vector<16x32xf32> to vector<16xf32>
    %11 = vector.shape_cast %10 : vector<16xf32> to vector<16x1xf32>
    %cst_7 = arith.constant 0.0322580636 : f32
    %12 = vector.broadcast %cst_7 : f32 to vector<16x1xf32>
    %13 = arith.mulf %11, %12 : vector<16x1xf32>
    %14 = math.sqrt %13 : vector<16x1xf32>
    %cst_8 = arith.constant 9.99999997E-7 : f32
    %15 = vector.broadcast %cst_8 : f32 to vector<16x1xf32>
    %16 = arith.addf %14, %15 : vector<16x1xf32>
    %17 = tpu.reciprocal %16 {approx = true} : vector<16x1xf32> -> vector<16x1xf32>
    %18 = vector.broadcast %17 : vector<16x1xf32> to vector<16x32xf32>
    %19 = arith.mulf %8, %18 : vector<16x32xf32>
    %20 = vector.broadcast %1 : vector<1x32xf32> to vector<16x32xf32>
    %21 = arith.mulf %20, %19 : vector<16x32xf32>
    %22 = vector.broadcast %2 : vector<1x32xf32> to vector<16x32xf32>
    %23 = arith.addf %21, %22 : vector<16x32xf32>
    %c0_9 = arith.constant 0 : index
    %c0_10 = arith.constant 0 : index
    %24 = vector.load %arg5[%c0_9, %c0_10] : memref<32x32xf32, #tpu.memory_space<vmem>>, vector<32x32xf32>
    %cst_11 = arith.constant dense<0.000000e+00> : vector<16x32xf32>
    %25 = tpu.matmul %23, %24, %cst_11 {dimension_numbers = #tpu.dot_dimension_numbers<[1], [0], [0], [1], [0, 0, 1, 1], [], []>} : vector<16x32xf32>, vector<32x32xf32>, vector<16x32xf32> -> vector<16x32xf32>
    %c0_12 = arith.constant 0 : index
    %c0_13 = arith.constant 0 : index
    %26 = vector.load %arg8[%c0_12, %c0_13] : memref<16x32xf32, #tpu.memory_space<vmem>>, vector<16x32xf32>
    tpu.vector_store %arg8[%c0_12, %c0_13], %25 {strides = array<i32>} : memref<16x32xf32, #tpu.memory_space<vmem>>, vector<16x32xf32>,
    %c0_14 = arith.constant 0 : index
    %c0_15 = arith.constant 0 : index
    %27 = vector.load %arg6[%c0_14, %c0_15] : memref<32x32xf32, #tpu.memory_space<vmem>>, vector<32x32xf32>
    %cst_16 = arith.constant dense<0.000000e+00> : vector<16x32xf32>
    %28 = tpu.matmul %23, %27, %cst_16 {dimension_numbers = #tpu.dot_dimension_numbers<[1], [0], [0], [1], [0, 0, 1, 1], [], []>} : vector<16x32xf32>, vector<32x32xf32>, vector<16x32xf32> -> vector<16x32xf32>
    %c0_17 = arith.constant 0 : index
    %c0_18 = arith.constant 0 : index
    %29 = vector.load %arg9[%c0_17, %c0_18] : memref<16x32xf32, #tpu.memory_space<vmem>>, vector<16x32xf32>
    tpu.vector_store %arg9[%c0_17, %c0_18], %28 {strides = array<i32>} : memref<16x32xf32, #tpu.memory_space<vmem>>, vector<16x32xf32>,
    %c0_19 = arith.constant 0 : index
    %c0_20 = arith.constant 0 : index
    %30 = vector.load %arg7[%c0_19, %c0_20] : memref<32x32xf32, #tpu.memory_space<vmem>>, vector<32x32xf32>
    %cst_21 = arith.constant dense<0.000000e+00> : vector<16x32xf32>
    %31 = tpu.matmul %23, %30, %cst_21 {dimension_numbers = #tpu.dot_dimension_numbers<[1], [0], [0], [1], [0, 0, 1, 1], [], []>} : vector<16x32xf32>, vector<32x32xf32>, vector<16x32xf32> -> vector<16x32xf32>
    %c0_22 = arith.constant 0 : index
    %c0_23 = arith.constant 0 : index
    %32 = vector.load %arg10[%c0_22, %c0_23] : memref<16x32xf32, #tpu.memory_space<vmem>>, vector<16x32xf32>
    tpu.vector_store %arg10[%c0_22, %c0_23], %31 {strides = array<i32>} : memref<16x32xf32, #tpu.memory_space<vmem>>, vector<16x32xf32>,
    return
  }
  func.func @transform_0(%arg0: i32, %arg1: i32) -> (i32, i32) {
    %c0_i32 = arith.constant 0 : i32
    %c0_i32_0 = arith.constant 0 : i32
    return %arg0, %c0_i32 : i32, i32
  }
  func.func @transform_1(%arg0: i32, %arg1: i32) -> (i32, i32) {
    %c0_i32 = arith.constant 0 : i32
    %c0_i32_0 = arith.constant 0 : i32
    %c0_i32_1 = arith.constant 0 : i32
    return %c0_i32, %c0_i32_0 : i32, i32
  }
  func.func @transform_2(%arg0: i32, %arg1: i32) -> (i32, i32) {
    %c0_i32 = arith.constant 0 : i32
    %c0_i32_0 = arith.constant 0 : i32
    %c0_i32_1 = arith.constant 0 : i32
    return %c0_i32, %c0_i32_0 : i32, i32
  }
  func.func @transform_3(%arg0: i32, %arg1: i32) -> (i32, i32) {
    %c0_i32 = arith.constant 0 : i32
    %c0_i32_0 = arith.constant 0 : i32
    return %c0_i32, %arg1 : i32, i32
  }
  func.func @transform_4(%arg0: i32, %arg1: i32) -> (i32, i32) {
    %c0_i32 = arith.constant 0 : i32
    %c0_i32_0 = arith.constant 0 : i32
    return %c0_i32, %arg1 : i32, i32
  }
  func.func @transform_5(%arg0: i32, %arg1: i32) -> (i32, i32) {
    %c0_i32 = arith.constant 0 : i32
    %c0_i32_0 = arith.constant 0 : i32
    return %c0_i32, %arg1 : i32, i32
  }
  func.func @transform_6(%arg0: i32, %arg1: i32) -> (i32, i32) {
    %c0_i32 = arith.constant 0 : i32
    return %arg0, %arg1 : i32, i32
  }
  func.func @transform_7(%arg0: i32, %arg1: i32) -> (i32, i32) {
    %c0_i32 = arith.constant 0 : i32
    return %arg0, %arg1 : i32, i32
  }
  func.func @transform_8(%arg0: i32, %arg1: i32) -> (i32, i32) {
    %c0_i32 = arith.constant 0 : i32
    return %arg0, %arg1 : i32, i32
  }
}

module attributes {stable_mosaic.version = 11 : i64} {
  func.func @_ln_matmul_kernel(%arg0: i32, %arg1: i32, %arg2: memref<16x32xf32, #tpu.memory_space<vmem>>, %arg3: memref<1x32xf32, #tpu.memory_space<vmem>>, %arg4: memref<1x32xf32, #tpu.memory_space<vmem>>, %arg5: memref<32x32xf32, #tpu.memory_space<vmem>>, %arg6: memref<16x32xf32, #tpu.memory_space<vmem>>) attributes {dimension_semantics = [#tpu.dimension_semantics<parallel>, #tpu.dimension_semantics<parallel>], iteration_bounds = array<i64: 1, 1>, scalar_prefetch = 0 : i64, scratch_operands = 0 : i64, tpu.core_type = #tpu.core_type<tc>, window_params = [{transform_indices = @transform_0, window_bounds = array<i64: 16, 32>}, {pipeline_mode = #tpu.pipeline_mode<synchronous>, transform_indices = @transform_1, window_bounds = array<i64: 1, 32>}, {pipeline_mode = #tpu.pipeline_mode<synchronous>, transform_indices = @transform_2, window_bounds = array<i64: 1, 32>}, {transform_indices = @transform_3, window_bounds = array<i64: 32, 32>}, {transform_indices = @transform_4, window_bounds = array<i64: 16, 32>}]} {
    %c0 = arith.constant 0 : index
    %c0_0 = arith.constant 0 : index
    %0 = vector.load %arg2[%c0, %c0_0] : memref<16x32xf32, #tpu.memory_space<vmem>>, vector<16x32xf32>
    %c0_1 = arith.constant 0 : index
    %c0_2 = arith.constant 0 : index
    %1 = vector.load %arg3[%c0_1, %c0_2] : memref<1x32xf32, #tpu.memory_space<vmem>>, vector<1x32xf32>
    %c0_3 = arith.constant 0 : index
    %c0_4 = arith.constant 0 : index
    %2 = vector.load %arg4[%c0_3, %c0_4] : memref<1x32xf32, #tpu.memory_space<vmem>>, vector<1x32xf32>
    %cst = arith.constant dense<0.000000e+00> : vector<16xf32>
    %3 = vector.multi_reduction <add>, %0, %cst [1] : vector<16x32xf32> to vector<16xf32>
    %4 = vector.shape_cast %3 : vector<16xf32> to vector<16x1xf32>
    %cst_5 = arith.constant 3.200000e+01 : f32
    %5 = vector.broadcast %cst_5 : f32 to vector<16x1xf32>
    %6 = arith.divf %4, %5 : vector<16x1xf32>
    %7 = vector.broadcast %6 : vector<16x1xf32> to vector<16x32xf32>
    %8 = arith.subf %0, %7 : vector<16x32xf32>
    %9 = arith.mulf %8, %8 : vector<16x32xf32>
    %cst_6 = arith.constant dense<0.000000e+00> : vector<16xf32>
    %10 = vector.multi_reduction <add>, %9, %cst_6 [1] : vector<16x32xf32> to vector<16xf32>
    %11 = vector.shape_cast %10 : vector<16xf32> to vector<16x1xf32>
    %cst_7 = arith.constant 0.0322580636 : f32
    %12 = vector.broadcast %cst_7 : f32 to vector<16x1xf32>
    %13 = arith.mulf %11, %12 : vector<16x1xf32>
    %14 = math.sqrt %13 : vector<16x1xf32>
    %cst_8 = arith.constant 9.99999997E-7 : f32
    %15 = vector.broadcast %cst_8 : f32 to vector<16x1xf32>
    %16 = arith.addf %14, %15 : vector<16x1xf32>
    %17 = tpu.reciprocal %16 {approx = true} : vector<16x1xf32> -> vector<16x1xf32>
    %18 = vector.broadcast %17 : vector<16x1xf32> to vector<16x32xf32>
    %19 = arith.mulf %8, %18 : vector<16x32xf32>
    %20 = vector.broadcast %1 : vector<1x32xf32> to vector<16x32xf32>
    %21 = arith.mulf %20, %19 : vector<16x32xf32>
    %22 = vector.broadcast %2 : vector<1x32xf32> to vector<16x32xf32>
    %23 = arith.addf %21, %22 : vector<16x32xf32>
    %c0_9 = arith.constant 0 : index
    %c0_10 = arith.constant 0 : index
    %24 = vector.load %arg5[%c0_9, %c0_10] : memref<32x32xf32, #tpu.memory_space<vmem>>, vector<32x32xf32>
    %cst_11 = arith.constant dense<0.000000e+00> : vector<16x32xf32>
    %25 = tpu.matmul %23, %24, %cst_11 {dimension_numbers = #tpu.dot_dimension_numbers<[1], [0], [0], [1], [0, 0, 1, 1], [], []>} : vector<16x32xf32>, vector<32x32xf32>, vector<16x32xf32> -> vector<16x32xf32>
    %c0_12 = arith.constant 0 : index
    %c0_13 = arith.constant 0 : index
    %26 = vector.load %arg6[%c0_12, %c0_13] : memref<16x32xf32, #tpu.memory_space<vmem>>, vector<16x32xf32>
    tpu.vector_store %arg6[%c0_12, %c0_13], %25 {strides = array<i32>} : memref<16x32xf32, #tpu.memory_space<vmem>>, vector<16x32xf32>,
    return
  }
  func.func @transform_0(%arg0: i32, %arg1: i32) -> (i32, i32) {
    %c0_i32 = arith.constant 0 : i32
    %c0_i32_0 = arith.constant 0 : i32
    return %arg0, %c0_i32 : i32, i32
  }
  func.func @transform_1(%arg0: i32, %arg1: i32) -> (i32, i32) {
    %c0_i32 = arith.constant 0 : i32
    %c0_i32_0 = arith.constant 0 : i32
    %c0_i32_1 = arith.constant 0 : i32
    return %c0_i32, %c0_i32_0 : i32, i32
  }
  func.func @transform_2(%arg0: i32, %arg1: i32) -> (i32, i32) {
    %c0_i32 = arith.constant 0 : i32
    %c0_i32_0 = arith.constant 0 : i32
    %c0_i32_1 = arith.constant 0 : i32
    return %c0_i32, %c0_i32_0 : i32, i32
  }
  func.func @transform_3(%arg0: i32, %arg1: i32) -> (i32, i32) {
    %c0_i32 = arith.constant 0 : i32
    %c0_i32_0 = arith.constant 0 : i32
    return %c0_i32, %arg1 : i32, i32
  }
  func.func @transform_4(%arg0: i32, %arg1: i32) -> (i32, i32) {
    %c0_i32 = arith.constant 0 : i32
    return %arg0, %arg1 : i32, i32
  }
}

module attributes {stable_mosaic.version = 11 : i64} {
  func.func @_mm_bias_res_kernel(%arg0: i32, %arg1: i32, %arg2: i32, %arg3: memref<16x32xf32, #tpu.memory_space<vmem>>, %arg4: memref<32x32xf32, #tpu.memory_space<vmem>>, %arg5: memref<1x32xf32, #tpu.memory_space<vmem>>, %arg6: memref<16x32xf32, #tpu.memory_space<vmem>>, %arg7: memref<16x32xf32, #tpu.memory_space<vmem>>, %arg8: memref<16x32xf32, #tpu.memory_space<vmem>>) attributes {dimension_semantics = [#tpu.dimension_semantics<parallel>, #tpu.dimension_semantics<parallel>, #tpu.dimension_semantics<arbitrary>], iteration_bounds = array<i64: 1, 1, 1>, scalar_prefetch = 0 : i64, scratch_operands = 1 : i64, tpu.core_type = #tpu.core_type<tc>, window_params = [{transform_indices = @transform_0, window_bounds = array<i64: 16, 32>}, {transform_indices = @transform_1, window_bounds = array<i64: 32, 32>}, {transform_indices = @transform_2, window_bounds = array<i64: 1, 32>}, {transform_indices = @transform_3, window_bounds = array<i64: 16, 32>}, {transform_indices = @transform_4, window_bounds = array<i64: 16, 32>}]} {
    %c0_i32 = arith.constant 0 : i32
    %0 = arith.cmpi eq, %arg2, %c0_i32 : i32
    %1 = arith.extui %0 : i1 to i32
    %c0_i32_0 = arith.constant 0 : i32
    %2 = arith.cmpi ne, %1, %c0_i32_0 : i32
    scf.if %2 {
      %cst_10 = arith.constant 0.000000e+00 : f32
      %12 = vector.broadcast %cst_10 : f32 to vector<16x32xf32>
      %c0_11 = arith.constant 0 : index
      %c0_12 = arith.constant 0 : index
      %13 = vector.load %arg8[%c0_11, %c0_12] : memref<16x32xf32, #tpu.memory_space<vmem>>, vector<16x32xf32>
      tpu.vector_store %arg8[%c0_11, %c0_12], %12 {strides = array<i32>} : memref<16x32xf32, #tpu.memory_space<vmem>>, vector<16x32xf32>,
    } else {
    }
    %c0 = arith.constant 0 : index
    %c0_1 = arith.constant 0 : index
    %3 = vector.load %arg8[%c0, %c0_1] : memref<16x32xf32, #tpu.memory_space<vmem>>, vector<16x32xf32>
    %c0_2 = arith.constant 0 : index
    %c0_3 = arith.constant 0 : index
    %4 = vector.load %arg3[%c0_2, %c0_3] : memref<16x32xf32, #tpu.memory_space<vmem>>, vector<16x32xf32>
    %c0_4 = arith.constant 0 : index
    %c0_5 = arith.constant 0 : index
    %5 = vector.load %arg4[%c0_4, %c0_5] : memref<32x32xf32, #tpu.memory_space<vmem>>, vector<32x32xf32>
    %cst = arith.constant dense<0.000000e+00> : vector<16x32xf32>
    %6 = tpu.matmul %4, %5, %cst {dimension_numbers = #tpu.dot_dimension_numbers<[1], [0], [0], [1], [0, 0, 1, 1], [], []>} : vector<16x32xf32>, vector<32x32xf32>, vector<16x32xf32> -> vector<16x32xf32>
    %7 = arith.addf %3, %6 : vector<16x32xf32>
    %c0_6 = arith.constant 0 : index
    %c0_7 = arith.constant 0 : index
    %8 = vector.load %arg8[%c0_6, %c0_7] : memref<16x32xf32, #tpu.memory_space<vmem>>, vector<16x32xf32>
    tpu.vector_store %arg8[%c0_6, %c0_7], %7 {strides = array<i32>} : memref<16x32xf32, #tpu.memory_space<vmem>>, vector<16x32xf32>,
    %c0_i32_8 = arith.constant 0 : i32
    %9 = arith.cmpi eq, %arg2, %c0_i32_8 : i32
    %10 = arith.extui %9 : i1 to i32
    %c0_i32_9 = arith.constant 0 : i32
    %11 = arith.cmpi ne, %10, %c0_i32_9 : i32
    scf.if %11 {
      %c0_10 = arith.constant 0 : index
      %c0_11 = arith.constant 0 : index
      %12 = vector.load %arg8[%c0_10, %c0_11] : memref<16x32xf32, #tpu.memory_space<vmem>>, vector<16x32xf32>
      %c0_12 = arith.constant 0 : index
      %c0_13 = arith.constant 0 : index
      %13 = vector.load %arg5[%c0_12, %c0_13] : memref<1x32xf32, #tpu.memory_space<vmem>>, vector<1x32xf32>
      %14 = vector.broadcast %13 : vector<1x32xf32> to vector<16x32xf32>
      %15 = arith.addf %12, %14 : vector<16x32xf32>
      %c0_14 = arith.constant 0 : index
      %c0_15 = arith.constant 0 : index
      %16 = vector.load %arg6[%c0_14, %c0_15] : memref<16x32xf32, #tpu.memory_space<vmem>>, vector<16x32xf32>
      %17 = arith.addf %15, %16 : vector<16x32xf32>
      %c0_16 = arith.constant 0 : index
      %c0_17 = arith.constant 0 : index
      %18 = vector.load %arg7[%c0_16, %c0_17] : memref<16x32xf32, #tpu.memory_space<vmem>>, vector<16x32xf32>
      tpu.vector_store %arg7[%c0_16, %c0_17], %17 {strides = array<i32>} : memref<16x32xf32, #tpu.memory_space<vmem>>, vector<16x32xf32>,
    } else {
    }
    return
  }
  func.func @transform_0(%arg0: i32, %arg1: i32, %arg2: i32) -> (i32, i32) {
    %c0_i32 = arith.constant 0 : i32
    return %arg0, %arg2 : i32, i32
  }
  func.func @transform_1(%arg0: i32, %arg1: i32, %arg2: i32) -> (i32, i32) {
    %c0_i32 = arith.constant 0 : i32
    return %arg2, %arg1 : i32, i32
  }
  func.func @transform_2(%arg0: i32, %arg1: i32, %arg2: i32) -> (i32, i32) {
    %c0_i32 = arith.constant 0 : i32
    %c0_i32_0 = arith.constant 0 : i32
    return %c0_i32, %arg1 : i32, i32
  }
  func.func @transform_3(%arg0: i32, %arg1: i32, %arg2: i32) -> (i32, i32) {
    %c0_i32 = arith.constant 0 : i32
    return %arg0, %arg1 : i32, i32
  }
  func.func @transform_4(%arg0: i32, %arg1: i32, %arg2: i32) -> (i32, i32) {
    %c0_i32 = arith.constant 0 : i32
    return %arg0, %arg1 : i32, i32
  }
}

module attributes {stable_mosaic.version = 11 : i64} {
  func.func @_ln_matmul_bias_relu_kernel(%arg0: i32, %arg1: i32, %arg2: memref<16x32xf32, #tpu.memory_space<vmem>>, %arg3: memref<1x32xf32, #tpu.memory_space<vmem>>, %arg4: memref<1x32xf32, #tpu.memory_space<vmem>>, %arg5: memref<32x64xf32, #tpu.memory_space<vmem>>, %arg6: memref<1x64xf32, #tpu.memory_space<vmem>>, %arg7: memref<16x64xf32, #tpu.memory_space<vmem>>) attributes {dimension_semantics = [#tpu.dimension_semantics<parallel>, #tpu.dimension_semantics<parallel>], iteration_bounds = array<i64: 1, 1>, scalar_prefetch = 0 : i64, scratch_operands = 0 : i64, tpu.core_type = #tpu.core_type<tc>, window_params = [{transform_indices = @transform_0, window_bounds = array<i64: 16, 32>}, {pipeline_mode = #tpu.pipeline_mode<synchronous>, transform_indices = @transform_1, window_bounds = array<i64: 1, 32>}, {pipeline_mode = #tpu.pipeline_mode<synchronous>, transform_indices = @transform_2, window_bounds = array<i64: 1, 32>}, {transform_indices = @transform_3, window_bounds = array<i64: 32, 64>}, {transform_indices = @transform_4, window_bounds = array<i64: 1, 64>}, {transform_indices = @transform_5, window_bounds = array<i64: 16, 64>}]} {
    %c0 = arith.constant 0 : index
    %c0_0 = arith.constant 0 : index
    %0 = vector.load %arg2[%c0, %c0_0] : memref<16x32xf32, #tpu.memory_space<vmem>>, vector<16x32xf32>
    %c0_1 = arith.constant 0 : index
    %c0_2 = arith.constant 0 : index
    %1 = vector.load %arg3[%c0_1, %c0_2] : memref<1x32xf32, #tpu.memory_space<vmem>>, vector<1x32xf32>
    %c0_3 = arith.constant 0 : index
    %c0_4 = arith.constant 0 : index
    %2 = vector.load %arg4[%c0_3, %c0_4] : memref<1x32xf32, #tpu.memory_space<vmem>>, vector<1x32xf32>
    %cst = arith.constant dense<0.000000e+00> : vector<16xf32>
    %3 = vector.multi_reduction <add>, %0, %cst [1] : vector<16x32xf32> to vector<16xf32>
    %4 = vector.shape_cast %3 : vector<16xf32> to vector<16x1xf32>
    %cst_5 = arith.constant 3.200000e+01 : f32
    %5 = vector.broadcast %cst_5 : f32 to vector<16x1xf32>
    %6 = arith.divf %4, %5 : vector<16x1xf32>
    %7 = vector.broadcast %6 : vector<16x1xf32> to vector<16x32xf32>
    %8 = arith.subf %0, %7 : vector<16x32xf32>
    %9 = arith.mulf %8, %8 : vector<16x32xf32>
    %cst_6 = arith.constant dense<0.000000e+00> : vector<16xf32>
    %10 = vector.multi_reduction <add>, %9, %cst_6 [1] : vector<16x32xf32> to vector<16xf32>
    %11 = vector.shape_cast %10 : vector<16xf32> to vector<16x1xf32>
    %cst_7 = arith.constant 0.0322580636 : f32
    %12 = vector.broadcast %cst_7 : f32 to vector<16x1xf32>
    %13 = arith.mulf %11, %12 : vector<16x1xf32>
    %14 = math.sqrt %13 : vector<16x1xf32>
    %cst_8 = arith.constant 9.99999997E-7 : f32
    %15 = vector.broadcast %cst_8 : f32 to vector<16x1xf32>
    %16 = arith.addf %14, %15 : vector<16x1xf32>
    %17 = tpu.reciprocal %16 {approx = true} : vector<16x1xf32> -> vector<16x1xf32>
    %18 = vector.broadcast %17 : vector<16x1xf32> to vector<16x32xf32>
    %19 = arith.mulf %8, %18 : vector<16x32xf32>
    %20 = vector.broadcast %1 : vector<1x32xf32> to vector<16x32xf32>
    %21 = arith.mulf %20, %19 : vector<16x32xf32>
    %22 = vector.broadcast %2 : vector<1x32xf32> to vector<16x32xf32>
    %23 = arith.addf %21, %22 : vector<16x32xf32>
    %c0_9 = arith.constant 0 : index
    %c0_10 = arith.constant 0 : index
    %24 = vector.load %arg5[%c0_9, %c0_10] : memref<32x64xf32, #tpu.memory_space<vmem>>, vector<32x64xf32>
    %cst_11 = arith.constant dense<0.000000e+00> : vector<16x64xf32>
    %25 = tpu.matmul %23, %24, %cst_11 {dimension_numbers = #tpu.dot_dimension_numbers<[1], [0], [0], [1], [0, 0, 1, 1], [], []>} : vector<16x32xf32>, vector<32x64xf32>, vector<16x64xf32> -> vector<16x64xf32>
    %c0_12 = arith.constant 0 : index
    %c0_13 = arith.constant 0 : index
    %26 = vector.load %arg6[%c0_12, %c0_13] : memref<1x64xf32, #tpu.memory_space<vmem>>, vector<1x64xf32>
    %27 = vector.broadcast %26 : vector<1x64xf32> to vector<16x64xf32>
    %28 = arith.addf %25, %27 : vector<16x64xf32>
    %cst_14 = arith.constant 0.000000e+00 : f32
    %29 = vector.broadcast %cst_14 : f32 to vector<16x64xf32>
    %30 = arith.maximumf %28, %29 : vector<16x64xf32>
    %c0_15 = arith.constant 0 : index
    %c0_16 = arith.constant 0 : index
    %31 = vector.load %arg7[%c0_15, %c0_16] : memref<16x64xf32, #tpu.memory_space<vmem>>, vector<16x64xf32>
    tpu.vector_store %arg7[%c0_15, %c0_16], %30 {strides = array<i32>} : memref<16x64xf32, #tpu.memory_space<vmem>>, vector<16x64xf32>,
    return
  }
  func.func @transform_0(%arg0: i32, %arg1: i32) -> (i32, i32) {
    %c0_i32 = arith.constant 0 : i32
    %c0_i32_0 = arith.constant 0 : i32
    return %arg0, %c0_i32 : i32, i32
  }
  func.func @transform_1(%arg0: i32, %arg1: i32) -> (i32, i32) {
    %c0_i32 = arith.constant 0 : i32
    %c0_i32_0 = arith.constant 0 : i32
    %c0_i32_1 = arith.constant 0 : i32
    return %c0_i32, %c0_i32_0 : i32, i32
  }
  func.func @transform_2(%arg0: i32, %arg1: i32) -> (i32, i32) {
    %c0_i32 = arith.constant 0 : i32
    %c0_i32_0 = arith.constant 0 : i32
    %c0_i32_1 = arith.constant 0 : i32
    return %c0_i32, %c0_i32_0 : i32, i32
  }
  func.func @transform_3(%arg0: i32, %arg1: i32) -> (i32, i32) {
    %c0_i32 = arith.constant 0 : i32
    %c0_i32_0 = arith.constant 0 : i32
    return %c0_i32, %arg1 : i32, i32
  }
  func.func @transform_4(%arg0: i32, %arg1: i32) -> (i32, i32) {
    %c0_i32 = arith.constant 0 : i32
    %c0_i32_0 = arith.constant 0 : i32
    return %c0_i32, %arg1 : i32, i32
  }
  func.func @transform_5(%arg0: i32, %arg1: i32) -> (i32, i32) {
    %c0_i32 = arith.constant 0 : i32
    return %arg0, %arg1 : i32, i32
  }
}

module attributes {stable_mosaic.version = 11 : i64} {
  func.func @_mm_bias_res_kernel(%arg0: i32, %arg1: i32, %arg2: i32, %arg3: memref<16x64xf32, #tpu.memory_space<vmem>>, %arg4: memref<64x32xf32, #tpu.memory_space<vmem>>, %arg5: memref<1x32xf32, #tpu.memory_space<vmem>>, %arg6: memref<16x32xf32, #tpu.memory_space<vmem>>, %arg7: memref<16x32xf32, #tpu.memory_space<vmem>>, %arg8: memref<16x32xf32, #tpu.memory_space<vmem>>) attributes {dimension_semantics = [#tpu.dimension_semantics<parallel>, #tpu.dimension_semantics<parallel>, #tpu.dimension_semantics<arbitrary>], iteration_bounds = array<i64: 1, 1, 1>, scalar_prefetch = 0 : i64, scratch_operands = 1 : i64, tpu.core_type = #tpu.core_type<tc>, window_params = [{transform_indices = @transform_0, window_bounds = array<i64: 16, 64>}, {transform_indices = @transform_1, window_bounds = array<i64: 64, 32>}, {transform_indices = @transform_2, window_bounds = array<i64: 1, 32>}, {transform_indices = @transform_3, window_bounds = array<i64: 16, 32>}, {transform_indices = @transform_4, window_bounds = array<i64: 16, 32>}]} {
    %c0_i32 = arith.constant 0 : i32
    %0 = arith.cmpi eq, %arg2, %c0_i32 : i32
    %1 = arith.extui %0 : i1 to i32
    %c0_i32_0 = arith.constant 0 : i32
    %2 = arith.cmpi ne, %1, %c0_i32_0 : i32
    scf.if %2 {
      %cst_10 = arith.constant 0.000000e+00 : f32
      %12 = vector.broadcast %cst_10 : f32 to vector<16x32xf32>
      %c0_11 = arith.constant 0 : index
      %c0_12 = arith.constant 0 : index
      %13 = vector.load %arg8[%c0_11, %c0_12] : memref<16x32xf32, #tpu.memory_space<vmem>>, vector<16x32xf32>
      tpu.vector_store %arg8[%c0_11, %c0_12], %12 {strides = array<i32>} : memref<16x32xf32, #tpu.memory_space<vmem>>, vector<16x32xf32>,
    } else {
    }
    %c0 = arith.constant 0 : index
    %c0_1 = arith.constant 0 : index
    %3 = vector.load %arg8[%c0, %c0_1] : memref<16x32xf32, #tpu.memory_space<vmem>>, vector<16x32xf32>
    %c0_2 = arith.constant 0 : index
    %c0_3 = arith.constant 0 : index
    %4 = vector.load %arg3[%c0_2, %c0_3] : memref<16x64xf32, #tpu.memory_space<vmem>>, vector<16x64xf32>
    %c0_4 = arith.constant 0 : index
    %c0_5 = arith.constant 0 : index
    %5 = vector.load %arg4[%c0_4, %c0_5] : memref<64x32xf32, #tpu.memory_space<vmem>>, vector<64x32xf32>
    %cst = arith.constant dense<0.000000e+00> : vector<16x32xf32>
    %6 = tpu.matmul %4, %5, %cst {dimension_numbers = #tpu.dot_dimension_numbers<[1], [0], [0], [1], [0, 0, 1, 1], [], []>} : vector<16x64xf32>, vector<64x32xf32>, vector<16x32xf32> -> vector<16x32xf32>
    %7 = arith.addf %3, %6 : vector<16x32xf32>
    %c0_6 = arith.constant 0 : index
    %c0_7 = arith.constant 0 : index
    %8 = vector.load %arg8[%c0_6, %c0_7] : memref<16x32xf32, #tpu.memory_space<vmem>>, vector<16x32xf32>
    tpu.vector_store %arg8[%c0_6, %c0_7], %7 {strides = array<i32>} : memref<16x32xf32, #tpu.memory_space<vmem>>, vector<16x32xf32>,
    %c0_i32_8 = arith.constant 0 : i32
    %9 = arith.cmpi eq, %arg2, %c0_i32_8 : i32
    %10 = arith.extui %9 : i1 to i32
    %c0_i32_9 = arith.constant 0 : i32
    %11 = arith.cmpi ne, %10, %c0_i32_9 : i32
    scf.if %11 {
      %c0_10 = arith.constant 0 : index
      %c0_11 = arith.constant 0 : index
      %12 = vector.load %arg8[%c0_10, %c0_11] : memref<16x32xf32, #tpu.memory_space<vmem>>, vector<16x32xf32>
      %c0_12 = arith.constant 0 : index
      %c0_13 = arith.constant 0 : index
      %13 = vector.load %arg5[%c0_12, %c0_13] : memref<1x32xf32, #tpu.memory_space<vmem>>, vector<1x32xf32>
      %14 = vector.broadcast %13 : vector<1x32xf32> to vector<16x32xf32>
      %15 = arith.addf %12, %14 : vector<16x32xf32>
      %c0_14 = arith.constant 0 : index
      %c0_15 = arith.constant 0 : index
      %16 = vector.load %arg6[%c0_14, %c0_15] : memref<16x32xf32, #tpu.memory_space<vmem>>, vector<16x32xf32>
      %17 = arith.addf %15, %16 : vector<16x32xf32>
      %c0_16 = arith.constant 0 : index
      %c0_17 = arith.constant 0 : index
      %18 = vector.load %arg7[%c0_16, %c0_17] : memref<16x32xf32, #tpu.memory_space<vmem>>, vector<16x32xf32>
      tpu.vector_store %arg7[%c0_16, %c0_17], %17 {strides = array<i32>} : memref<16x32xf32, #tpu.memory_space<vmem>>, vector<16x32xf32>,
    } else {
    }
    return
  }
  func.func @transform_0(%arg0: i32, %arg1: i32, %arg2: i32) -> (i32, i32) {
    %c0_i32 = arith.constant 0 : i32
    return %arg0, %arg2 : i32, i32
  }
  func.func @transform_1(%arg0: i32, %arg1: i32, %arg2: i32) -> (i32, i32) {
    %c0_i32 = arith.constant 0 : i32
    return %arg2, %arg1 : i32, i32
  }
  func.func @transform_2(%arg0: i32, %arg1: i32, %arg2: i32) -> (i32, i32) {
    %c0_i32 = arith.constant 0 : i32
    %c0_i32_0 = arith.constant 0 : i32
    return %c0_i32, %arg1 : i32, i32
  }
  func.func @transform_3(%arg0: i32, %arg1: i32, %arg2: i32) -> (i32, i32) {
    %c0_i32 = arith.constant 0 : i32
    return %arg0, %arg1 : i32, i32
  }
  func.func @transform_4(%arg0: i32, %arg1: i32, %arg2: i32) -> (i32, i32) {
    %c0_i32 = arith.constant 0 : i32
    return %arg0, %arg1 : i32, i32
  }
}

module attributes {stable_mosaic.version = 11 : i64} {
  func.func @_kv_proj_kernel(%arg0: i32, %arg1: i32, %arg2: memref<16x32xf32, #tpu.memory_space<vmem>>, %arg3: memref<32x32xf32, #tpu.memory_space<vmem>>, %arg4: memref<32x32xf32, #tpu.memory_space<vmem>>, %arg5: memref<16x32xf32, #tpu.memory_space<vmem>>, %arg6: memref<16x32xf32, #tpu.memory_space<vmem>>) attributes {dimension_semantics = [#tpu.dimension_semantics<parallel>, #tpu.dimension_semantics<parallel>], iteration_bounds = array<i64: 1, 1>, scalar_prefetch = 0 : i64, scratch_operands = 0 : i64, tpu.core_type = #tpu.core_type<tc>, window_params = [{transform_indices = @transform_0, window_bounds = array<i64: 16, 32>}, {transform_indices = @transform_1, window_bounds = array<i64: 32, 32>}, {transform_indices = @transform_2, window_bounds = array<i64: 32, 32>}, {transform_indices = @transform_3, window_bounds = array<i64: 16, 32>}, {transform_indices = @transform_4, window_bounds = array<i64: 16, 32>}]} {
    %c0 = arith.constant 0 : index
    %c0_0 = arith.constant 0 : index
    %0 = vector.load %arg2[%c0, %c0_0] : memref<16x32xf32, #tpu.memory_space<vmem>>, vector<16x32xf32>
    %c0_1 = arith.constant 0 : index
    %c0_2 = arith.constant 0 : index
    %1 = vector.load %arg3[%c0_1, %c0_2] : memref<32x32xf32, #tpu.memory_space<vmem>>, vector<32x32xf32>
    %cst = arith.constant dense<0.000000e+00> : vector<16x32xf32>
    %2 = tpu.matmul %0, %1, %cst {dimension_numbers = #tpu.dot_dimension_numbers<[1], [0], [0], [1], [0, 0, 1, 1], [], []>} : vector<16x32xf32>, vector<32x32xf32>, vector<16x32xf32> -> vector<16x32xf32>
    %c0_3 = arith.constant 0 : index
    %c0_4 = arith.constant 0 : index
    %3 = vector.load %arg5[%c0_3, %c0_4] : memref<16x32xf32, #tpu.memory_space<vmem>>, vector<16x32xf32>
    tpu.vector_store %arg5[%c0_3, %c0_4], %2 {strides = array<i32>} : memref<16x32xf32, #tpu.memory_space<vmem>>, vector<16x32xf32>,
    %c0_5 = arith.constant 0 : index
    %c0_6 = arith.constant 0 : index
    %4 = vector.load %arg4[%c0_5, %c0_6] : memref<32x32xf32, #tpu.memory_space<vmem>>, vector<32x32xf32>
    %cst_7 = arith.constant dense<0.000000e+00> : vector<16x32xf32>
    %5 = tpu.matmul %0, %4, %cst_7 {dimension_numbers = #tpu.dot_dimension_numbers<[1], [0], [0], [1], [0, 0, 1, 1], [], []>} : vector<16x32xf32>, vector<32x32xf32>, vector<16x32xf32> -> vector<16x32xf32>
    %c0_8 = arith.constant 0 : index
    %c0_9 = arith.constant 0 : index
    %6 = vector.load %arg6[%c0_8, %c0_9] : memref<16x32xf32, #tpu.memory_space<vmem>>, vector<16x32xf32>
    tpu.vector_store %arg6[%c0_8, %c0_9], %5 {strides = array<i32>} : memref<16x32xf32, #tpu.memory_space<vmem>>, vector<16x32xf32>,
    return
  }
  func.func @transform_0(%arg0: i32, %arg1: i32) -> (i32, i32) {
    %c0_i32 = arith.constant 0 : i32
    %c0_i32_0 = arith.constant 0 : i32
    return %arg0, %c0_i32 : i32, i32
  }
  func.func @transform_1(%arg0: i32, %arg1: i32) -> (i32, i32) {
    %c0_i32 = arith.constant 0 : i32
    %c0_i32_0 = arith.constant 0 : i32
    return %c0_i32, %arg1 : i32, i32
  }
  func.func @transform_2(%arg0: i32, %arg1: i32) -> (i32, i32) {
    %c0_i32 = arith.constant 0 : i32
    %c0_i32_0 = arith.constant 0 : i32
    return %c0_i32, %arg1 : i32, i32
  }
  func.func @transform_3(%arg0: i32, %arg1: i32) -> (i32, i32) {
    %c0_i32 = arith.constant 0 : i32
    return %arg0, %arg1 : i32, i32
  }
  func.func @transform_4(%arg0: i32, %arg1: i32) -> (i32, i32) {
    %c0_i32 = arith.constant 0 : i32
    return %arg0, %arg1 : i32, i32
  }
}

module attributes {stable_mosaic.version = 11 : i64} {
  func.func @_layernorm_kernel(%arg0: i32, %arg1: memref<16x32xf32, #tpu.memory_space<vmem>>, %arg2: memref<1x32xf32, #tpu.memory_space<vmem>>, %arg3: memref<1x32xf32, #tpu.memory_space<vmem>>, %arg4: memref<16x32xf32, #tpu.memory_space<vmem>>) attributes {dimension_semantics = [#tpu.dimension_semantics<parallel>], iteration_bounds = array<i64: 1>, scalar_prefetch = 0 : i64, scratch_operands = 0 : i64, tpu.core_type = #tpu.core_type<tc>, window_params = [{transform_indices = @transform_0, window_bounds = array<i64: 16, 32>}, {pipeline_mode = #tpu.pipeline_mode<synchronous>, transform_indices = @transform_1, window_bounds = array<i64: 1, 32>}, {pipeline_mode = #tpu.pipeline_mode<synchronous>, transform_indices = @transform_2, window_bounds = array<i64: 1, 32>}, {transform_indices = @transform_3, window_bounds = array<i64: 16, 32>}]} {
    %c0 = arith.constant 0 : index
    %c0_0 = arith.constant 0 : index
    %0 = vector.load %arg1[%c0, %c0_0] : memref<16x32xf32, #tpu.memory_space<vmem>>, vector<16x32xf32>
    %c0_1 = arith.constant 0 : index
    %c0_2 = arith.constant 0 : index
    %1 = vector.load %arg2[%c0_1, %c0_2] : memref<1x32xf32, #tpu.memory_space<vmem>>, vector<1x32xf32>
    %c0_3 = arith.constant 0 : index
    %c0_4 = arith.constant 0 : index
    %2 = vector.load %arg3[%c0_3, %c0_4] : memref<1x32xf32, #tpu.memory_space<vmem>>, vector<1x32xf32>
    %cst = arith.constant dense<0.000000e+00> : vector<16xf32>
    %3 = vector.multi_reduction <add>, %0, %cst [1] : vector<16x32xf32> to vector<16xf32>
    %4 = vector.shape_cast %3 : vector<16xf32> to vector<16x1xf32>
    %cst_5 = arith.constant 3.200000e+01 : f32
    %5 = vector.broadcast %cst_5 : f32 to vector<16x1xf32>
    %6 = arith.divf %4, %5 : vector<16x1xf32>
    %7 = vector.broadcast %6 : vector<16x1xf32> to vector<16x32xf32>
    %8 = arith.subf %0, %7 : vector<16x32xf32>
    %9 = arith.mulf %8, %8 : vector<16x32xf32>
    %cst_6 = arith.constant dense<0.000000e+00> : vector<16xf32>
    %10 = vector.multi_reduction <add>, %9, %cst_6 [1] : vector<16x32xf32> to vector<16xf32>
    %11 = vector.shape_cast %10 : vector<16xf32> to vector<16x1xf32>
    %cst_7 = arith.constant 0.0322580636 : f32
    %12 = vector.broadcast %cst_7 : f32 to vector<16x1xf32>
    %13 = arith.mulf %11, %12 : vector<16x1xf32>
    %14 = math.sqrt %13 : vector<16x1xf32>
    %cst_8 = arith.constant 9.99999997E-7 : f32
    %15 = vector.broadcast %cst_8 : f32 to vector<16x1xf32>
    %16 = arith.addf %14, %15 : vector<16x1xf32>
    %17 = tpu.reciprocal %16 {approx = true} : vector<16x1xf32> -> vector<16x1xf32>
    %18 = vector.broadcast %17 : vector<16x1xf32> to vector<16x32xf32>
    %19 = arith.mulf %8, %18 : vector<16x32xf32>
    %20 = vector.broadcast %1 : vector<1x32xf32> to vector<16x32xf32>
    %21 = arith.mulf %20, %19 : vector<16x32xf32>
    %22 = vector.broadcast %2 : vector<1x32xf32> to vector<16x32xf32>
    %23 = arith.addf %21, %22 : vector<16x32xf32>
    %c0_9 = arith.constant 0 : index
    %c0_10 = arith.constant 0 : index
    %24 = vector.load %arg4[%c0_9, %c0_10] : memref<16x32xf32, #tpu.memory_space<vmem>>, vector<16x32xf32>
    tpu.vector_store %arg4[%c0_9, %c0_10], %23 {strides = array<i32>} : memref<16x32xf32, #tpu.memory_space<vmem>>, vector<16x32xf32>,
    return
  }
  func.func @transform_0(%arg0: i32) -> (i32, i32) {
    %c0_i32 = arith.constant 0 : i32
    %c0_i32_0 = arith.constant 0 : i32
    return %arg0, %c0_i32 : i32, i32
  }
  func.func @transform_1(%arg0: i32) -> (i32, i32) {
    %c0_i32 = arith.constant 0 : i32
    %c0_i32_0 = arith.constant 0 : i32
    %c0_i32_1 = arith.constant 0 : i32
    return %c0_i32, %c0_i32_0 : i32, i32
  }
  func.func @transform_2(%arg0: i32) -> (i32, i32) {
    %c0_i32 = arith.constant 0 : i32
    %c0_i32_0 = arith.constant 0 : i32
    %c0_i32_1 = arith.constant 0 : i32
    return %c0_i32, %c0_i32_0 : i32, i32
  }
  func.func @transform_3(%arg0: i32) -> (i32, i32) {
    %c0_i32 = arith.constant 0 : i32
    %c0_i32_0 = arith.constant 0 : i32
    return %arg0, %c0_i32 : i32, i32
  }
}

</mosaic_0001>

<llo_original>
// kernel: decoder_forward.19
$region0: #{decoder_forward.19}
  #allocation0 [shape = 'u32[]', space=smem, size = 0x4, offset = 0x4, fixed_abs, tag = 'smem constant byte address 0x4 - core index']
  #allocation1 [shape = 'u32[144,128]{1,0:T(1,128)}', space=vmem, size = 0x12000, scoped, tag = 'internal scratch']
  %s0 = inlined_call_operand.vmem [shape: f32[16,32], index: 0, kind: input, shape index: {}]
  %s1 = inlined_call_operand.vmem [shape: f32[1,32], index: 1, kind: input, shape index: {}]
  %s2 = inlined_call_operand.vmem [shape: f32[1,32], index: 2, kind: input, shape index: {}]
  %s3 = inlined_call_operand.vmem [shape: f32[32,32], index: 3, kind: input, shape index: {}]
  %s4 = inlined_call_operand.vmem [shape: f32[32,32], index: 4, kind: input, shape index: {}]
  %s5 = inlined_call_operand.vmem [shape: f32[32,32], index: 5, kind: input, shape index: {}]
  %s6 = inlined_call_operand.vmem [shape: f32[16,32], index: 6, kind: output, shape index: {0}]
  %s7 = inlined_call_operand.vmem [shape: f32[16,32], index: 7, kind: output, shape index: {1}]
  %s8 = inlined_call_operand.vmem [shape: f32[16,32], index: 8, kind: output, shape index: {2}]
  %9 = xla_tuple %s6, %s7, %s8
  %s10 = sld [smem:[#allocation0]]
  $region50: #{decoder_forward.19} parent=0
    _
  %s12 = ssub.s32 1, %s10
  %s13 = scalar_select 0, %s12, %s10
  // Predicated region
  $region2: #{decoder_forward.19} parent=0 // pred_check
    _
  $region3: #{decoder_forward.19} parent=0 // pred_check_branch
    %15 = sbr.rel (0) target = $region5
  $region4: #{decoder_forward.19} parent=0 // pred_region
    _
  $region5: #{decoder_forward.19} parent=0 // pred_fallthru
    _
  // Predicated region
  $region6: #{decoder_forward.19} parent=0 // pred_check
    _
  $region7: #{decoder_forward.19} parent=0 // pred_check_branch
    %17 = sbr.rel (0) target = $region9
  $region8: #{decoder_forward.19} parent=0 // pred_region
    _
  $region9: #{decoder_forward.19} parent=0 // pred_fallthru
    _
  // Predicated region
  $region10: #{decoder_forward.19} parent=0 // pred_check
    _
  $region11: #{decoder_forward.19} parent=0 // pred_check_branch
    %19 = sbr.rel (0) target = $region13
  $region12: #{decoder_forward.19} parent=0 // pred_region
    _
  $region13: #{decoder_forward.19} parent=0 // pred_fallthru
    _
  // Predicated region
  $region14: #{decoder_forward.19} parent=0 // pred_check
    _
  $region15: #{decoder_forward.19} parent=0 // pred_check_branch
    %21 = sbr.rel (0) target = $region17
  $region16: #{decoder_forward.19} parent=0 // pred_region
    _
  $region17: #{decoder_forward.19} parent=0 // pred_fallthru
    _
  // Predicated region
  $region18: #{decoder_forward.19} parent=0 // pred_check
    _
  $region19: #{decoder_forward.19} parent=0 // pred_check_branch
    %23 = sbr.rel (0) target = $region21
  $region20: #{decoder_forward.19} parent=0 // pred_region
    _
  $region21: #{decoder_forward.19} parent=0 // pred_fallthru
    _
  // Predicated region
  $region22: #{decoder_forward.19} parent=0 // pred_check
    _
  $region23: #{decoder_forward.19} parent=0 // pred_check_branch
    %25 = sbr.rel (0) target = $region25
  $region24: #{decoder_forward.19} parent=0 // pred_region
    _
  $region25: #{decoder_forward.19} parent=0 // pred_fallthru
    _
  %v26 = vld [vmem:[%s0] sm:$0xff]
  %v27 = vld [vmem:[%s0 + $0x8] sm:$0xff]
  %v28 = vld [vmem:[%s1] sm:$0x1]
  %v29 = vld [vmem:[%s2] sm:$0x1]
  %vm30 = vcmask 261120
  %v31 = vsel %vm30, %v26, 0.0
  %32 = vadd.xlane.f32.xlu0 %v31
  %v33 = vpop.xlane.xlu0 %32
  %v34 = vsel %vm30, %v27, 0.0
  %35 = vadd.xlane.f32.xlu0 %v34
  %v36 = vpop.xlane.xlu0 %35
  %v37 = vrcp.pop 32.0
  %v38 = vmul.f32 %v33, %v37
  %v39 = vmul.f32 %v36, %v37
  %v40 = vsub.f32 %v26, %v38
  %v41 = vsub.f32 %v27, %v39
  %v42 = vmul.f32 %v40, %v40
  %v43 = vmul.f32 %v41, %v41
  %v44 = vsel %vm30, %v42, 0.0
  %45 = vadd.xlane.f32.xlu0 %v44
  %v46 = vpop.xlane.xlu0 %45
  %v47 = vsel %vm30, %v43, 0.0
  %48 = vadd.xlane.f32.xlu0 %v47
  %v49 = vpop.xlane.xlu0 %48
  %v50 = vmul.f32 %v46, 0.032258064
  %v51 = vmul.f32 %v49, 0.032258064
  %v52 = vrsqrt.pop %v50
  %v53 = vmul.f32 %v50, %v52
  %vm54 = vcmp.eq.f32.partialorder %v50, inf
  %v55 = vsel %vm54, %v50, %v53
  %vm56 = vcmp.eq.f32.partialorder %v50, 0.0
  %v57 = vand.u32 %v50, 2147483648
  %v58 = vsel %vm56, %v57, %v55
  %v59 = vrsqrt.pop %v51
  %v60 = vmul.f32 %v51, %v59
  %vm61 = vcmp.eq.f32.partialorder %v51, inf
  %v62 = vsel %vm61, %v51, %v60
  %vm63 = vcmp.eq.f32.partialorder %v51, 0.0
  %v64 = vand.u32 %v51, 2147483648
  %v65 = vsel %vm63, %v64, %v62
  %v66 = vadd.f32 %v58, 1e-06
  %v67 = vadd.f32 %v65, 1e-06
  %v68 = vrcp.pop %v66
  %v69 = vrcp.pop %v67
  %v70 = vmul.f32 %v40, %v68
  %v71 = vmul.f32 %v41, %v69
  %v73 = vlaneseq
  %v74 = vshrl.u32 %v73, 7
  %v75 = vsub.s32 0, %v74
  %v76 = vrot.slane %v28, %v75
  %v78 = vmul.f32 %v76, %v70
  %v79 = vmul.f32 %v76, %v71
  %v81 = vlaneseq
  %v82 = vshrl.u32 %v81, 7
  %v83 = vsub.s32 0, %v82
  %v84 = vrot.slane %v29, %v83
  %v86 = vadd.f32 %v78, %v84
  %v87 = vadd.f32 %v79, %v84
  %v88 = vld [vmem:[%s3] sm:$0xff]
  %v89 = vld [vmem:[%s3 + $0x8] sm:$0xff]
  %v90 = vld [vmem:[%s3 + $0x10] sm:$0xff]
  %v91 = vld [vmem:[%s3 + $0x18] sm:$0xff]
  %v93 = vsel %vm30, %v86, 0
  %v96 = vsel %vm30, %v87, 0
  %98 = vmatprep.subr.mxu0 0.0
  %99 = vmatpush1.msra.mxu0 %v88
  %100 = vmatprep.subr.mxu0 0.0
  %101 = vmatpush1.msra.mxu0 %v89
  %102 = vmatprep.subr.mxu0 0.0
  %103 = vmatpush1.msra.mxu0 %v90
  %104 = vmatprep.subr.mxu0 0.0
  %105 = vmatpush1.msra.mxu0 %v91
  %106 = vmatprep.subr.mxu0 0.0
  %107 = vmatpush1.msra.mxu0 0.0
  %108 = vmatprep.subr.mxu0 0.0
  %109 = vmatpush1.msra.mxu0 0.0
  %110 = vmatprep.subr.mxu0 0.0
  %111 = vmatpush1.msra.mxu0 0.0
  %112 = vmatprep.subr.mxu0 0.0
  %113 = vmatpush1.msra.mxu0 0.0
  %114 = vmatprep.subr.mxu0 0.0
  %115 = vmatpush1.msra.mxu0 0.0
  %116 = vmatprep.subr.mxu0 0.0
  %117 = vmatpush1.msra.mxu0 0.0
  %118 = vmatprep.subr.mxu0 0.0
  %119 = vmatpush1.msra.mxu0 0.0
  %120 = vmatprep.subr.mxu0 0.0
  %121 = vmatpush1.msra.mxu0 0.0
  %122 = vmatprep.subr.mxu0 0.0
  %123 = vmatpush1.msra.mxu0 0.0
  %124 = vmatprep.subr.mxu0 0.0
  %125 = vmatpush1.msra.mxu0 0.0
  %126 = vmatprep.subr.mxu0 0.0
  %127 = vmatpush1.msra.mxu0 0.0
  %128 = vmatprep.subr.mxu0 0.0
  %129 = vmatpush1.msra.mxu0 0.0
  %130 = vmatprep.subr.mxu0 0.0
  %131 = vmatpush1.msra.mxu0 0.0
  %132 = vmatprep.subr.mxu0 0.0
  %133 = vmatpush1.msra.mxu0 0.0
  %134 = vmatprep.subr.mxu0 0.0
  %135 = vmatpush1.msra.mxu0 0.0
  %136 = vmatprep.subr.mxu0 0.0
  %137 = vmatpush1.msra.mxu0 0.0
  %138 = vmatprep.subr.mxu0 0.0
  %139 = vmatpush1.msra.mxu0 0.0
  %140 = vmatprep.subr.mxu0 0.0
  %141 = vmatpush1.msra.mxu0 0.0
  %142 = vmatprep.subr.mxu0 0.0
  %143 = vmatpush1.msra.mxu0 0.0
  %144 = vmatprep.subr.mxu0 0.0
  %145 = vmatpush1.msra.mxu0 0.0
  %146 = vmatprep.subr.mxu0 0.0
  %147 = vmatpush1.msra.mxu0 0.0
  %148 = vmatprep.subr.mxu0 0.0
  %149 = vmatpush1.msra.mxu0 0.0
  %150 = vmatprep.subr.mxu0 0.0
  %151 = vmatpush1.msra.mxu0 0.0
  %152 = vmatprep.subr.mxu0 0.0
  %153 = vmatpush1.msra.mxu0 0.0
  %154 = vmatprep.subr.mxu0 0.0
  %155 = vmatpush1.msra.mxu0 0.0
  %156 = vmatprep.subr.mxu0 0.0
  %157 = vmatpush1.msra.mxu0 0.0
  %158 = vmatprep.subr.mxu0 0.0
  %159 = vmatpush1.msra.mxu0 0.0
  %160 = vmatprep.subr.mxu0 0.0
  %161 = vmatpush1.msra.mxu0 0.0
  %162 = vmatprep.mubr.f32.mxu0 0.0
  %163 = vmatmul.mubr.f32.gmra.mrb[0].mxu0 %v93
  %v164 = vpop.f32.mrb[0].mxu0
  %v165 = vadd.f32 0.0, %v164
  %v166 = vpop.f32.mrb[0].mxu0
  %167 = vmatprep.mubr.f32.mxu0 0.0
  %168 = vmatmul.mubr.f32.gmra.mrb[0].mxu0 %v96
  %v169 = vpop.f32.mrb[0].mxu0
  %v170 = vadd.f32 0.0, %v169
  %v171 = vpop.f32.mrb[0].mxu0
  %172 = vdwg.mxu0
  %173 = vst.msk [vmem:[%s6] sm:$0xff] %vm30, %v165
  %174 = vst.msk [vmem:[%s6 + $0x8] sm:$0xff] %vm30, %v170
  %v175 = vld [vmem:[%s4] sm:$0xff]
  %v176 = vld [vmem:[%s4 + $0x8] sm:$0xff]
  %v177 = vld [vmem:[%s4 + $0x10] sm:$0xff]
  %v178 = vld [vmem:[%s4 + $0x18] sm:$0xff]
  %179 = vmatprep.subr.mxu0 0.0
  %180 = vmatpush1.msra.mxu0 %v175
  %181 = vmatprep.subr.mxu0 0.0
  %182 = vmatpush1.msra.mxu0 %v176
  %183 = vmatprep.subr.mxu0 0.0
  %184 = vmatpush1.msra.mxu0 %v177
  %185 = vmatprep.subr.mxu0 0.0
  %186 = vmatpush1.msra.mxu0 %v178
  %187 = vmatprep.subr.mxu0 0.0
  %188 = vmatpush1.msra.mxu0 0.0
  %189 = vmatprep.subr.mxu0 0.0
  %190 = vmatpush1.msra.mxu0 0.0
  %191 = vmatprep.subr.mxu0 0.0
  %192 = vmatpush1.msra.mxu0 0.0
  %193 = vmatprep.subr.mxu0 0.0
  %194 = vmatpush1.msra.mxu0 0.0
  %195 = vmatprep.subr.mxu0 0.0
  %196 = vmatpush1.msra.mxu0 0.0
  %197 = vmatprep.subr.mxu0 0.0
  %198 = vmatpush1.msra.mxu0 0.0
  %199 = vmatprep.subr.mxu0 0.0
  %200 = vmatpush1.msra.mxu0 0.0
  %201 = vmatprep.subr.mxu0 0.0
  %202 = vmatpush1.msra.mxu0 0.0
  %203 = vmatprep.subr.mxu0 0.0
  %204 = vmatpush1.msra.mxu0 0.0
  %205 = vmatprep.subr.mxu0 0.0
  %206 = vmatpush1.msra.mxu0 0.0
  %207 = vmatprep.subr.mxu0 0.0
  %208 = vmatpush1.msra.mxu0 0.0
  %209 = vmatprep.subr.mxu0 0.0
  %210 = vmatpush1.msra.mxu0 0.0
  %211 = vmatprep.subr.mxu0 0.0
  %212 = vmatpush1.msra.mxu0 0.0
  %213 = vmatprep.subr.mxu0 0.0
  %214 = vmatpush1.msra.mxu0 0.0
  %215 = vmatprep.subr.mxu0 0.0
  %216 = vmatpush1.msra.mxu0 0.0
  %217 = vmatprep.subr.mxu0 0.0
  %218 = vmatpush1.msra.mxu0 0.0
  %219 = vmatprep.subr.mxu0 0.0
  %220 = vmatpush1.msra.mxu0 0.0
  %221 = vmatprep.subr.mxu0 0.0
  %222 = vmatpush1.msra.mxu0 0.0
  %223 = vmatprep.subr.mxu0 0.0
  %224 = vmatpush1.msra.mxu0 0.0
  %225 = vmatprep.subr.mxu0 0.0
  %226 = vmatpush1.msra.mxu0 0.0
  %227 = vmatprep.subr.mxu0 0.0
  %228 = vmatpush1.msra.mxu0 0.0
  %229 = vmatprep.subr.mxu0 0.0
  %230 = vmatpush1.msra.mxu0 0.0
  %231 = vmatprep.subr.mxu0 0.0
  %232 = vmatpush1.msra.mxu0 0.0
  %233 = vmatprep.subr.mxu0 0.0
  %234 = vmatpush1.msra.mxu0 0.0
  %235 = vmatprep.subr.mxu0 0.0
  %236 = vmatpush1.msra.mxu0 0.0
  %237 = vmatprep.subr.mxu0 0.0
  %238 = vmatpush1.msra.mxu0 0.0
  %239 = vmatprep.subr.mxu0 0.0
  %240 = vmatpush1.msra.mxu0 0.0
  %241 = vmatprep.subr.mxu0 0.0
  %242 = vmatpush1.msra.mxu0 0.0
  %243 = vmatprep.mubr.f32.mxu0 0.0
  %244 = vmatmul.mubr.f32.gmra.mrb[0].mxu0 %v93
  %v245 = vpop.f32.mrb[0].mxu0
  %v246 = vadd.f32 0.0, %v245
  %v247 = vpop.f32.mrb[0].mxu0
  %248 = vmatprep.mubr.f32.mxu0 0.0
  %249 = vmatmul.mubr.f32.gmra.mrb[0].mxu0 %v96
  %v250 = vpop.f32.mrb[0].mxu0
  %v251 = vadd.f32 0.0, %v250
  %v252 = vpop.f32.mrb[0].mxu0
  %253 = vdwg.mxu0
  %254 = vst.msk [vmem:[%s7] sm:$0xff] %vm30, %v246
  %255 = vst.msk [vmem:[%s7 + $0x8] sm:$0xff] %vm30, %v251
  %v256 = vld [vmem:[%s5] sm:$0xff]
  %v257 = vld [vmem:[%s5 + $0x8] sm:$0xff]
  %v258 = vld [vmem:[%s5 + $0x10] sm:$0xff]
  %v259 = vld [vmem:[%s5 + $0x18] sm:$0xff]
  %260 = vmatprep.subr.mxu0 0.0
  %261 = vmatpush1.msra.mxu0 %v256
  %262 = vmatprep.subr.mxu0 0.0
  %263 = vmatpush1.msra.mxu0 %v257
  %264 = vmatprep.subr.mxu0 0.0
  %265 = vmatpush1.msra.mxu0 %v258
  %266 = vmatprep.subr.mxu0 0.0
  %267 = vmatpush1.msra.mxu0 %v259
  %268 = vmatprep.subr.mxu0 0.0
  %269 = vmatpush1.msra.mxu0 0.0
  %270 = vmatprep.subr.mxu0 0.0
  %271 = vmatpush1.msra.mxu0 0.0
  %272 = vmatprep.subr.mxu0 0.0
  %273 = vmatpush1.msra.mxu0 0.0
  %274 = vmatprep.subr.mxu0 0.0
  %275 = vmatpush1.msra.mxu0 0.0
  %276 = vmatprep.subr.mxu0 0.0
  %277 = vmatpush1.msra.mxu0 0.0
  %278 = vmatprep.subr.mxu0 0.0
  %279 = vmatpush1.msra.mxu0 0.0
  %280 = vmatprep.subr.mxu0 0.0
  %281 = vmatpush1.msra.mxu0 0.0
  %282 = vmatprep.subr.mxu0 0.0
  %283 = vmatpush1.msra.mxu0 0.0
  %284 = vmatprep.subr.mxu0 0.0
  %285 = vmatpush1.msra.mxu0 0.0
  %286 = vmatprep.subr.mxu0 0.0
  %287 = vmatpush1.msra.mxu0 0.0
  %288 = vmatprep.subr.mxu0 0.0
  %289 = vmatpush1.msra.mxu0 0.0
  %290 = vmatprep.subr.mxu0 0.0
  %291 = vmatpush1.msra.mxu0 0.0
  %292 = vmatprep.subr.mxu0 0.0
  %293 = vmatpush1.msra.mxu0 0.0
  %294 = vmatprep.subr.mxu0 0.0
  %295 = vmatpush1.msra.mxu0 0.0
  %296 = vmatprep.subr.mxu0 0.0
  %297 = vmatpush1.msra.mxu0 0.0
  %298 = vmatprep.subr.mxu0 0.0
  %299 = vmatpush1.msra.mxu0 0.0
  %300 = vmatprep.subr.mxu0 0.0
  %301 = vmatpush1.msra.mxu0 0.0
  %302 = vmatprep.subr.mxu0 0.0
  %303 = vmatpush1.msra.mxu0 0.0
  %304 = vmatprep.subr.mxu0 0.0
  %305 = vmatpush1.msra.mxu0 0.0
  %306 = vmatprep.subr.mxu0 0.0
  %307 = vmatpush1.msra.mxu0 0.0
  %308 = vmatprep.subr.mxu0 0.0
  %309 = vmatpush1.msra.mxu0 0.0
  %310 = vmatprep.subr.mxu0 0.0
  %311 = vmatpush1.msra.mxu0 0.0
  %312 = vmatprep.subr.mxu0 0.0
  %313 = vmatpush1.msra.mxu0 0.0
  %314 = vmatprep.subr.mxu0 0.0
  %315 = vmatpush1.msra.mxu0 0.0
  %316 = vmatprep.subr.mxu0 0.0
  %317 = vmatpush1.msra.mxu0 0.0
  %318 = vmatprep.subr.mxu0 0.0
  %319 = vmatpush1.msra.mxu0 0.0
  %320 = vmatprep.subr.mxu0 0.0
  %321 = vmatpush1.msra.mxu0 0.0
  %322 = vmatprep.subr.mxu0 0.0
  %323 = vmatpush1.msra.mxu0 0.0
  %324 = vmatprep.mubr.f32.mxu0 0.0
  %325 = vmatmul.mubr.f32.gmra.mrb[0].mxu0 %v93
  %v326 = vpop.f32.mrb[0].mxu0
  %v327 = vadd.f32 0.0, %v326
  %v328 = vpop.f32.mrb[0].mxu0
  %329 = vmatprep.mubr.f32.mxu0 0.0
  %330 = vmatmul.mubr.f32.gmra.mrb[0].mxu0 %v96
  %v331 = vpop.f32.mrb[0].mxu0
  %v332 = vadd.f32 0.0, %v331
  %v333 = vpop.f32.mrb[0].mxu0
  %334 = vdwg.mxu0
  %335 = vst.msk [vmem:[%s8] sm:$0xff] %vm30, %v327
  %336 = vst.msk [vmem:[%s8 + $0x8] sm:$0xff] %vm30, %v332
  // Predicated region
  $region26: #{decoder_forward.19} parent=0 // pred_check
    _
  $region27: #{decoder_forward.19} parent=0 // pred_check_branch
    %338 = sbr.rel (0) target = $region29
  $region28: #{decoder_forward.19} parent=0 // pred_region
    _
  $region29: #{decoder_forward.19} parent=0 // pred_fallthru
    _
  // Predicated region
  $region30: #{decoder_forward.19} parent=0 // pred_check
    _
  $region31: #{decoder_forward.19} parent=0 // pred_check_branch
    %340 = sbr.rel (0) target = $region33
  $region32: #{decoder_forward.19} parent=0 // pred_region
    _
  $region33: #{decoder_forward.19} parent=0 // pred_fallthru
    _
  // Predicated region
  $region34: #{decoder_forward.19} parent=0 // pred_check
    _
  $region35: #{decoder_forward.19} parent=0 // pred_check_branch
    %342 = sbr.rel (0) target = $region37
  $region36: #{decoder_forward.19} parent=0 // pred_region
    _
  $region37: #{decoder_forward.19} parent=0 // pred_fallthru
    _
  // Predicated region
  $region38: #{decoder_forward.19} parent=0 // pred_check
    _
  $region39: #{decoder_forward.19} parent=0 // pred_check_branch
    %344 = sbr.rel (0) target = $region41
  $region40: #{decoder_forward.19} parent=0 // pred_region
    _
  $region41: #{decoder_forward.19} parent=0 // pred_fallthru
    _
  // Predicated region
  $region42: #{decoder_forward.19} parent=0 // pred_check
    _
  $region43: #{decoder_forward.19} parent=0 // pred_check_branch
    %346 = sbr.rel (0) target = $region45
  $region44: #{decoder_forward.19} parent=0 // pred_region
    _
  $region45: #{decoder_forward.19} parent=0 // pred_fallthru
    _
  // Predicated region
  $region46: #{decoder_forward.19} parent=0 // pred_check
    _
  $region47: #{decoder_forward.19} parent=0 // pred_check_branch
    %348 = sbr.rel (0) target = $region49
  $region48: #{decoder_forward.19} parent=0 // pred_region
    _
  $region49: #{decoder_forward.19} parent=0 // pred_fallthru
    _

// kernel: decoder_forward.22
$region0: #{decoder_forward.22}
  #allocation0 [shape = 'u32[]', space=smem, size = 0x4, offset = 0x4, fixed_abs, tag = 'smem constant byte address 0x4 - core index']
  #allocation1 [shape = 'u32[144,128]{1,0:T(1,128)}', space=vmem, size = 0x12000, scoped, tag = 'internal scratch']
  %s0 = inlined_call_operand.vmem [shape: f32[16,32], index: 0, kind: input, shape index: {}]
  %s1 = inlined_call_operand.vmem [shape: f32[1,32], index: 1, kind: input, shape index: {}]
  %s2 = inlined_call_operand.vmem [shape: f32[1,32], index: 2, kind: input, shape index: {}]
  %s3 = inlined_call_operand.vmem [shape: f32[32,32], index: 3, kind: input, shape index: {}]
  %s4 = inlined_call_operand.vmem [shape: f32[16,32], index: 4, kind: output, shape index: {}]
  %s5 = sld [smem:[#allocation0]]
  $region26: #{decoder_forward.22} parent=0
    _
  %s7 = ssub.s32 1, %s5
  %s8 = scalar_select 0, %s7, %s5
  // Predicated region
  $region2: #{decoder_forward.22} parent=0 // pred_check
    _
  $region3: #{decoder_forward.22} parent=0 // pred_check_branch
    %10 = sbr.rel (0) target = $region5
  $region4: #{decoder_forward.22} parent=0 // pred_region
    _
  $region5: #{decoder_forward.22} parent=0 // pred_fallthru
    _
  // Predicated region
  $region6: #{decoder_forward.22} parent=0 // pred_check
    _
  $region7: #{decoder_forward.22} parent=0 // pred_check_branch
    %12 = sbr.rel (0) target = $region9
  $region8: #{decoder_forward.22} parent=0 // pred_region
    _
  $region9: #{decoder_forward.22} parent=0 // pred_fallthru
    _
  // Predicated region
  $region10: #{decoder_forward.22} parent=0 // pred_check
    _
  $region11: #{decoder_forward.22} parent=0 // pred_check_branch
    %14 = sbr.rel (0) target = $region13
  $region12: #{decoder_forward.22} parent=0 // pred_region
    _
  $region13: #{decoder_forward.22} parent=0 // pred_fallthru
    _
  // Predicated region
  $region14: #{decoder_forward.22} parent=0 // pred_check
    _
  $region15: #{decoder_forward.22} parent=0 // pred_check_branch
    %16 = sbr.rel (0) target = $region17
  $region16: #{decoder_forward.22} parent=0 // pred_region
    _
  $region17: #{decoder_forward.22} parent=0 // pred_fallthru
    _
  %v17 = vld [vmem:[%s0] sm:$0xff]
  %v18 = vld [vmem:[%s0 + $0x8] sm:$0xff]
  %v19 = vld [vmem:[%s1] sm:$0x1]
  %v20 = vld [vmem:[%s2] sm:$0x1]
  %vm21 = vcmask 261120
  %v22 = vsel %vm21, %v17, 0.0
  %23 = vadd.xlane.f32.xlu0 %v22
  %v24 = vpop.xlane.xlu0 %23
  %v25 = vsel %vm21, %v18, 0.0
  %26 = vadd.xlane.f32.xlu0 %v25
  %v27 = vpop.xlane.xlu0 %26
  %v28 = vrcp.pop 32.0
  %v29 = vmul.f32 %v24, %v28
  %v30 = vmul.f32 %v27, %v28
  %v31 = vsub.f32 %v17, %v29
  %v32 = vsub.f32 %v18, %v30
  %v33 = vmul.f32 %v31, %v31
  %v34 = vmul.f32 %v32, %v32
  %v35 = vsel %vm21, %v33, 0.0
  %36 = vadd.xlane.f32.xlu0 %v35
  %v37 = vpop.xlane.xlu0 %36
  %v38 = vsel %vm21, %v34, 0.0
  %39 = vadd.xlane.f32.xlu0 %v38
  %v40 = vpop.xlane.xlu0 %39
  %v41 = vmul.f32 %v37, 0.032258064
  %v42 = vmul.f32 %v40, 0.032258064
  %v43 = vrsqrt.pop %v41
  %v44 = vmul.f32 %v41, %v43
  %vm45 = vcmp.eq.f32.partialorder %v41, inf
  %v46 = vsel %vm45, %v41, %v44
  %vm47 = vcmp.eq.f32.partialorder %v41, 0.0
  %v48 = vand.u32 %v41, 2147483648
  %v49 = vsel %vm47, %v48, %v46
  %v50 = vrsqrt.pop %v42
  %v51 = vmul.f32 %v42, %v50
  %vm52 = vcmp.eq.f32.partialorder %v42, inf
  %v53 = vsel %vm52, %v42, %v51
  %vm54 = vcmp.eq.f32.partialorder %v42, 0.0
  %v55 = vand.u32 %v42, 2147483648
  %v56 = vsel %vm54, %v55, %v53
  %v57 = vadd.f32 %v49, 1e-06
  %v58 = vadd.f32 %v56, 1e-06
  %v59 = vrcp.pop %v57
  %v60 = vrcp.pop %v58
  %v61 = vmul.f32 %v31, %v59
  %v62 = vmul.f32 %v32, %v60
  %v64 = vlaneseq
  %v65 = vshrl.u32 %v64, 7
  %v66 = vsub.s32 0, %v65
  %v67 = vrot.slane %v19, %v66
  %v69 = vmul.f32 %v67, %v61
  %v70 = vmul.f32 %v67, %v62
  %v72 = vlaneseq
  %v73 = vshrl.u32 %v72, 7
  %v74 = vsub.s32 0, %v73
  %v75 = vrot.slane %v20, %v74
  %v77 = vadd.f32 %v69, %v75
  %v78 = vadd.f32 %v70, %v75
  %v79 = vld [vmem:[%s3] sm:$0xff]
  %v80 = vld [vmem:[%s3 + $0x8] sm:$0xff]
  %v81 = vld [vmem:[%s3 + $0x10] sm:$0xff]
  %v82 = vld [vmem:[%s3 + $0x18] sm:$0xff]
  %v84 = vsel %vm21, %v77, 0
  %v87 = vsel %vm21, %v78, 0
  %89 = vmatprep.subr.mxu0 0.0
  %90 = vmatpush1.msra.mxu0 %v79
  %91 = vmatprep.subr.mxu0 0.0
  %92 = vmatpush1.msra.mxu0 %v80
  %93 = vmatprep.subr.mxu0 0.0
  %94 = vmatpush1.msra.mxu0 %v81
  %95 = vmatprep.subr.mxu0 0.0
  %96 = vmatpush1.msra.mxu0 %v82
  %97 = vmatprep.subr.mxu0 0.0
  %98 = vmatpush1.msra.mxu0 0.0
  %99 = vmatprep.subr.mxu0 0.0
  %100 = vmatpush1.msra.mxu0 0.0
  %101 = vmatprep.subr.mxu0 0.0
  %102 = vmatpush1.msra.mxu0 0.0
  %103 = vmatprep.subr.mxu0 0.0
  %104 = vmatpush1.msra.mxu0 0.0
  %105 = vmatprep.subr.mxu0 0.0
  %106 = vmatpush1.msra.mxu0 0.0
  %107 = vmatprep.subr.mxu0 0.0
  %108 = vmatpush1.msra.mxu0 0.0
  %109 = vmatprep.subr.mxu0 0.0
  %110 = vmatpush1.msra.mxu0 0.0
  %111 = vmatprep.subr.mxu0 0.0
  %112 = vmatpush1.msra.mxu0 0.0
  %113 = vmatprep.subr.mxu0 0.0
  %114 = vmatpush1.msra.mxu0 0.0
  %115 = vmatprep.subr.mxu0 0.0
  %116 = vmatpush1.msra.mxu0 0.0
  %117 = vmatprep.subr.mxu0 0.0
  %118 = vmatpush1.msra.mxu0 0.0
  %119 = vmatprep.subr.mxu0 0.0
  %120 = vmatpush1.msra.mxu0 0.0
  %121 = vmatprep.subr.mxu0 0.0
  %122 = vmatpush1.msra.mxu0 0.0
  %123 = vmatprep.subr.mxu0 0.0
  %124 = vmatpush1.msra.mxu0 0.0
  %125 = vmatprep.subr.mxu0 0.0
  %126 = vmatpush1.msra.mxu0 0.0
  %127 = vmatprep.subr.mxu0 0.0
  %128 = vmatpush1.msra.mxu0 0.0
  %129 = vmatprep.subr.mxu0 0.0
  %130 = vmatpush1.msra.mxu0 0.0
  %131 = vmatprep.subr.mxu0 0.0
  %132 = vmatpush1.msra.mxu0 0.0
  %133 = vmatprep.subr.mxu0 0.0
  %134 = vmatpush1.msra.mxu0 0.0
  %135 = vmatprep.subr.mxu0 0.0
  %136 = vmatpush1.msra.mxu0 0.0
  %137 = vmatprep.subr.mxu0 0.0
  %138 = vmatpush1.msra.mxu0 0.0
  %139 = vmatprep.subr.mxu0 0.0
  %140 = vmatpush1.msra.mxu0 0.0
  %141 = vmatprep.subr.mxu0 0.0
  %142 = vmatpush1.msra.mxu0 0.0
  %143 = vmatprep.subr.mxu0 0.0
  %144 = vmatpush1.msra.mxu0 0.0
  %145 = vmatprep.subr.mxu0 0.0
  %146 = vmatpush1.msra.mxu0 0.0
  %147 = vmatprep.subr.mxu0 0.0
  %148 = vmatpush1.msra.mxu0 0.0
  %149 = vmatprep.subr.mxu0 0.0
  %150 = vmatpush1.msra.mxu0 0.0
  %151 = vmatprep.subr.mxu0 0.0
  %152 = vmatpush1.msra.mxu0 0.0
  %153 = vmatprep.mubr.f32.mxu0 0.0
  %154 = vmatmul.mubr.f32.gmra.mrb[0].mxu0 %v84
  %v155 = vpop.f32.mrb[0].mxu0
  %v156 = vadd.f32 0.0, %v155
  %v157 = vpop.f32.mrb[0].mxu0
  %158 = vmatprep.mubr.f32.mxu0 0.0
  %159 = vmatmul.mubr.f32.gmra.mrb[0].mxu0 %v87
  %v160 = vpop.f32.mrb[0].mxu0
  %v161 = vadd.f32 0.0, %v160
  %v162 = vpop.f32.mrb[0].mxu0
  %163 = vdwg.mxu0
  %164 = vst.msk [vmem:[%s4] sm:$0xff] %vm21, %v156
  %165 = vst.msk [vmem:[%s4 + $0x8] sm:$0xff] %vm21, %v161
  // Predicated region
  $region18: #{decoder_forward.22} parent=0 // pred_check
    _
  $region19: #{decoder_forward.22} parent=0 // pred_check_branch
    %167 = sbr.rel (0) target = $region21
  $region20: #{decoder_forward.22} parent=0 // pred_region
    _
  $region21: #{decoder_forward.22} parent=0 // pred_fallthru
    _
  // Predicated region
  $region22: #{decoder_forward.22} parent=0 // pred_check
    _
  $region23: #{decoder_forward.22} parent=0 // pred_check_branch
    %169 = sbr.rel (0) target = $region25
  $region24: #{decoder_forward.22} parent=0 // pred_region
    _
  $region25: #{decoder_forward.22} parent=0 // pred_fallthru
    _

// kernel: decoder_forward.21
$region0: #{decoder_forward.21}
  #allocation0 [shape = 'u32[]', space=smem, size = 0x4, offset = 0x4, fixed_abs, tag = 'smem constant byte address 0x4 - core index']
  #allocation1 [shape = 'u32[144,128]{1,0:T(1,128)}', space=vmem, size = 0x12000, scoped, tag = 'internal scratch']
  #allocation2 [shape = 'f32[16,32]{1,0:T(8,128)}', space=vmem, size = 0x2000, scoped, tag = 'scratch operand']
  %s0 = inlined_call_operand.vmem [shape: f32[16,32], index: 0, kind: input, shape index: {}]
  %s1 = inlined_call_operand.vmem [shape: f32[32,32], index: 1, kind: input, shape index: {}]
  %s2 = inlined_call_operand.vmem [shape: f32[1,32], index: 2, kind: input, shape index: {}]
  %s3 = inlined_call_operand.vmem [shape: f32[16,32], index: 3, kind: input, shape index: {}]
  %s4 = inlined_call_operand.vmem [shape: f32[16,32], index: 4, kind: output, shape index: {}]
  %s5 = sld [smem:[#allocation0]]
  $region34: #{decoder_forward.21} parent=0
    _
  %s7 = ssub.s32 1, %s5
  %s8 = scalar_select 0, %s7, %s5
  // Predicated region
  $region2: #{decoder_forward.21} parent=0 // pred_check
    _
  $region3: #{decoder_forward.21} parent=0 // pred_check_branch
    %10 = sbr.rel (0) target = $region5
  $region4: #{decoder_forward.21} parent=0 // pred_region
    _
  $region5: #{decoder_forward.21} parent=0 // pred_fallthru
    _
  // Predicated region
  $region6: #{decoder_forward.21} parent=0 // pred_check
    _
  $region7: #{decoder_forward.21} parent=0 // pred_check_branch
    %12 = sbr.rel (0) target = $region9
  $region8: #{decoder_forward.21} parent=0 // pred_region
    _
  $region9: #{decoder_forward.21} parent=0 // pred_fallthru
    _
  // Predicated region
  $region10: #{decoder_forward.21} parent=0 // pred_check
    _
  $region11: #{decoder_forward.21} parent=0 // pred_check_branch
    %14 = sbr.rel (0) target = $region13
  $region12: #{decoder_forward.21} parent=0 // pred_region
    _
  $region13: #{decoder_forward.21} parent=0 // pred_fallthru
    _
  // Predicated region
  $region14: #{decoder_forward.21} parent=0 // pred_check
    _
  $region15: #{decoder_forward.21} parent=0 // pred_check_branch
    %16 = sbr.rel (0) target = $region17
  $region16: #{decoder_forward.21} parent=0 // pred_region
    _
  $region17: #{decoder_forward.21} parent=0 // pred_fallthru
    _
  %p17 = scmp.eq.s32.totalorder 0, 0
  // Predicated region
  $region18: #{decoder_forward.21} parent=0 // pred_check
    %p18 = pneg %p17
  $region19: #{decoder_forward.21} parent=0 // pred_check_branch
    %20 = sbr.rel (%p18) target = $region21
  $region20: #{decoder_forward.21} parent=0 // pred_region
    %vm21 = vcmask 261120
    %22 = vst.msk [vmem:[#allocation2] sm:$0xff] %vm21, 0.0
    %23 = vst.msk [vmem:[#allocation2 + $0x8] sm:$0xff] %vm21, 0.0
  $region21: #{decoder_forward.21} parent=0 // pred_fallthru
    _
  %v24 = vld [vmem:[#allocation2] sm:$0xff]
  %v25 = vld [vmem:[#allocation2 + $0x8] sm:$0xff]
  %v26 = vld [vmem:[%s0] sm:$0xff]
  %v27 = vld [vmem:[%s0 + $0x8] sm:$0xff]
  %v28 = vld [vmem:[%s1] sm:$0xff]
  %v29 = vld [vmem:[%s1 + $0x8] sm:$0xff]
  %v30 = vld [vmem:[%s1 + $0x10] sm:$0xff]
  %v31 = vld [vmem:[%s1 + $0x18] sm:$0xff]
  %vm32 = vcmask 261120
  %v34 = vsel %vm32, %v26, 0
  %v37 = vsel %vm32, %v27, 0
  %39 = vmatprep.subr.mxu0 0.0
  %40 = vmatpush1.msra.mxu0 %v28
  %41 = vmatprep.subr.mxu0 0.0
  %42 = vmatpush1.msra.mxu0 %v29
  %43 = vmatprep.subr.mxu0 0.0
  %44 = vmatpush1.msra.mxu0 %v30
  %45 = vmatprep.subr.mxu0 0.0
  %46 = vmatpush1.msra.mxu0 %v31
  %47 = vmatprep.subr.mxu0 0.0
  %48 = vmatpush1.msra.mxu0 0.0
  %49 = vmatprep.subr.mxu0 0.0
  %50 = vmatpush1.msra.mxu0 0.0
  %51 = vmatprep.subr.mxu0 0.0
  %52 = vmatpush1.msra.mxu0 0.0
  %53 = vmatprep.subr.mxu0 0.0
  %54 = vmatpush1.msra.mxu0 0.0
  %55 = vmatprep.subr.mxu0 0.0
  %56 = vmatpush1.msra.mxu0 0.0
  %57 = vmatprep.subr.mxu0 0.0
  %58 = vmatpush1.msra.mxu0 0.0
  %59 = vmatprep.subr.mxu0 0.0
  %60 = vmatpush1.msra.mxu0 0.0
  %61 = vmatprep.subr.mxu0 0.0
  %62 = vmatpush1.msra.mxu0 0.0
  %63 = vmatprep.subr.mxu0 0.0
  %64 = vmatpush1.msra.mxu0 0.0
  %65 = vmatprep.subr.mxu0 0.0
  %66 = vmatpush1.msra.mxu0 0.0
  %67 = vmatprep.subr.mxu0 0.0
  %68 = vmatpush1.msra.mxu0 0.0
  %69 = vmatprep.subr.mxu0 0.0
  %70 = vmatpush1.msra.mxu0 0.0
  %71 = vmatprep.subr.mxu0 0.0
  %72 = vmatpush1.msra.mxu0 0.0
  %73 = vmatprep.subr.mxu0 0.0
  %74 = vmatpush1.msra.mxu0 0.0
  %75 = vmatprep.subr.mxu0 0.0
  %76 = vmatpush1.msra.mxu0 0.0
  %77 = vmatprep.subr.mxu0 0.0
  %78 = vmatpush1.msra.mxu0 0.0
  %79 = vmatprep.subr.mxu0 0.0
  %80 = vmatpush1.msra.mxu0 0.0
  %81 = vmatprep.subr.mxu0 0.0
  %82 = vmatpush1.msra.mxu0 0.0
  %83 = vmatprep.subr.mxu0 0.0
  %84 = vmatpush1.msra.mxu0 0.0
  %85 = vmatprep.subr.mxu0 0.0
  %86 = vmatpush1.msra.mxu0 0.0
  %87 = vmatprep.subr.mxu0 0.0
  %88 = vmatpush1.msra.mxu0 0.0
  %89 = vmatprep.subr.mxu0 0.0
  %90 = vmatpush1.msra.mxu0 0.0
  %91 = vmatprep.subr.mxu0 0.0
  %92 = vmatpush1.msra.mxu0 0.0
  %93 = vmatprep.subr.mxu0 0.0
  %94 = vmatpush1.msra.mxu0 0.0
  %95 = vmatprep.subr.mxu0 0.0
  %96 = vmatpush1.msra.mxu0 0.0
  %97 = vmatprep.subr.mxu0 0.0
  %98 = vmatpush1.msra.mxu0 0.0
  %99 = vmatprep.subr.mxu0 0.0
  %100 = vmatpush1.msra.mxu0 0.0
  %101 = vmatprep.subr.mxu0 0.0
  %102 = vmatpush1.msra.mxu0 0.0
  %103 = vmatprep.mubr.f32.mxu0 0.0
  %104 = vmatmul.mubr.f32.gmra.mrb[0].mxu0 %v34
  %v105 = vpop.f32.mrb[0].mxu0
  %v106 = vadd.f32 0.0, %v105
  %v107 = vpop.f32.mrb[0].mxu0
  %108 = vmatprep.mubr.f32.mxu0 0.0
  %109 = vmatmul.mubr.f32.gmra.mrb[0].mxu0 %v37
  %v110 = vpop.f32.mrb[0].mxu0
  %v111 = vadd.f32 0.0, %v110
  %v112 = vpop.f32.mrb[0].mxu0
  %113 = vdwg.mxu0
  %v114 = vadd.f32 %v24, %v106
  %v115 = vadd.f32 %v25, %v111
  %116 = vst.msk [vmem:[#allocation2] sm:$0xff] %vm32, %v114
  %117 = vst.msk [vmem:[#allocation2 + $0x8] sm:$0xff] %vm32, %v115
  // Predicated region
  $region22: #{decoder_forward.21} parent=0 // pred_check
    %p118 = pneg %p17
  $region23: #{decoder_forward.21} parent=0 // pred_check_branch
    %120 = sbr.rel (%p118) target = $region25
  $region24: #{decoder_forward.21} parent=0 // pred_region
    %v121 = vld [vmem:[#allocation2] sm:$0xff]
    %v122 = vld [vmem:[#allocation2 + $0x8] sm:$0xff]
    %v123 = vld [vmem:[%s2] sm:$0x1]
    %v125 = vlaneseq
    %v126 = vshrl.u32 %v125, 7
    %v127 = vsub.s32 0, %v126
    %v128 = vrot.slane %v123, %v127
    %v130 = vadd.f32 %v121, %v128
    %v131 = vadd.f32 %v122, %v128
    %v132 = vld [vmem:[%s3] sm:$0xff]
    %v133 = vld [vmem:[%s3 + $0x8] sm:$0xff]
    %v134 = vadd.f32 %v130, %v132
    %v135 = vadd.f32 %v131, %v133
    %136 = vst.msk [vmem:[%s4] sm:$0xff] %vm32, %v134
    %137 = vst.msk [vmem:[%s4 + $0x8] sm:$0xff] %vm32, %v135
  $region25: #{decoder_forward.21} parent=0 // pred_fallthru
    _
  // Predicated region
  $region26: #{decoder_forward.21} parent=0 // pred_check
    _
  $region27: #{decoder_forward.21} parent=0 // pred_check_branch
    %139 = sbr.rel (0) target = $region29
  $region28: #{decoder_forward.21} parent=0 // pred_region
    _
  $region29: #{decoder_forward.21} parent=0 // pred_fallthru
    _
  // Predicated region
  $region30: #{decoder_forward.21} parent=0 // pred_check
    _
  $region31: #{decoder_forward.21} parent=0 // pred_check_branch
    %141 = sbr.rel (0) target = $region33
  $region32: #{decoder_forward.21} parent=0 // pred_region
    _
  $region33: #{decoder_forward.21} parent=0 // pred_fallthru
    _

// kernel: decoder_forward.20
$region0: #{decoder_forward.20}
  #allocation0 [shape = 'u32[]', space=smem, size = 0x4, offset = 0x4, fixed_abs, tag = 'smem constant byte address 0x4 - core index']
  #allocation1 [shape = 'u32[144,128]{1,0:T(1,128)}', space=vmem, size = 0x12000, scoped, tag = 'internal scratch']
  %s0 = inlined_call_operand.vmem [shape: f32[2,8,32], index: 0, kind: input, shape index: {}]
  %s1 = inlined_call_operand.vmem [shape: f32[2,8,32], index: 1, kind: input, shape index: {}]
  %s2 = inlined_call_operand.vmem [shape: f32[2,8,32], index: 2, kind: input, shape index: {}]
  %s3 = inlined_call_operand.vmem [shape: f32[2,1,8,8], index: 3, kind: input, shape index: {}]
  %s4 = inlined_call_operand.vmem [shape: f32[2,8,32], index: 4, kind: output, shape index: {}]
  %s5 = sld [smem:[#allocation0]]
  $region49: #{decoder_forward.20} parent=0
    _
  %s7 = ssub.s32 1, %s5
  %s8 = scalar_select 0, %s7, %s5
  loop: start=0, step=1, limit=4
  $region2: #{decoder_forward.20} parent=0 // loop_pre_header
    _
  $region3: #{decoder_forward.20} parent=0 // loop_header
    %s10 = sphi 0, %s14
    %p11 = scmp.ge.s32.totalorder %s10, 4
    %s20 = sphi 0, %s22
    %s23 = sphi 0, %s20
    %s24 = sphi 0, %s23
    %s40 = sphi 0, %s24
    %s46 = sphi 0, %s48
    %s49 = sphi 0, %s46
    %s50 = sphi 0, %s49
    %s66 = sphi 0, %s50
    %s72 = sphi 0, %s74
    %s75 = sphi 0, %s72
    %s76 = sphi 0, %s75
    %s92 = sphi 0, %s76
    %s98 = sphi 0, %s100
    %s101 = sphi 0, %s98
    %s102 = sphi 0, %s101
    %s118 = sphi 0, %s102
    %s124 = sphi 0, %s126
    %s127 = sphi 0, %s124
    %s128 = sphi 0, %s127
    %s144 = sphi 0, %s128
  $region4: #{decoder_forward.20} parent=0 // loop_header_branch
    %13 = sbr.rel (%p11) target = $region8
  $region5: #{decoder_forward.20} parent=0 // loop_body
    %s15 = ssub.s32 %s10, 1
    %s16 = ssub.s32 %s10, 2
    %s17 = sadd.s32 %s10, 1
    %s18 = ssub.s32 %s10, %s17
    %p19 = scmp.eq.s32.totalorder %s18, 0
    %s21 = sadd.s32 %s20, 1
    %s22 = scalar_select %p19, %s20, %s21
    %p25 = pneg %p19
    %p26 = scmp.eq.s32.totalorder %s10, 1
    %p27 = por %p25, %p26
    %p28 = scmp.ne.s32.totalorder %s20, %s23
    %p29 = scmp.eq.s32.totalorder %s10, 0
    %p30 = por %p28, %p29
    %p31 = scmp.ne.s32.totalorder %s20, %s23
    %p32 = scmp.eq.s32.totalorder %s15, 1
    %p33 = por %p31, %p32
    %p34 = scmp.ne.s32.totalorder %s23, %s24
    %p35 = scmp.eq.s32.totalorder %s15, 0
    %p36 = por %p34, %p35
    %p37 = scmp.ne.s32.totalorder %s23, %s24
    %p38 = scmp.eq.s32.totalorder %s16, 1
    %p39 = por %p37, %p38
    %p41 = scmp.ne.s32.totalorder %s24, %s40
    %p42 = scmp.eq.s32.totalorder %s16, 0
    %p43 = por %p41, %p42
    %s44 = ssub.s32 %s10, %s17
    %p45 = scmp.eq.s32.totalorder %s44, 0
    %s47 = sadd.s32 %s46, 1
    %s48 = scalar_select %p45, %s46, %s47
    %p51 = pneg %p45
    %p52 = scmp.eq.s32.totalorder %s10, 1
    %p53 = por %p51, %p52
    %p54 = scmp.ne.s32.totalorder %s46, %s49
    %p55 = scmp.eq.s32.totalorder %s10, 0
    %p56 = por %p54, %p55
    %p57 = scmp.ne.s32.totalorder %s46, %s49
    %p58 = scmp.eq.s32.totalorder %s15, 1
    %p59 = por %p57, %p58
    %p60 = scmp.ne.s32.totalorder %s49, %s50
    %p61 = scmp.eq.s32.totalorder %s15, 0
    %p62 = por %p60, %p61
    %p63 = scmp.ne.s32.totalorder %s49, %s50
    %p64 = scmp.eq.s32.totalorder %s16, 1
    %p65 = por %p63, %p64
    %p67 = scmp.ne.s32.totalorder %s50, %s66
    %p68 = scmp.eq.s32.totalorder %s16, 0
    %p69 = por %p67, %p68
    %s70 = ssub.s32 %s10, %s17
    %p71 = scmp.eq.s32.totalorder %s70, 0
    %s73 = sadd.s32 %s72, 1
    %s74 = scalar_select %p71, %s72, %s73
    %p77 = pneg %p71
    %p78 = scmp.eq.s32.totalorder %s10, 1
    %p79 = por %p77, %p78
    %p80 = scmp.ne.s32.totalorder %s72, %s75
    %p81 = scmp.eq.s32.totalorder %s10, 0
    %p82 = por %p80, %p81
    %p83 = scmp.ne.s32.totalorder %s72, %s75
    %p84 = scmp.eq.s32.totalorder %s15, 1
    %p85 = por %p83, %p84
    %p86 = scmp.ne.s32.totalorder %s75, %s76
    %p87 = scmp.eq.s32.totalorder %s15, 0
    %p88 = por %p86, %p87
    %p89 = scmp.ne.s32.totalorder %s75, %s76
    %p90 = scmp.eq.s32.totalorder %s16, 1
    %p91 = por %p89, %p90
    %p93 = scmp.ne.s32.totalorder %s76, %s92
    %p94 = scmp.eq.s32.totalorder %s16, 0
    %p95 = por %p93, %p94
    %s96 = ssub.s32 %s10, %s17
    %p97 = scmp.eq.s32.totalorder %s96, 0
    %s99 = sadd.s32 %s98, 1
    %s100 = scalar_select %p97, %s98, %s99
    %p103 = pneg %p97
    %p104 = scmp.eq.s32.totalorder %s10, 1
    %p105 = por %p103, %p104
    %p106 = scmp.ne.s32.totalorder %s98, %s101
    %p107 = scmp.eq.s32.totalorder %s10, 0
    %p108 = por %p106, %p107
    %p109 = scmp.ne.s32.totalorder %s98, %s101
    %p110 = scmp.eq.s32.totalorder %s15, 1
    %p111 = por %p109, %p110
    %p112 = scmp.ne.s32.totalorder %s101, %s102
    %p113 = scmp.eq.s32.totalorder %s15, 0
    %p114 = por %p112, %p113
    %p115 = scmp.ne.s32.totalorder %s101, %s102
    %p116 = scmp.eq.s32.totalorder %s16, 1
    %p117 = por %p115, %p116
    %p119 = scmp.ne.s32.totalorder %s102, %s118
    %p120 = scmp.eq.s32.totalorder %s16, 0
    %p121 = por %p119, %p120
    %s122 = ssub.s32 %s10, %s17
    %p123 = scmp.eq.s32.totalorder %s122, 0
    %s125 = sadd.s32 %s124, 1
    %s126 = scalar_select %p123, %s124, %s125
    %p129 = pneg %p123
    %p130 = scmp.eq.s32.totalorder %s10, 1
    %p131 = por %p129, %p130
    %p132 = scmp.ne.s32.totalorder %s124, %s127
    %p133 = scmp.eq.s32.totalorder %s10, 0
    %p134 = por %p132, %p133
    %p135 = scmp.ne.s32.totalorder %s124, %s127
    %p136 = scmp.eq.s32.totalorder %s15, 1
    %p137 = por %p135, %p136
    %p138 = scmp.ne.s32.totalorder %s127, %s128
    %p139 = scmp.eq.s32.totalorder %s15, 0
    %p140 = por %p138, %p139
    %p141 = scmp.ne.s32.totalorder %s127, %s128
    %p142 = scmp.eq.s32.totalorder %s16, 1
    %p143 = por %p141, %p142
    %p145 = scmp.ne.s32.totalorder %s128, %s144
    %p146 = scmp.eq.s32.totalorder %s16, 0
    %p147 = por %p145, %p146
    %p148 = scmp.le.s32.totalorder 1, %s10
    %p149 = scmp.lt.s32.totalorder %s10, 3
    %p150 = pnand %p148, %p149
    %p151 = pneg %p150
    // Predicated region
    $region9: #{decoder_forward.20} parent=5 // pred_check
      _
    $region10: #{decoder_forward.20} parent=5 // pred_check_branch
      %153 = sbr.rel (%p150) target = $region12
    $region11: #{decoder_forward.20} parent=5 // pred_region
      %s154 = ssub.s32 %s10, 1
    $region12: #{decoder_forward.20} parent=5 // pred_fallthru
      _
    %p155 = scmp.lt.s32.totalorder %s10, 2
    // Predicated region
    $region13: #{decoder_forward.20} parent=5 // pred_check
      %p156 = pneg %p155
    $region14: #{decoder_forward.20} parent=5 // pred_check_branch
      %158 = sbr.rel (%p156) target = $region16
    $region15: #{decoder_forward.20} parent=5 // pred_region
      // Predicated region
      $region17: #{decoder_forward.20} parent=15 // pred_check
        %p159 = pneg %p30
      $region18: #{decoder_forward.20} parent=15 // pred_check_branch
        %161 = sbr.rel (%p159) target = $region20
      $region19: #{decoder_forward.20} parent=15 // pred_region
        %p162 = scmp.lt.s32.totalorder %s10, 1
        %s163 = scalar_select %p162, %s10, 1
        %s164 = smul.addr %s163, 8
        %s165 = scalar_lea.vmem %s0, %s164
      $region20: #{decoder_forward.20} parent=15 // pred_fallthru
        _
      // Predicated region
      $region21: #{decoder_forward.20} parent=15 // pred_check
        %p166 = pneg %p56
      $region22: #{decoder_forward.20} parent=15 // pred_check_branch
        %168 = sbr.rel (%p166) target = $region24
      $region23: #{decoder_forward.20} parent=15 // pred_region
        %p169 = scmp.lt.s32.totalorder %s10, 1
        %s170 = scalar_select %p169, %s10, 1
        %s171 = smul.addr %s170, 8
        %s172 = scalar_lea.vmem %s1, %s171
      $region24: #{decoder_forward.20} parent=15 // pred_fallthru
        _
      // Predicated region
      $region25: #{decoder_forward.20} parent=15 // pred_check
        %p173 = pneg %p82
      $region26: #{decoder_forward.20} parent=15 // pred_check_branch
        %175 = sbr.rel (%p173) target = $region28
      $region27: #{decoder_forward.20} parent=15 // pred_region
        %p176 = scmp.lt.s32.totalorder %s10, 1
        %s177 = scalar_select %p176, %s10, 1
        %s178 = smul.addr %s177, 8
        %s179 = scalar_lea.vmem %s2, %s178
      $region28: #{decoder_forward.20} parent=15 // pred_fallthru
        _
      // Predicated region
      $region29: #{decoder_forward.20} parent=15 // pred_check
        %p180 = pneg %p108
      $region30: #{decoder_forward.20} parent=15 // pred_check_branch
        %182 = sbr.rel (%p180) target = $region32
      $region31: #{decoder_forward.20} parent=15 // pred_region
        %p183 = scmp.lt.s32.totalorder %s10, 1
        %s184 = scalar_select %p183, %s10, 1
        %s185 = smul.addr %s184, 8
        %s186 = scalar_lea.vmem %s3, %s185
      $region32: #{decoder_forward.20} parent=15 // pred_fallthru
        _
    $region16: #{decoder_forward.20} parent=5 // pred_fallthru
      _
    %p187 = scmp.le.s32.totalorder 1, %s10
    %p188 = scmp.lt.s32.totalorder %s10, 3
    %p189 = pnand %p187, %p188
    %p190 = pneg %p189
    // Predicated region
    $region33: #{decoder_forward.20} parent=5 // pred_check
      _
    $region34: #{decoder_forward.20} parent=5 // pred_check_branch
      %192 = sbr.rel (%p189) target = $region36
    $region35: #{decoder_forward.20} parent=5 // pred_region
      %s193 = ssub.s32 %s10, 1
      %p194 = scmp.lt.s32.totalorder %s15, 1
      %s195 = scalar_select %p194, %s15, 1
      %s196 = smul.addr %s195, 8
      %s197 = scalar_lea.vmem %s0, %s196
      %p198 = pneg %p36
      %p199 = pneg %p33
      %p200 = scmp.lt.s32.totalorder %s15, 1
      %s201 = scalar_select %p200, %s15, 1
      %s202 = smul.addr %s201, 8
      %s203 = scalar_lea.vmem %s1, %s202
      %p204 = pneg %p62
      %p205 = pneg %p59
      %p206 = scmp.lt.s32.totalorder %s15, 1
      %s207 = scalar_select %p206, %s15, 1
      %s208 = smul.addr %s207, 8
      %s209 = scalar_lea.vmem %s2, %s208
      %p210 = pneg %p88
      %p211 = pneg %p85
      %p212 = scmp.lt.s32.totalorder %s15, 1
      %s213 = scalar_select %p212, %s15, 1
      %s214 = smul.addr %s213, 8
      %s215 = scalar_lea.vmem %s3, %s214
      %p216 = pneg %p114
      %p217 = pneg %p111
      %p218 = pneg %p140
      %p219 = pneg %p137
      %p220 = scmp.lt.s32.totalorder %s15, 1
      %s221 = scalar_select %p220, %s15, 1
      %s222 = smul.addr %s221, 8
      %s223 = scalar_lea.vmem %s4, %s222
      %p224 = scmp.lt.s32.totalorder %s15, 1
      %s225 = scalar_select %p224, %s15, 1
      %s226 = smul.addr %s225, 8
      %s227 = scalar_lea.vmem %s0, %s226
      %p228 = scmp.lt.s32.totalorder %s15, 1
      %s229 = scalar_select %p228, %s15, 1
      %s230 = smul.addr %s229, 8
      %s231 = scalar_lea.vmem %s1, %s230
      %p232 = scmp.lt.s32.totalorder %s15, 1
      %s233 = scalar_select %p232, %s15, 1
      %s234 = smul.addr %s233, 8
      %s235 = scalar_lea.vmem %s2, %s234
      %p236 = scmp.lt.s32.totalorder %s15, 1
      %s237 = scalar_select %p236, %s15, 1
      %s238 = smul.addr %s237, 8
      %s239 = scalar_lea.vmem %s3, %s238
      %p240 = scmp.lt.s32.totalorder %s15, 1
      %s241 = scalar_select %p240, %s15, 1
      %s242 = smul.addr %s241, 8
      %s243 = scalar_lea.vmem %s4, %s242
      %v244 = vld [vmem:[%s227] sm:$0xff]
      %v245 = vld [vmem:[%s231] sm:$0xff]
      %v246 = vld [vmem:[%s235] sm:$0xff]
      %v247 = vld [vmem:[%s239] sm:$0xff]
      %vm248 = vcmask 64512
      %v250 = vsel %vm248, %v244, 0
      %v253 = vsel %vm248, %v245, 0
      %255 = vmatprep.subr.mxu0 0.0
      %256 = vmatpush1.xpose.msra.mxu0 %v253
      %257 = vmatprep.subr.mxu0 0.0
      %258 = vmatpush1.xpose.msra.mxu0 0.0
      %259 = vmatprep.subr.mxu0 0.0
      %260 = vmatpush1.xpose.msra.mxu0 0.0
      %261 = vmatprep.subr.mxu0 0.0
      %262 = vmatpush1.xpose.msra.mxu0 0.0
      %263 = vmatprep.subr.mxu0 0.0
      %264 = vmatpush1.xpose.msra.mxu0 0.0
      %265 = vmatprep.subr.mxu0 0.0
      %266 = vmatpush1.xpose.msra.mxu0 0.0
      %267 = vmatprep.subr.mxu0 0.0
      %268 = vmatpush1.xpose.msra.mxu0 0.0
      %269 = vmatprep.subr.mxu0 0.0
      %270 = vmatpush1.xpose.msra.mxu0 0.0
      %271 = vmatprep.subr.mxu0 0.0
      %272 = vmatpush1.xpose.msra.mxu0 0.0
      %273 = vmatprep.subr.mxu0 0.0
      %274 = vmatpush1.xpose.msra.mxu0 0.0
      %275 = vmatprep.subr.mxu0 0.0
      %276 = vmatpush1.xpose.msra.mxu0 0.0
      %277 = vmatprep.subr.mxu0 0.0
      %278 = vmatpush1.xpose.msra.mxu0 0.0
      %279 = vmatprep.subr.mxu0 0.0
      %280 = vmatpush1.xpose.msra.mxu0 0.0
      %281 = vmatprep.subr.mxu0 0.0
      %282 = vmatpush1.xpose.msra.mxu0 0.0
      %283 = vmatprep.subr.mxu0 0.0
      %284 = vmatpush1.xpose.msra.mxu0 0.0
      %285 = vmatprep.subr.mxu0 0.0
      %286 = vmatpush1.xpose.msra.mxu0 0.0
      %287 = vmatprep.subr.mxu0 0.0
      %288 = vmatpush1.xpose.msra.mxu0 0.0
      %289 = vmatprep.subr.mxu0 0.0
      %290 = vmatpush1.xpose.msra.mxu0 0.0
      %291 = vmatprep.subr.mxu0 0.0
      %292 = vmatpush1.xpose.msra.mxu0 0.0
      %293 = vmatprep.subr.mxu0 0.0
      %294 = vmatpush1.xpose.msra.mxu0 0.0
      %295 = vmatprep.subr.mxu0 0.0
      %296 = vmatpush1.xpose.msra.mxu0 0.0
      %297 = vmatprep.subr.mxu0 0.0
      %298 = vmatpush1.xpose.msra.mxu0 0.0
      %299 = vmatprep.subr.mxu0 0.0
      %300 = vmatpush1.xpose.msra.mxu0 0.0
      %301 = vmatprep.subr.mxu0 0.0
      %302 = vmatpush1.xpose.msra.mxu0 0.0
      %303 = vmatprep.subr.mxu0 0.0
      %304 = vmatpush1.xpose.msra.mxu0 0.0
      %305 = vmatprep.subr.mxu0 0.0
      %306 = vmatpush1.xpose.msra.mxu0 0.0
      %307 = vmatprep.subr.mxu0 0.0
      %308 = vmatpush1.xpose.msra.mxu0 0.0
      %309 = vmatprep.subr.mxu0 0.0
      %310 = vmatpush1.xpose.msra.mxu0 0.0
      %311 = vmatprep.subr.mxu0 0.0
      %312 = vmatpush1.xpose.msra.mxu0 0.0
      %313 = vmatprep.subr.mxu0 0.0
      %314 = vmatpush1.xpose.msra.mxu0 0.0
      %315 = vmatprep.subr.mxu0 0.0
      %316 = vmatpush1.xpose.msra.mxu0 0.0
      %317 = vmatprep.subr.mxu0 0.0
      %318 = vmatpush1.xpose.msra.mxu0 0.0
      %319 = vmatprep.mubr.f32.mxu0 0.0
      %320 = vmatmul.mubr.f32.gmra.mrb[0].mxu0 %v250
      %v321 = vpop.f32.mrb[0].mxu0
      %v322 = vadd.f32 0.0, %v321
      %v323 = vpop.f32.mrb[0].mxu0
      %324 = vdwg.mxu0
      %v325 = vmul.f32 %v322, 0.35355338
      %v326 = vadd.f32 %v325, %v247
      %v327 = vsel %vm248, %v326, -inf
      %328 = vmax.xlane.f32.xlu0 %v327
      %v329 = vpop.xlane.xlu0 %328
      %v330 = vsub.f32 %v326, %v329
      %v331 = vmul.f32 %v330, 1.442695
      %v332 = vpow.pop %v331
      %v333 = vsel %vm248, %v332, 0.0
      %334 = vadd.xlane.f32.xlu0 %v333
      %v335 = vpop.xlane.xlu0 %334
      %v336 = vrcp.pop %v335
      %v337 = vmul.f32 %v332, %v336
      %v339 = vsel %vm248, %v337, 0
      %341 = vmatprep.subr.mxu0 0.0
      %342 = vmatpush1.msra.mxu0 %v246
      %343 = vmatprep.subr.mxu0 0.0
      %344 = vmatpush1.msra.mxu0 0.0
      %345 = vmatprep.subr.mxu0 0.0
      %346 = vmatpush1.msra.mxu0 0.0
      %347 = vmatprep.subr.mxu0 0.0
      %348 = vmatpush1.msra.mxu0 0.0
      %349 = vmatprep.subr.mxu0 0.0
      %350 = vmatpush1.msra.mxu0 0.0
      %351 = vmatprep.subr.mxu0 0.0
      %352 = vmatpush1.msra.mxu0 0.0
      %353 = vmatprep.subr.mxu0 0.0
      %354 = vmatpush1.msra.mxu0 0.0
      %355 = vmatprep.subr.mxu0 0.0
      %356 = vmatpush1.msra.mxu0 0.0
      %357 = vmatprep.subr.mxu0 0.0
      %358 = vmatpush1.msra.mxu0 0.0
      %359 = vmatprep.subr.mxu0 0.0
      %360 = vmatpush1.msra.mxu0 0.0
      %361 = vmatprep.subr.mxu0 0.0
      %362 = vmatpush1.msra.mxu0 0.0
      %363 = vmatprep.subr.mxu0 0.0
      %364 = vmatpush1.msra.mxu0 0.0
      %365 = vmatprep.subr.mxu0 0.0
      %366 = vmatpush1.msra.mxu0 0.0
      %367 = vmatprep.subr.mxu0 0.0
      %368 = vmatpush1.msra.mxu0 0.0
      %369 = vmatprep.subr.mxu0 0.0
      %370 = vmatpush1.msra.mxu0 0.0
      %371 = vmatprep.subr.mxu0 0.0
      %372 = vmatpush1.msra.mxu0 0.0
      %373 = vmatprep.subr.mxu0 0.0
      %374 = vmatpush1.msra.mxu0 0.0
      %375 = vmatprep.subr.mxu0 0.0
      %376 = vmatpush1.msra.mxu0 0.0
      %377 = vmatprep.subr.mxu0 0.0
      %378 = vmatpush1.msra.mxu0 0.0
      %379 = vmatprep.subr.mxu0 0.0
      %380 = vmatpush1.msra.mxu0 0.0
      %381 = vmatprep.subr.mxu0 0.0
      %382 = vmatpush1.msra.mxu0 0.0
      %383 = vmatprep.subr.mxu0 0.0
      %384 = vmatpush1.msra.mxu0 0.0
      %385 = vmatprep.subr.mxu0 0.0
      %386 = vmatpush1.msra.mxu0 0.0
      %387 = vmatprep.subr.mxu0 0.0
      %388 = vmatpush1.msra.mxu0 0.0
      %389 = vmatprep.subr.mxu0 0.0
      %390 = vmatpush1.msra.mxu0 0.0
      %391 = vmatprep.subr.mxu0 0.0
      %392 = vmatpush1.msra.mxu0 0.0
      %393 = vmatprep.subr.mxu0 0.0
      %394 = vmatpush1.msra.mxu0 0.0
      %395 = vmatprep.subr.mxu0 0.0
      %396 = vmatpush1.msra.mxu0 0.0
      %397 = vmatprep.subr.mxu0 0.0
      %398 = vmatpush1.msra.mxu0 0.0
      %399 = vmatprep.subr.mxu0 0.0
      %400 = vmatpush1.msra.mxu0 0.0
      %401 = vmatprep.subr.mxu0 0.0
      %402 = vmatpush1.msra.mxu0 0.0
      %403 = vmatprep.subr.mxu0 0.0
      %404 = vmatpush1.msra.mxu0 0.0
      %405 = vmatprep.mubr.f32.mxu0 0.0
      %406 = vmatmul.mubr.f32.gmra.mrb[0].mxu0 %v339
      %v407 = vpop.f32.mrb[0].mxu0
      %v408 = vadd.f32 0.0, %v407
      %v409 = vpop.f32.mrb[0].mxu0
      %410 = vdwg.mxu0
      %411 = vst.msk [vmem:[%s243] sm:$0xff] %vm248, %v408
      %412 = vrot.lane.b32.xlu0 %v244, 120
      %v413 = vpop.permute.xlu0 %412
      %414 = vrot.lane.b32.xlu0 %v245, 120
      %v415 = vpop.permute.xlu0 %414
      %v416 = vsel %vm248, %v413, 0
      %v418 = vsel %vm248, %v415, 0
      %420 = vmatprep.subr.mxu0 0.0
      %421 = vmatpush1.xpose.msra.mxu0 %v418
      %422 = vmatprep.subr.mxu0 0.0
      %423 = vmatpush1.xpose.msra.mxu0 0.0
      %424 = vmatprep.subr.mxu0 0.0
      %425 = vmatpush1.xpose.msra.mxu0 0.0
      %426 = vmatprep.subr.mxu0 0.0
      %427 = vmatpush1.xpose.msra.mxu0 0.0
      %428 = vmatprep.subr.mxu0 0.0
      %429 = vmatpush1.xpose.msra.mxu0 0.0
      %430 = vmatprep.subr.mxu0 0.0
      %431 = vmatpush1.xpose.msra.mxu0 0.0
      %432 = vmatprep.subr.mxu0 0.0
      %433 = vmatpush1.xpose.msra.mxu0 0.0
      %434 = vmatprep.subr.mxu0 0.0
      %435 = vmatpush1.xpose.msra.mxu0 0.0
      %436 = vmatprep.subr.mxu0 0.0
      %437 = vmatpush1.xpose.msra.mxu0 0.0
      %438 = vmatprep.subr.mxu0 0.0
      %439 = vmatpush1.xpose.msra.mxu0 0.0
      %440 = vmatprep.subr.mxu0 0.0
      %441 = vmatpush1.xpose.msra.mxu0 0.0
      %442 = vmatprep.subr.mxu0 0.0
      %443 = vmatpush1.xpose.msra.mxu0 0.0
      %444 = vmatprep.subr.mxu0 0.0
      %445 = vmatpush1.xpose.msra.mxu0 0.0
      %446 = vmatprep.subr.mxu0 0.0
      %447 = vmatpush1.xpose.msra.mxu0 0.0
      %448 = vmatprep.subr.mxu0 0.0
      %449 = vmatpush1.xpose.msra.mxu0 0.0
      %450 = vmatprep.subr.mxu0 0.0
      %451 = vmatpush1.xpose.msra.mxu0 0.0
      %452 = vmatprep.subr.mxu0 0.0
      %453 = vmatpush1.xpose.msra.mxu0 0.0
      %454 = vmatprep.subr.mxu0 0.0
      %455 = vmatpush1.xpose.msra.mxu0 0.0
      %456 = vmatprep.subr.mxu0 0.0
      %457 = vmatpush1.xpose.msra.mxu0 0.0
      %458 = vmatprep.subr.mxu0 0.0
      %459 = vmatpush1.xpose.msra.mxu0 0.0
      %460 = vmatprep.subr.mxu0 0.0
      %461 = vmatpush1.xpose.msra.mxu0 0.0
      %462 = vmatprep.subr.mxu0 0.0
      %463 = vmatpush1.xpose.msra.mxu0 0.0
      %464 = vmatprep.subr.mxu0 0.0
      %465 = vmatpush1.xpose.msra.mxu0 0.0
      %466 = vmatprep.subr.mxu0 0.0
      %467 = vmatpush1.xpose.msra.mxu0 0.0
      %468 = vmatprep.subr.mxu0 0.0
      %469 = vmatpush1.xpose.msra.mxu0 0.0
      %470 = vmatprep.subr.mxu0 0.0
      %471 = vmatpush1.xpose.msra.mxu0 0.0
      %472 = vmatprep.subr.mxu0 0.0
      %473 = vmatpush1.xpose.msra.mxu0 0.0
      %474 = vmatprep.subr.mxu0 0.0
      %475 = vmatpush1.xpose.msra.mxu0 0.0
      %476 = vmatprep.subr.mxu0 0.0
      %477 = vmatpush1.xpose.msra.mxu0 0.0
      %478 = vmatprep.subr.mxu0 0.0
      %479 = vmatpush1.xpose.msra.mxu0 0.0
      %480 = vmatprep.subr.mxu0 0.0
      %481 = vmatpush1.xpose.msra.mxu0 0.0
      %482 = vmatprep.subr.mxu0 0.0
      %483 = vmatpush1.xpose.msra.mxu0 0.0
      %484 = vmatprep.mubr.f32.mxu0 0.0
      %485 = vmatmul.mubr.f32.gmra.mrb[0].mxu0 %v416
      %v486 = vpop.f32.mrb[0].mxu0
      %v487 = vadd.f32 0.0, %v486
      %v488 = vpop.f32.mrb[0].mxu0
      %489 = vdwg.mxu0
      %v490 = vmul.f32 %v487, 0.35355338
      %v491 = vadd.f32 %v490, %v247
      %v492 = vsel %vm248, %v491, -inf
      %493 = vmax.xlane.f32.xlu0 %v492
      %v494 = vpop.xlane.xlu0 %493
      %v495 = vsub.f32 %v491, %v494
      %v496 = vmul.f32 %v495, 1.442695
      %v497 = vpow.pop %v496
      %v498 = vsel %vm248, %v497, 0.0
      %499 = vadd.xlane.f32.xlu0 %v498
      %v500 = vpop.xlane.xlu0 %499
      %v501 = vrcp.pop %v500
      %v502 = vmul.f32 %v497, %v501
      %504 = vrot.lane.b32.xlu0 %v246, 120
      %v505 = vpop.permute.xlu0 %504
      %v508 = vsel %vm248, %v502, 0
      %510 = vmatprep.subr.mxu0 0.0
      %511 = vmatpush1.msra.mxu0 %v505
      %512 = vmatprep.subr.mxu0 0.0
      %513 = vmatpush1.msra.mxu0 0.0
      %514 = vmatprep.subr.mxu0 0.0
      %515 = vmatpush1.msra.mxu0 0.0
      %516 = vmatprep.subr.mxu0 0.0
      %517 = vmatpush1.msra.mxu0 0.0
      %518 = vmatprep.subr.mxu0 0.0
      %519 = vmatpush1.msra.mxu0 0.0
      %520 = vmatprep.subr.mxu0 0.0
      %521 = vmatpush1.msra.mxu0 0.0
      %522 = vmatprep.subr.mxu0 0.0
      %523 = vmatpush1.msra.mxu0 0.0
      %524 = vmatprep.subr.mxu0 0.0
      %525 = vmatpush1.msra.mxu0 0.0
      %526 = vmatprep.subr.mxu0 0.0
      %527 = vmatpush1.msra.mxu0 0.0
      %528 = vmatprep.subr.mxu0 0.0
      %529 = vmatpush1.msra.mxu0 0.0
      %530 = vmatprep.subr.mxu0 0.0
      %531 = vmatpush1.msra.mxu0 0.0
      %532 = vmatprep.subr.mxu0 0.0
      %533 = vmatpush1.msra.mxu0 0.0
      %534 = vmatprep.subr.mxu0 0.0
      %535 = vmatpush1.msra.mxu0 0.0
      %536 = vmatprep.subr.mxu0 0.0
      %537 = vmatpush1.msra.mxu0 0.0
      %538 = vmatprep.subr.mxu0 0.0
      %539 = vmatpush1.msra.mxu0 0.0
      %540 = vmatprep.subr.mxu0 0.0
      %541 = vmatpush1.msra.mxu0 0.0
      %542 = vmatprep.subr.mxu0 0.0
      %543 = vmatpush1.msra.mxu0 0.0
      %544 = vmatprep.subr.mxu0 0.0
      %545 = vmatpush1.msra.mxu0 0.0
      %546 = vmatprep.subr.mxu0 0.0
      %547 = vmatpush1.msra.mxu0 0.0
      %548 = vmatprep.subr.mxu0 0.0
      %549 = vmatpush1.msra.mxu0 0.0
      %550 = vmatprep.subr.mxu0 0.0
      %551 = vmatpush1.msra.mxu0 0.0
      %552 = vmatprep.subr.mxu0 0.0
      %553 = vmatpush1.msra.mxu0 0.0
      %554 = vmatprep.subr.mxu0 0.0
      %555 = vmatpush1.msra.mxu0 0.0
      %556 = vmatprep.subr.mxu0 0.0
      %557 = vmatpush1.msra.mxu0 0.0
      %558 = vmatprep.subr.mxu0 0.0
      %559 = vmatpush1.msra.mxu0 0.0
      %560 = vmatprep.subr.mxu0 0.0
      %561 = vmatpush1.msra.mxu0 0.0
      %562 = vmatprep.subr.mxu0 0.0
      %563 = vmatpush1.msra.mxu0 0.0
      %564 = vmatprep.subr.mxu0 0.0
      %565 = vmatpush1.msra.mxu0 0.0
      %566 = vmatprep.subr.mxu0 0.0
      %567 = vmatpush1.msra.mxu0 0.0
      %568 = vmatprep.subr.mxu0 0.0
      %569 = vmatpush1.msra.mxu0 0.0
      %570 = vmatprep.subr.mxu0 0.0
      %571 = vmatpush1.msra.mxu0 0.0
      %572 = vmatprep.subr.mxu0 0.0
      %573 = vmatpush1.msra.mxu0 0.0
      %574 = vmatprep.mubr.f32.mxu0 0.0
      %575 = vmatmul.mubr.f32.gmra.mrb[0].mxu0 %v508
      %v576 = vpop.f32.mrb[0].mxu0
      %v577 = vadd.f32 0.0, %v576
      %v578 = vpop.f32.mrb[0].mxu0
      %579 = vdwg.mxu0
      %581 = vrot.lane.b32.xlu0 %v577, 8
      %v582 = vpop.permute.xlu0 %581
      %vm584 = vcmask 130112
      %585 = vst.msk [vmem:[%s243] sm:$0xff] %vm584, %v582
      %586 = vrot.lane.b32.xlu0 %v244, 112
      %v587 = vpop.permute.xlu0 %586
      %588 = vrot.lane.b32.xlu0 %v245, 112
      %v589 = vpop.permute.xlu0 %588
      %v590 = vsel %vm248, %v587, 0
      %v592 = vsel %vm248, %v589, 0
      %594 = vmatprep.subr.mxu0 0.0
      %595 = vmatpush1.xpose.msra.mxu0 %v592
      %596 = vmatprep.subr.mxu0 0.0
      %597 = vmatpush1.xpose.msra.mxu0 0.0
      %598 = vmatprep.subr.mxu0 0.0
      %599 = vmatpush1.xpose.msra.mxu0 0.0
      %600 = vmatprep.subr.mxu0 0.0
      %601 = vmatpush1.xpose.msra.mxu0 0.0
      %602 = vmatprep.subr.mxu0 0.0
      %603 = vmatpush1.xpose.msra.mxu0 0.0
      %604 = vmatprep.subr.mxu0 0.0
      %605 = vmatpush1.xpose.msra.mxu0 0.0
      %606 = vmatprep.subr.mxu0 0.0
      %607 = vmatpush1.xpose.msra.mxu0 0.0
      %608 = vmatprep.subr.mxu0 0.0
      %609 = vmatpush1.xpose.msra.mxu0 0.0
      %610 = vmatprep.subr.mxu0 0.0
      %611 = vmatpush1.xpose.msra.mxu0 0.0
      %612 = vmatprep.subr.mxu0 0.0
      %613 = vmatpush1.xpose.msra.mxu0 0.0
      %614 = vmatprep.subr.mxu0 0.0
      %615 = vmatpush1.xpose.msra.mxu0 0.0
      %616 = vmatprep.subr.mxu0 0.0
      %617 = vmatpush1.xpose.msra.mxu0 0.0
      %618 = vmatprep.subr.mxu0 0.0
      %619 = vmatpush1.xpose.msra.mxu0 0.0
      %620 = vmatprep.subr.mxu0 0.0
      %621 = vmatpush1.xpose.msra.mxu0 0.0
      %622 = vmatprep.subr.mxu0 0.0
      %623 = vmatpush1.xpose.msra.mxu0 0.0
      %624 = vmatprep.subr.mxu0 0.0
      %625 = vmatpush1.xpose.msra.mxu0 0.0
      %626 = vmatprep.subr.mxu0 0.0
      %627 = vmatpush1.xpose.msra.mxu0 0.0
      %628 = vmatprep.subr.mxu0 0.0
      %629 = vmatpush1.xpose.msra.mxu0 0.0
      %630 = vmatprep.subr.mxu0 0.0
      %631 = vmatpush1.xpose.msra.mxu0 0.0
      %632 = vmatprep.subr.mxu0 0.0
      %633 = vmatpush1.xpose.msra.mxu0 0.0
      %634 = vmatprep.subr.mxu0 0.0
      %635 = vmatpush1.xpose.msra.mxu0 0.0
      %636 = vmatprep.subr.mxu0 0.0
      %637 = vmatpush1.xpose.msra.mxu0 0.0
      %638 = vmatprep.subr.mxu0 0.0
      %639 = vmatpush1.xpose.msra.mxu0 0.0
      %640 = vmatprep.subr.mxu0 0.0
      %641 = vmatpush1.xpose.msra.mxu0 0.0
      %642 = vmatprep.subr.mxu0 0.0
      %643 = vmatpush1.xpose.msra.mxu0 0.0
      %644 = vmatprep.subr.mxu0 0.0
      %645 = vmatpush1.xpose.msra.mxu0 0.0
      %646 = vmatprep.subr.mxu0 0.0
      %647 = vmatpush1.xpose.msra.mxu0 0.0
      %648 = vmatprep.subr.mxu0 0.0
      %649 = vmatpush1.xpose.msra.mxu0 0.0
      %650 = vmatprep.subr.mxu0 0.0
      %651 = vmatpush1.xpose.msra.mxu0 0.0
      %652 = vmatprep.subr.mxu0 0.0
      %653 = vmatpush1.xpose.msra.mxu0 0.0
      %654 = vmatprep.subr.mxu0 0.0
      %655 = vmatpush1.xpose.msra.mxu0 0.0
      %656 = vmatprep.subr.mxu0 0.0
      %657 = vmatpush1.xpose.msra.mxu0 0.0
      %658 = vmatprep.mubr.f32.mxu0 0.0
      %659 = vmatmul.mubr.f32.gmra.mrb[0].mxu0 %v590
      %v660 = vpop.f32.mrb[0].mxu0
      %v661 = vadd.f32 0.0, %v660
      %v662 = vpop.f32.mrb[0].mxu0
      %663 = vdwg.mxu0
      %v664 = vmul.f32 %v661, 0.35355338
      %v665 = vadd.f32 %v664, %v247
      %v666 = vsel %vm248, %v665, -inf
      %667 = vmax.xlane.f32.xlu0 %v666
      %v668 = vpop.xlane.xlu0 %667
      %v669 = vsub.f32 %v665, %v668
      %v670 = vmul.f32 %v669, 1.442695
      %v671 = vpow.pop %v670
      %v672 = vsel %vm248, %v671, 0.0
      %673 = vadd.xlane.f32.xlu0 %v672
      %v674 = vpop.xlane.xlu0 %673
      %v675 = vrcp.pop %v674
      %v676 = vmul.f32 %v671, %v675
      %677 = vrot.lane.b32.xlu0 %v246, 112
      %v678 = vpop.permute.xlu0 %677
      %v681 = vsel %vm248, %v676, 0
      %683 = vmatprep.subr.mxu0 0.0
      %684 = vmatpush1.msra.mxu0 %v678
      %685 = vmatprep.subr.mxu0 0.0
      %686 = vmatpush1.msra.mxu0 0.0
      %687 = vmatprep.subr.mxu0 0.0
      %688 = vmatpush1.msra.mxu0 0.0
      %689 = vmatprep.subr.mxu0 0.0
      %690 = vmatpush1.msra.mxu0 0.0
      %691 = vmatprep.subr.mxu0 0.0
      %692 = vmatpush1.msra.mxu0 0.0
      %693 = vmatprep.subr.mxu0 0.0
      %694 = vmatpush1.msra.mxu0 0.0
      %695 = vmatprep.subr.mxu0 0.0
      %696 = vmatpush1.msra.mxu0 0.0
      %697 = vmatprep.subr.mxu0 0.0
      %698 = vmatpush1.msra.mxu0 0.0
      %699 = vmatprep.subr.mxu0 0.0
      %700 = vmatpush1.msra.mxu0 0.0
      %701 = vmatprep.subr.mxu0 0.0
      %702 = vmatpush1.msra.mxu0 0.0
      %703 = vmatprep.subr.mxu0 0.0
      %704 = vmatpush1.msra.mxu0 0.0
      %705 = vmatprep.subr.mxu0 0.0
      %706 = vmatpush1.msra.mxu0 0.0
      %707 = vmatprep.subr.mxu0 0.0
      %708 = vmatpush1.msra.mxu0 0.0
      %709 = vmatprep.subr.mxu0 0.0
      %710 = vmatpush1.msra.mxu0 0.0
      %711 = vmatprep.subr.mxu0 0.0
      %712 = vmatpush1.msra.mxu0 0.0
      %713 = vmatprep.subr.mxu0 0.0
      %714 = vmatpush1.msra.mxu0 0.0
      %715 = vmatprep.subr.mxu0 0.0
      %716 = vmatpush1.msra.mxu0 0.0
      %717 = vmatprep.subr.mxu0 0.0
      %718 = vmatpush1.msra.mxu0 0.0
      %719 = vmatprep.subr.mxu0 0.0
      %720 = vmatpush1.msra.mxu0 0.0
      %721 = vmatprep.subr.mxu0 0.0
      %722 = vmatpush1.msra.mxu0 0.0
      %723 = vmatprep.subr.mxu0 0.0
      %724 = vmatpush1.msra.mxu0 0.0
      %725 = vmatprep.subr.mxu0 0.0
      %726 = vmatpush1.msra.mxu0 0.0
      %727 = vmatprep.subr.mxu0 0.0
      %728 = vmatpush1.msra.mxu0 0.0
      %729 = vmatprep.subr.mxu0 0.0
      %730 = vmatpush1.msra.mxu0 0.0
      %731 = vmatprep.subr.mxu0 0.0
      %732 = vmatpush1.msra.mxu0 0.0
      %733 = vmatprep.subr.mxu0 0.0
      %734 = vmatpush1.msra.mxu0 0.0
      %735 = vmatprep.subr.mxu0 0.0
      %736 = vmatpush1.msra.mxu0 0.0
      %737 = vmatprep.subr.mxu0 0.0
      %738 = vmatpush1.msra.mxu0 0.0
      %739 = vmatprep.subr.mxu0 0.0
      %740 = vmatpush1.msra.mxu0 0.0
      %741 = vmatprep.subr.mxu0 0.0
      %742 = vmatpush1.msra.mxu0 0.0
      %743 = vmatprep.subr.mxu0 0.0
      %744 = vmatpush1.msra.mxu0 0.0
      %745 = vmatprep.subr.mxu0 0.0
      %746 = vmatpush1.msra.mxu0 0.0
      %747 = vmatprep.mubr.f32.mxu0 0.0
      %748 = vmatmul.mubr.f32.gmra.mrb[0].mxu0 %v681
      %v749 = vpop.f32.mrb[0].mxu0
      %v750 = vadd.f32 0.0, %v749
      %v751 = vpop.f32.mrb[0].mxu0
      %752 = vdwg.mxu0
      %754 = vrot.lane.b32.xlu0 %v750, 16
      %v755 = vpop.permute.xlu0 %754
      %vm757 = vcmask 195712
      %758 = vst.msk [vmem:[%s243] sm:$0xff] %vm757, %v755
      %759 = vrot.lane.b32.xlu0 %v244, 104
      %v760 = vpop.permute.xlu0 %759
      %761 = vrot.lane.b32.xlu0 %v245, 104
      %v762 = vpop.permute.xlu0 %761
      %v763 = vsel %vm248, %v760, 0
      %v765 = vsel %vm248, %v762, 0
      %767 = vmatprep.subr.mxu0 0.0
      %768 = vmatpush1.xpose.msra.mxu0 %v765
      %769 = vmatprep.subr.mxu0 0.0
      %770 = vmatpush1.xpose.msra.mxu0 0.0
      %771 = vmatprep.subr.mxu0 0.0
      %772 = vmatpush1.xpose.msra.mxu0 0.0
      %773 = vmatprep.subr.mxu0 0.0
      %774 = vmatpush1.xpose.msra.mxu0 0.0
      %775 = vmatprep.subr.mxu0 0.0
      %776 = vmatpush1.xpose.msra.mxu0 0.0
      %777 = vmatprep.subr.mxu0 0.0
      %778 = vmatpush1.xpose.msra.mxu0 0.0
      %779 = vmatprep.subr.mxu0 0.0
      %780 = vmatpush1.xpose.msra.mxu0 0.0
      %781 = vmatprep.subr.mxu0 0.0
      %782 = vmatpush1.xpose.msra.mxu0 0.0
      %783 = vmatprep.subr.mxu0 0.0
      %784 = vmatpush1.xpose.msra.mxu0 0.0
      %785 = vmatprep.subr.mxu0 0.0
      %786 = vmatpush1.xpose.msra.mxu0 0.0
      %787 = vmatprep.subr.mxu0 0.0
      %788 = vmatpush1.xpose.msra.mxu0 0.0
      %789 = vmatprep.subr.mxu0 0.0
      %790 = vmatpush1.xpose.msra.mxu0 0.0
      %791 = vmatprep.subr.mxu0 0.0
      %792 = vmatpush1.xpose.msra.mxu0 0.0
      %793 = vmatprep.subr.mxu0 0.0
      %794 = vmatpush1.xpose.msra.mxu0 0.0
      %795 = vmatprep.subr.mxu0 0.0
      %796 = vmatpush1.xpose.msra.mxu0 0.0
      %797 = vmatprep.subr.mxu0 0.0
      %798 = vmatpush1.xpose.msra.mxu0 0.0
      %799 = vmatprep.subr.mxu0 0.0
      %800 = vmatpush1.xpose.msra.mxu0 0.0
      %801 = vmatprep.subr.mxu0 0.0
      %802 = vmatpush1.xpose.msra.mxu0 0.0
      %803 = vmatprep.subr.mxu0 0.0
      %804 = vmatpush1.xpose.msra.mxu0 0.0
      %805 = vmatprep.subr.mxu0 0.0
      %806 = vmatpush1.xpose.msra.mxu0 0.0
      %807 = vmatprep.subr.mxu0 0.0
      %808 = vmatpush1.xpose.msra.mxu0 0.0
      %809 = vmatprep.subr.mxu0 0.0
      %810 = vmatpush1.xpose.msra.mxu0 0.0
      %811 = vmatprep.subr.mxu0 0.0
      %812 = vmatpush1.xpose.msra.mxu0 0.0
      %813 = vmatprep.subr.mxu0 0.0
      %814 = vmatpush1.xpose.msra.mxu0 0.0
      %815 = vmatprep.subr.mxu0 0.0
      %816 = vmatpush1.xpose.msra.mxu0 0.0
      %817 = vmatprep.subr.mxu0 0.0
      %818 = vmatpush1.xpose.msra.mxu0 0.0
      %819 = vmatprep.subr.mxu0 0.0
      %820 = vmatpush1.xpose.msra.mxu0 0.0
      %821 = vmatprep.subr.mxu0 0.0
      %822 = vmatpush1.xpose.msra.mxu0 0.0
      %823 = vmatprep.subr.mxu0 0.0
      %824 = vmatpush1.xpose.msra.mxu0 0.0
      %825 = vmatprep.subr.mxu0 0.0
      %826 = vmatpush1.xpose.msra.mxu0 0.0
      %827 = vmatprep.subr.mxu0 0.0
      %828 = vmatpush1.xpose.msra.mxu0 0.0
      %829 = vmatprep.subr.mxu0 0.0
      %830 = vmatpush1.xpose.msra.mxu0 0.0
      %831 = vmatprep.mubr.f32.mxu0 0.0
      %832 = vmatmul.mubr.f32.gmra.mrb[0].mxu0 %v763
      %v833 = vpop.f32.mrb[0].mxu0
      %v834 = vadd.f32 0.0, %v833
      %v835 = vpop.f32.mrb[0].mxu0
      %836 = vdwg.mxu0
      %v837 = vmul.f32 %v834, 0.35355338
      %v838 = vadd.f32 %v837, %v247
      %v839 = vsel %vm248, %v838, -inf
      %840 = vmax.xlane.f32.xlu0 %v839
      %v841 = vpop.xlane.xlu0 %840
      %v842 = vsub.f32 %v838, %v841
      %v843 = vmul.f32 %v842, 1.442695
      %v844 = vpow.pop %v843
      %v845 = vsel %vm248, %v844, 0.0
      %846 = vadd.xlane.f32.xlu0 %v845
      %v847 = vpop.xlane.xlu0 %846
      %v848 = vrcp.pop %v847
      %v849 = vmul.f32 %v844, %v848
      %850 = vrot.lane.b32.xlu0 %v246, 104
      %v851 = vpop.permute.xlu0 %850
      %v854 = vsel %vm248, %v849, 0
      %856 = vmatprep.subr.mxu0 0.0
      %857 = vmatpush1.msra.mxu0 %v851
      %858 = vmatprep.subr.mxu0 0.0
      %859 = vmatpush1.msra.mxu0 0.0
      %860 = vmatprep.subr.mxu0 0.0
      %861 = vmatpush1.msra.mxu0 0.0
      %862 = vmatprep.subr.mxu0 0.0
      %863 = vmatpush1.msra.mxu0 0.0
      %864 = vmatprep.subr.mxu0 0.0
      %865 = vmatpush1.msra.mxu0 0.0
      %866 = vmatprep.subr.mxu0 0.0
      %867 = vmatpush1.msra.mxu0 0.0
      %868 = vmatprep.subr.mxu0 0.0
      %869 = vmatpush1.msra.mxu0 0.0
      %870 = vmatprep.subr.mxu0 0.0
      %871 = vmatpush1.msra.mxu0 0.0
      %872 = vmatprep.subr.mxu0 0.0
      %873 = vmatpush1.msra.mxu0 0.0
      %874 = vmatprep.subr.mxu0 0.0
      %875 = vmatpush1.msra.mxu0 0.0
      %876 = vmatprep.subr.mxu0 0.0
      %877 = vmatpush1.msra.mxu0 0.0
      %878 = vmatprep.subr.mxu0 0.0
      %879 = vmatpush1.msra.mxu0 0.0
      %880 = vmatprep.subr.mxu0 0.0
      %881 = vmatpush1.msra.mxu0 0.0
      %882 = vmatprep.subr.mxu0 0.0
      %883 = vmatpush1.msra.mxu0 0.0
      %884 = vmatprep.subr.mxu0 0.0
      %885 = vmatpush1.msra.mxu0 0.0
      %886 = vmatprep.subr.mxu0 0.0
      %887 = vmatpush1.msra.mxu0 0.0
      %888 = vmatprep.subr.mxu0 0.0
      %889 = vmatpush1.msra.mxu0 0.0
      %890 = vmatprep.subr.mxu0 0.0
      %891 = vmatpush1.msra.mxu0 0.0
      %892 = vmatprep.subr.mxu0 0.0
      %893 = vmatpush1.msra.mxu0 0.0
      %894 = vmatprep.subr.mxu0 0.0
      %895 = vmatpush1.msra.mxu0 0.0
      %896 = vmatprep.subr.mxu0 0.0
      %897 = vmatpush1.msra.mxu0 0.0
      %898 = vmatprep.subr.mxu0 0.0
      %899 = vmatpush1.msra.mxu0 0.0
      %900 = vmatprep.subr.mxu0 0.0
      %901 = vmatpush1.msra.mxu0 0.0
      %902 = vmatprep.subr.mxu0 0.0
      %903 = vmatpush1.msra.mxu0 0.0
      %904 = vmatprep.subr.mxu0 0.0
      %905 = vmatpush1.msra.mxu0 0.0
      %906 = vmatprep.subr.mxu0 0.0
      %907 = vmatpush1.msra.mxu0 0.0
      %908 = vmatprep.subr.mxu0 0.0
      %909 = vmatpush1.msra.mxu0 0.0
      %910 = vmatprep.subr.mxu0 0.0
      %911 = vmatpush1.msra.mxu0 0.0
      %912 = vmatprep.subr.mxu0 0.0
      %913 = vmatpush1.msra.mxu0 0.0
      %914 = vmatprep.subr.mxu0 0.0
      %915 = vmatpush1.msra.mxu0 0.0
      %916 = vmatprep.subr.mxu0 0.0
      %917 = vmatpush1.msra.mxu0 0.0
      %918 = vmatprep.subr.mxu0 0.0
      %919 = vmatpush1.msra.mxu0 0.0
      %920 = vmatprep.mubr.f32.mxu0 0.0
      %921 = vmatmul.mubr.f32.gmra.mrb[0].mxu0 %v854
      %v922 = vpop.f32.mrb[0].mxu0
      %v923 = vadd.f32 0.0, %v922
      %v924 = vpop.f32.mrb[0].mxu0
      %925 = vdwg.mxu0
      %927 = vrot.lane.b32.xlu0 %v923, 24
      %v928 = vpop.permute.xlu0 %927
      %vm930 = vcmask 261312
      %931 = vst.msk [vmem:[%s243] sm:$0xff] %vm930, %v928
      %p932 = scmp.lt.s32.totalorder %s15, 1
      %s933 = scalar_select %p932, %s15, 1
      %s934 = smul.addr %s933, 8
      %s935 = scalar_lea.vmem %s4, %s934
      // Predicated region
      $region37: #{decoder_forward.20} parent=35 // pred_check
        %p936 = pneg %p137
      $region38: #{decoder_forward.20} parent=35 // pred_check_branch
        %938 = sbr.rel (%p936) target = $region40
      $region39: #{decoder_forward.20} parent=35 // pred_region
        _
      $region40: #{decoder_forward.20} parent=35 // pred_fallthru
        _
    $region36: #{decoder_forward.20} parent=5 // pred_fallthru
      _
    %p939 = scmp.le.s32.totalorder 2, %s10
    // Predicated region
    $region41: #{decoder_forward.20} parent=5 // pred_check
      %p940 = pneg %p939
    $region42: #{decoder_forward.20} parent=5 // pred_check_branch
      %942 = sbr.rel (%p940) target = $region44
    $region43: #{decoder_forward.20} parent=5 // pred_region
      %s943 = ssub.s32 %s10, 2
      // Predicated region
      $region45: #{decoder_forward.20} parent=43 // pred_check
        %p944 = pneg %p143
      $region46: #{decoder_forward.20} parent=43 // pred_check_branch
        %946 = sbr.rel (%p944) target = $region48
      $region47: #{decoder_forward.20} parent=43 // pred_region
        %p947 = scmp.lt.s32.totalorder %s16, 1
        %s948 = scalar_select %p947, %s16, 1
        %s949 = smul.addr %s948, 8
        %s950 = scalar_lea.vmem %s4, %s949
      $region48: #{decoder_forward.20} parent=43 // pred_fallthru
        _
    $region44: #{decoder_forward.20} parent=5 // pred_fallthru
      _
  $region6: #{decoder_forward.20} parent=0 // loop_footer
    %s14 = sadd.s32 1, %s10
  $region7: #{decoder_forward.20} parent=0 // loop_footer_branch
    %9 = sbr.rel target = $region3
  $region8: #{decoder_forward.20} parent=0 // loop_exit
    _

// kernel: decoder_forward.23
$region0: #{decoder_forward.23}
  #allocation0 [shape = 'u32[]', space=smem, size = 0x4, offset = 0x4, fixed_abs, tag = 'smem constant byte address 0x4 - core index']
  #allocation1 [shape = 'u32[144,128]{1,0:T(1,128)}', space=vmem, size = 0x12000, scoped, tag = 'internal scratch']
  %s0 = inlined_call_operand.vmem [shape: f32[16,32], index: 0, kind: input, shape index: {}]
  %s1 = inlined_call_operand.vmem [shape: f32[32,32], index: 1, kind: input, shape index: {}]
  %s2 = inlined_call_operand.vmem [shape: f32[32,32], index: 2, kind: input, shape index: {}]
  %s3 = inlined_call_operand.vmem [shape: f32[16,32], index: 3, kind: output, shape index: {0}]
  %s4 = inlined_call_operand.vmem [shape: f32[16,32], index: 4, kind: output, shape index: {1}]
  %5 = xla_tuple %s3, %s4
  %s6 = sld [smem:[#allocation0]]
  $region30: #{decoder_forward.23} parent=0
    _
  %s8 = ssub.s32 1, %s6
  %s9 = scalar_select 0, %s8, %s6
  // Predicated region
  $region2: #{decoder_forward.23} parent=0 // pred_check
    _
  $region3: #{decoder_forward.23} parent=0 // pred_check_branch
    %11 = sbr.rel (0) target = $region5
  $region4: #{decoder_forward.23} parent=0 // pred_region
    _
  $region5: #{decoder_forward.23} parent=0 // pred_fallthru
    _
  // Predicated region
  $region6: #{decoder_forward.23} parent=0 // pred_check
    _
  $region7: #{decoder_forward.23} parent=0 // pred_check_branch
    %13 = sbr.rel (0) target = $region9
  $region8: #{decoder_forward.23} parent=0 // pred_region
    _
  $region9: #{decoder_forward.23} parent=0 // pred_fallthru
    _
  // Predicated region
  $region10: #{decoder_forward.23} parent=0 // pred_check
    _
  $region11: #{decoder_forward.23} parent=0 // pred_check_branch
    %15 = sbr.rel (0) target = $region13
  $region12: #{decoder_forward.23} parent=0 // pred_region
    _
  $region13: #{decoder_forward.23} parent=0 // pred_fallthru
    _
  %v16 = vld [vmem:[%s0] sm:$0xff]
  %v17 = vld [vmem:[%s0 + $0x8] sm:$0xff]
  %v18 = vld [vmem:[%s1] sm:$0xff]
  %v19 = vld [vmem:[%s1 + $0x8] sm:$0xff]
  %v20 = vld [vmem:[%s1 + $0x10] sm:$0xff]
  %v21 = vld [vmem:[%s1 + $0x18] sm:$0xff]
  %vm22 = vcmask 261120
  %v24 = vsel %vm22, %v16, 0
  %v27 = vsel %vm22, %v17, 0
  %29 = vmatprep.subr.mxu0 0.0
  %30 = vmatpush1.msra.mxu0 %v18
  %31 = vmatprep.subr.mxu0 0.0
  %32 = vmatpush1.msra.mxu0 %v19
  %33 = vmatprep.subr.mxu0 0.0
  %34 = vmatpush1.msra.mxu0 %v20
  %35 = vmatprep.subr.mxu0 0.0
  %36 = vmatpush1.msra.mxu0 %v21
  %37 = vmatprep.subr.mxu0 0.0
  %38 = vmatpush1.msra.mxu0 0.0
  %39 = vmatprep.subr.mxu0 0.0
  %40 = vmatpush1.msra.mxu0 0.0
  %41 = vmatprep.subr.mxu0 0.0
  %42 = vmatpush1.msra.mxu0 0.0
  %43 = vmatprep.subr.mxu0 0.0
  %44 = vmatpush1.msra.mxu0 0.0
  %45 = vmatprep.subr.mxu0 0.0
  %46 = vmatpush1.msra.mxu0 0.0
  %47 = vmatprep.subr.mxu0 0.0
  %48 = vmatpush1.msra.mxu0 0.0
  %49 = vmatprep.subr.mxu0 0.0
  %50 = vmatpush1.msra.mxu0 0.0
  %51 = vmatprep.subr.mxu0 0.0
  %52 = vmatpush1.msra.mxu0 0.0
  %53 = vmatprep.subr.mxu0 0.0
  %54 = vmatpush1.msra.mxu0 0.0
  %55 = vmatprep.subr.mxu0 0.0
  %56 = vmatpush1.msra.mxu0 0.0
  %57 = vmatprep.subr.mxu0 0.0
  %58 = vmatpush1.msra.mxu0 0.0
  %59 = vmatprep.subr.mxu0 0.0
  %60 = vmatpush1.msra.mxu0 0.0
  %61 = vmatprep.subr.mxu0 0.0
  %62 = vmatpush1.msra.mxu0 0.0
  %63 = vmatprep.subr.mxu0 0.0
  %64 = vmatpush1.msra.mxu0 0.0
  %65 = vmatprep.subr.mxu0 0.0
  %66 = vmatpush1.msra.mxu0 0.0
  %67 = vmatprep.subr.mxu0 0.0
  %68 = vmatpush1.msra.mxu0 0.0
  %69 = vmatprep.subr.mxu0 0.0
  %70 = vmatpush1.msra.mxu0 0.0
  %71 = vmatprep.subr.mxu0 0.0
  %72 = vmatpush1.msra.mxu0 0.0
  %73 = vmatprep.subr.mxu0 0.0
  %74 = vmatpush1.msra.mxu0 0.0
  %75 = vmatprep.subr.mxu0 0.0
  %76 = vmatpush1.msra.mxu0 0.0
  %77 = vmatprep.subr.mxu0 0.0
  %78 = vmatpush1.msra.mxu0 0.0
  %79 = vmatprep.subr.mxu0 0.0
  %80 = vmatpush1.msra.mxu0 0.0
  %81 = vmatprep.subr.mxu0 0.0
  %82 = vmatpush1.msra.mxu0 0.0
  %83 = vmatprep.subr.mxu0 0.0
  %84 = vmatpush1.msra.mxu0 0.0
  %85 = vmatprep.subr.mxu0 0.0
  %86 = vmatpush1.msra.mxu0 0.0
  %87 = vmatprep.subr.mxu0 0.0
  %88 = vmatpush1.msra.mxu0 0.0
  %89 = vmatprep.subr.mxu0 0.0
  %90 = vmatpush1.msra.mxu0 0.0
  %91 = vmatprep.subr.mxu0 0.0
  %92 = vmatpush1.msra.mxu0 0.0
  %93 = vmatprep.mubr.f32.mxu0 0.0
  %94 = vmatmul.mubr.f32.gmra.mrb[0].mxu0 %v24
  %v95 = vpop.f32.mrb[0].mxu0
  %v96 = vadd.f32 0.0, %v95
  %v97 = vpop.f32.mrb[0].mxu0
  %98 = vmatprep.mubr.f32.mxu0 0.0
  %99 = vmatmul.mubr.f32.gmra.mrb[0].mxu0 %v27
  %v100 = vpop.f32.mrb[0].mxu0
  %v101 = vadd.f32 0.0, %v100
  %v102 = vpop.f32.mrb[0].mxu0
  %103 = vdwg.mxu0
  %104 = vst.msk [vmem:[%s3] sm:$0xff] %vm22, %v96
  %105 = vst.msk [vmem:[%s3 + $0x8] sm:$0xff] %vm22, %v101
  %v106 = vld [vmem:[%s2] sm:$0xff]
  %v107 = vld [vmem:[%s2 + $0x8] sm:$0xff]
  %v108 = vld [vmem:[%s2 + $0x10] sm:$0xff]
  %v109 = vld [vmem:[%s2 + $0x18] sm:$0xff]
  %110 = vmatprep.subr.mxu0 0.0
  %111 = vmatpush1.msra.mxu0 %v106
  %112 = vmatprep.subr.mxu0 0.0
  %113 = vmatpush1.msra.mxu0 %v107
  %114 = vmatprep.subr.mxu0 0.0
  %115 = vmatpush1.msra.mxu0 %v108
  %116 = vmatprep.subr.mxu0 0.0
  %117 = vmatpush1.msra.mxu0 %v109
  %118 = vmatprep.subr.mxu0 0.0
  %119 = vmatpush1.msra.mxu0 0.0
  %120 = vmatprep.subr.mxu0 0.0
  %121 = vmatpush1.msra.mxu0 0.0
  %122 = vmatprep.subr.mxu0 0.0
  %123 = vmatpush1.msra.mxu0 0.0
  %124 = vmatprep.subr.mxu0 0.0
  %125 = vmatpush1.msra.mxu0 0.0
  %126 = vmatprep.subr.mxu0 0.0
  %127 = vmatpush1.msra.mxu0 0.0
  %128 = vmatprep.subr.mxu0 0.0
  %129 = vmatpush1.msra.mxu0 0.0
  %130 = vmatprep.subr.mxu0 0.0
  %131 = vmatpush1.msra.mxu0 0.0
  %132 = vmatprep.subr.mxu0 0.0
  %133 = vmatpush1.msra.mxu0 0.0
  %134 = vmatprep.subr.mxu0 0.0
  %135 = vmatpush1.msra.mxu0 0.0
  %136 = vmatprep.subr.mxu0 0.0
  %137 = vmatpush1.msra.mxu0 0.0
  %138 = vmatprep.subr.mxu0 0.0
  %139 = vmatpush1.msra.mxu0 0.0
  %140 = vmatprep.subr.mxu0 0.0
  %141 = vmatpush1.msra.mxu0 0.0
  %142 = vmatprep.subr.mxu0 0.0
  %143 = vmatpush1.msra.mxu0 0.0
  %144 = vmatprep.subr.mxu0 0.0
  %145 = vmatpush1.msra.mxu0 0.0
  %146 = vmatprep.subr.mxu0 0.0
  %147 = vmatpush1.msra.mxu0 0.0
  %148 = vmatprep.subr.mxu0 0.0
  %149 = vmatpush1.msra.mxu0 0.0
  %150 = vmatprep.subr.mxu0 0.0
  %151 = vmatpush1.msra.mxu0 0.0
  %152 = vmatprep.subr.mxu0 0.0
  %153 = vmatpush1.msra.mxu0 0.0
  %154 = vmatprep.subr.mxu0 0.0
  %155 = vmatpush1.msra.mxu0 0.0
  %156 = vmatprep.subr.mxu0 0.0
  %157 = vmatpush1.msra.mxu0 0.0
  %158 = vmatprep.subr.mxu0 0.0
  %159 = vmatpush1.msra.mxu0 0.0
  %160 = vmatprep.subr.mxu0 0.0
  %161 = vmatpush1.msra.mxu0 0.0
  %162 = vmatprep.subr.mxu0 0.0
  %163 = vmatpush1.msra.mxu0 0.0
  %164 = vmatprep.subr.mxu0 0.0
  %165 = vmatpush1.msra.mxu0 0.0
  %166 = vmatprep.subr.mxu0 0.0
  %167 = vmatpush1.msra.mxu0 0.0
  %168 = vmatprep.subr.mxu0 0.0
  %169 = vmatpush1.msra.mxu0 0.0
  %170 = vmatprep.subr.mxu0 0.0
  %171 = vmatpush1.msra.mxu0 0.0
  %172 = vmatprep.subr.mxu0 0.0
  %173 = vmatpush1.msra.mxu0 0.0
  %174 = vmatprep.mubr.f32.mxu0 0.0
  %175 = vmatmul.mubr.f32.gmra.mrb[0].mxu0 %v24
  %v176 = vpop.f32.mrb[0].mxu0
  %v177 = vadd.f32 0.0, %v176
  %v178 = vpop.f32.mrb[0].mxu0
  %179 = vmatprep.mubr.f32.mxu0 0.0
  %180 = vmatmul.mubr.f32.gmra.mrb[0].mxu0 %v27
  %v181 = vpop.f32.mrb[0].mxu0
  %v182 = vadd.f32 0.0, %v181
  %v183 = vpop.f32.mrb[0].mxu0
  %184 = vdwg.mxu0
  %185 = vst.msk [vmem:[%s4] sm:$0xff] %vm22, %v177
  %186 = vst.msk [vmem:[%s4 + $0x8] sm:$0xff] %vm22, %v182
  // Predicated region
  $region14: #{decoder_forward.23} parent=0 // pred_check
    _
  $region15: #{decoder_forward.23} parent=0 // pred_check_branch
    %188 = sbr.rel (0) target = $region17
  $region16: #{decoder_forward.23} parent=0 // pred_region
    _
  $region17: #{decoder_forward.23} parent=0 // pred_fallthru
    _
  // Predicated region
  $region18: #{decoder_forward.23} parent=0 // pred_check
    _
  $region19: #{decoder_forward.23} parent=0 // pred_check_branch
    %190 = sbr.rel (0) target = $region21
  $region20: #{decoder_forward.23} parent=0 // pred_region
    _
  $region21: #{decoder_forward.23} parent=0 // pred_fallthru
    _
  // Predicated region
  $region22: #{decoder_forward.23} parent=0 // pred_check
    _
  $region23: #{decoder_forward.23} parent=0 // pred_check_branch
    %192 = sbr.rel (0) target = $region25
  $region24: #{decoder_forward.23} parent=0 // pred_region
    _
  $region25: #{decoder_forward.23} parent=0 // pred_fallthru
    _
  // Predicated region
  $region26: #{decoder_forward.23} parent=0 // pred_check
    _
  $region27: #{decoder_forward.23} parent=0 // pred_check_branch
    %194 = sbr.rel (0) target = $region29
  $region28: #{decoder_forward.23} parent=0 // pred_region
    _
  $region29: #{decoder_forward.23} parent=0 // pred_fallthru
    _

// kernel: decoder_forward.37
$region0: #{decoder_forward.37}
  #allocation0 [shape = 'u32[]', space=smem, size = 0x4, offset = 0x4, fixed_abs, tag = 'smem constant byte address 0x4 - core index']
  #allocation1 [shape = 'u32[144,128]{1,0:T(1,128)}', space=vmem, size = 0x12000, scoped, tag = 'internal scratch']
  %s0 = inlined_call_operand.vmem [shape: f32[16,32], index: 0, kind: input, shape index: {}]
  %s1 = inlined_call_operand.vmem [shape: f32[1,32], index: 1, kind: input, shape index: {}]
  %s2 = inlined_call_operand.vmem [shape: f32[1,32], index: 2, kind: input, shape index: {}]
  %s3 = inlined_call_operand.hbm [shape: f32[16,32], index: 3, kind: output, shape index: {}]
  %s4 = sld [smem:[#allocation0]]
  $region22: #{decoder_forward.37} parent=0
    _
  %s6 = ssub.s32 1, %s4
  %s7 = scalar_select 0, %s6, %s4
  $region1: #{decoder_forward.37} parent=0
    #allocation2 [shape = 'u8[8192]{0}', space=vmem, size = 0x2000, scoped, tag = 'output window, operand 0, single buffered']
    #allocation3 [shape = 's32[1]{0}', space=sflag, size = 0x4, scoped, tag = 'scoped memory for decoder_forward.37']
    %8 = vsyncpa [#allocation3], 0
    // Predicated region
    $region2: #{decoder_forward.37} parent=1 // pred_check
      _
    $region3: #{decoder_forward.37} parent=1 // pred_check_branch
      %10 = sbr.rel (0) target = $region5
    $region4: #{decoder_forward.37} parent=1 // pred_region
      _
    $region5: #{decoder_forward.37} parent=1 // pred_fallthru
      _
    // Predicated region
    $region6: #{decoder_forward.37} parent=1 // pred_check
      _
    $region7: #{decoder_forward.37} parent=1 // pred_check_branch
      %12 = sbr.rel (0) target = $region9
    $region8: #{decoder_forward.37} parent=1 // pred_region
      _
    $region9: #{decoder_forward.37} parent=1 // pred_fallthru
      _
    // Predicated region
    $region10: #{decoder_forward.37} parent=1 // pred_check
      _
    $region11: #{decoder_forward.37} parent=1 // pred_check_branch
      %14 = sbr.rel (0) target = $region13
    $region12: #{decoder_forward.37} parent=1 // pred_region
      _
    $region13: #{decoder_forward.37} parent=1 // pred_fallthru
      _
    %v15 = vld [vmem:[%s0] sm:$0xff]
    %v16 = vld [vmem:[%s0 + $0x8] sm:$0xff]
    %v17 = vld [vmem:[%s1] sm:$0x1]
    %v18 = vld [vmem:[%s2] sm:$0x1]
    %vm19 = vcmask 261120
    %v20 = vsel %vm19, %v15, 0.0
    %21 = vadd.xlane.f32.xlu0 %v20
    %v22 = vpop.xlane.xlu0 %21
    %v23 = vsel %vm19, %v16, 0.0
    %24 = vadd.xlane.f32.xlu0 %v23
    %v25 = vpop.xlane.xlu0 %24
    %v26 = vrcp.pop 32.0
    %v27 = vmul.f32 %v22, %v26
    %v28 = vmul.f32 %v25, %v26
    %v29 = vsub.f32 %v15, %v27
    %v30 = vsub.f32 %v16, %v28
    %v31 = vmul.f32 %v29, %v29
    %v32 = vmul.f32 %v30, %v30
    %v33 = vsel %vm19, %v31, 0.0
    %34 = vadd.xlane.f32.xlu0 %v33
    %v35 = vpop.xlane.xlu0 %34
    %v36 = vsel %vm19, %v32, 0.0
    %37 = vadd.xlane.f32.xlu0 %v36
    %v38 = vpop.xlane.xlu0 %37
    %v39 = vmul.f32 %v35, 0.032258064
    %v40 = vmul.f32 %v38, 0.032258064
    %v41 = vrsqrt.pop %v39
    %v42 = vmul.f32 %v39, %v41
    %vm43 = vcmp.eq.f32.partialorder %v39, inf
    %v44 = vsel %vm43, %v39, %v42
    %vm45 = vcmp.eq.f32.partialorder %v39, 0.0
    %v46 = vand.u32 %v39, 2147483648
    %v47 = vsel %vm45, %v46, %v44
    %v48 = vrsqrt.pop %v40
    %v49 = vmul.f32 %v40, %v48
    %vm50 = vcmp.eq.f32.partialorder %v40, inf
    %v51 = vsel %vm50, %v40, %v49
    %vm52 = vcmp.eq.f32.partialorder %v40, 0.0
    %v53 = vand.u32 %v40, 2147483648
    %v54 = vsel %vm52, %v53, %v51
    %v55 = vadd.f32 %v47, 1e-06
    %v56 = vadd.f32 %v54, 1e-06
    %v57 = vrcp.pop %v55
    %v58 = vrcp.pop %v56
    %v59 = vmul.f32 %v29, %v57
    %v60 = vmul.f32 %v30, %v58
    %v62 = vlaneseq
    %v63 = vshrl.u32 %v62, 7
    %v64 = vsub.s32 0, %v63
    %v65 = vrot.slane %v17, %v64
    %v67 = vmul.f32 %v65, %v59
    %v68 = vmul.f32 %v65, %v60
    %v70 = vlaneseq
    %v71 = vshrl.u32 %v70, 7
    %v72 = vsub.s32 0, %v71
    %v73 = vrot.slane %v18, %v72
    %v75 = vadd.f32 %v67, %v73
    %v76 = vadd.f32 %v68, %v73
    %77 = vst.msk [vmem:[#allocation2] sm:$0xff] %vm19, %v75
    %78 = vst.msk [vmem:[#allocation2 + $0x8] sm:$0xff] %vm19, %v76
    // Predicated region
    $region14: #{decoder_forward.37} parent=1 // pred_check
      _
    $region15: #{decoder_forward.37} parent=1 // pred_check_branch
      %80 = sbr.rel (0) target = $region17
    $region16: #{decoder_forward.37} parent=1 // pred_region
      %s82 = ssub.s32 256, 256
      %83 = vsyncadd [#allocation3], %s82
      %s84 = sshll.u32 [#allocation2], 4
      %s85 = int_to_ptr.vmem [resolvable:$true] %s84
      %90 = dma.vmem_to_hbm [thread:$0]  %s85, 256, %s3, [#allocation3], 128, 128, 8
    $region17: #{decoder_forward.37} parent=1 // pred_fallthru
      _
    // Predicated region
    $region18: #{decoder_forward.37} parent=1 // pred_check
      _
    $region19: #{decoder_forward.37} parent=1 // pred_check_branch
      %92 = sbr.rel (0) target = $region21
    $region20: #{decoder_forward.37} parent=1 // pred_region
      %93 = dma.done [#allocation3], 256
    $region21: #{decoder_forward.37} parent=1 // pred_fallthru
      _
    %94 = vsyncpa [#allocation3], 1

// kernel: decoder_forward.26
$region0: #{decoder_forward.26}
  #allocation0 [shape = 'u32[]', space=smem, size = 0x4, offset = 0x4, fixed_abs, tag = 'smem constant byte address 0x4 - core index']
  #allocation1 [shape = 'u32[144,128]{1,0:T(1,128)}', space=vmem, size = 0x12000, scoped, tag = 'internal scratch']
  %s0 = inlined_call_operand.vmem [shape: f32[16,32], index: 0, kind: input, shape index: {}]
  %s1 = inlined_call_operand.vmem [shape: f32[1,32], index: 1, kind: input, shape index: {}]
  %s2 = inlined_call_operand.vmem [shape: f32[1,32], index: 2, kind: input, shape index: {}]
  %s3 = inlined_call_operand.vmem [shape: f32[32,64], index: 3, kind: input, shape index: {}]
  %s4 = inlined_call_operand.vmem [shape: f32[1,64], index: 4, kind: input, shape index: {}]
  %s5 = inlined_call_operand.vmem [shape: f32[16,64], index: 5, kind: output, shape index: {}]
  %s6 = sld [smem:[#allocation0]]
  $region30: #{decoder_forward.26} parent=0
    _
  %s8 = ssub.s32 1, %s6
  %s9 = scalar_select 0, %s8, %s6
  // Predicated region
  $region2: #{decoder_forward.26} parent=0 // pred_check
    _
  $region3: #{decoder_forward.26} parent=0 // pred_check_branch
    %11 = sbr.rel (0) target = $region5
  $region4: #{decoder_forward.26} parent=0 // pred_region
    _
  $region5: #{decoder_forward.26} parent=0 // pred_fallthru
    _
  // Predicated region
  $region6: #{decoder_forward.26} parent=0 // pred_check
    _
  $region7: #{decoder_forward.26} parent=0 // pred_check_branch
    %13 = sbr.rel (0) target = $region9
  $region8: #{decoder_forward.26} parent=0 // pred_region
    _
  $region9: #{decoder_forward.26} parent=0 // pred_fallthru
    _
  // Predicated region
  $region10: #{decoder_forward.26} parent=0 // pred_check
    _
  $region11: #{decoder_forward.26} parent=0 // pred_check_branch
    %15 = sbr.rel (0) target = $region13
  $region12: #{decoder_forward.26} parent=0 // pred_region
    _
  $region13: #{decoder_forward.26} parent=0 // pred_fallthru
    _
  // Predicated region
  $region14: #{decoder_forward.26} parent=0 // pred_check
    _
  $region15: #{decoder_forward.26} parent=0 // pred_check_branch
    %17 = sbr.rel (0) target = $region17
  $region16: #{decoder_forward.26} parent=0 // pred_region
    _
  $region17: #{decoder_forward.26} parent=0 // pred_fallthru
    _
  // Predicated region
  $region18: #{decoder_forward.26} parent=0 // pred_check
    _
  $region19: #{decoder_forward.26} parent=0 // pred_check_branch
    %19 = sbr.rel (0) target = $region21
  $region20: #{decoder_forward.26} parent=0 // pred_region
    _
  $region21: #{decoder_forward.26} parent=0 // pred_fallthru
    _
  %v20 = vld [vmem:[%s0] sm:$0xff]
  %v21 = vld [vmem:[%s0 + $0x8] sm:$0xff]
  %v22 = vld [vmem:[%s1] sm:$0x1]
  %v23 = vld [vmem:[%s2] sm:$0x1]
  %vm24 = vcmask 261120
  %v25 = vsel %vm24, %v20, 0.0
  %26 = vadd.xlane.f32.xlu0 %v25
  %v27 = vpop.xlane.xlu0 %26
  %v28 = vsel %vm24, %v21, 0.0
  %29 = vadd.xlane.f32.xlu0 %v28
  %v30 = vpop.xlane.xlu0 %29
  %v31 = vrcp.pop 32.0
  %v32 = vmul.f32 %v27, %v31
  %v33 = vmul.f32 %v30, %v31
  %v34 = vsub.f32 %v20, %v32
  %v35 = vsub.f32 %v21, %v33
  %v36 = vmul.f32 %v34, %v34
  %v37 = vmul.f32 %v35, %v35
  %v38 = vsel %vm24, %v36, 0.0
  %39 = vadd.xlane.f32.xlu0 %v38
  %v40 = vpop.xlane.xlu0 %39
  %v41 = vsel %vm24, %v37, 0.0
  %42 = vadd.xlane.f32.xlu0 %v41
  %v43 = vpop.xlane.xlu0 %42
  %v44 = vmul.f32 %v40, 0.032258064
  %v45 = vmul.f32 %v43, 0.032258064
  %v46 = vrsqrt.pop %v44
  %v47 = vmul.f32 %v44, %v46
  %vm48 = vcmp.eq.f32.partialorder %v44, inf
  %v49 = vsel %vm48, %v44, %v47
  %vm50 = vcmp.eq.f32.partialorder %v44, 0.0
  %v51 = vand.u32 %v44, 2147483648
  %v52 = vsel %vm50, %v51, %v49
  %v53 = vrsqrt.pop %v45
  %v54 = vmul.f32 %v45, %v53
  %vm55 = vcmp.eq.f32.partialorder %v45, inf
  %v56 = vsel %vm55, %v45, %v54
  %vm57 = vcmp.eq.f32.partialorder %v45, 0.0
  %v58 = vand.u32 %v45, 2147483648
  %v59 = vsel %vm57, %v58, %v56
  %v60 = vadd.f32 %v52, 1e-06
  %v61 = vadd.f32 %v59, 1e-06
  %v62 = vrcp.pop %v60
  %v63 = vrcp.pop %v61
  %v64 = vmul.f32 %v34, %v62
  %v65 = vmul.f32 %v35, %v63
  %v67 = vlaneseq
  %v68 = vshrl.u32 %v67, 7
  %v69 = vsub.s32 0, %v68
  %v70 = vrot.slane %v22, %v69
  %v72 = vmul.f32 %v70, %v64
  %v73 = vmul.f32 %v70, %v65
  %v75 = vlaneseq
  %v76 = vshrl.u32 %v75, 7
  %v77 = vsub.s32 0, %v76
  %v78 = vrot.slane %v23, %v77
  %v80 = vadd.f32 %v72, %v78
  %v81 = vadd.f32 %v73, %v78
  %v82 = vld [vmem:[%s3] sm:$0xff]
  %v83 = vld [vmem:[%s3 + $0x8] sm:$0xff]
  %v84 = vld [vmem:[%s3 + $0x10] sm:$0xff]
  %v85 = vld [vmem:[%s3 + $0x18] sm:$0xff]
  %v86 = vld [vmem:[%s4] sm:$0x1]
  %v88 = vlaneseq
  %v89 = vshrl.u32 %v88, 7
  %v90 = vsub.s32 0, %v89
  %v91 = vrot.slane %v86, %v90
  %v94 = vsel %vm24, %v80, 0
  %v97 = vsel %vm24, %v81, 0
  %99 = vmatprep.subr.mxu0 0.0
  %100 = vmatpush1.msra.mxu0 %v82
  %101 = vmatprep.subr.mxu0 0.0
  %102 = vmatpush1.msra.mxu0 %v83
  %103 = vmatprep.subr.mxu0 0.0
  %104 = vmatpush1.msra.mxu0 %v84
  %105 = vmatprep.subr.mxu0 0.0
  %106 = vmatpush1.msra.mxu0 %v85
  %107 = vmatprep.subr.mxu0 0.0
  %108 = vmatpush1.msra.mxu0 0.0
  %109 = vmatprep.subr.mxu0 0.0
  %110 = vmatpush1.msra.mxu0 0.0
  %111 = vmatprep.subr.mxu0 0.0
  %112 = vmatpush1.msra.mxu0 0.0
  %113 = vmatprep.subr.mxu0 0.0
  %114 = vmatpush1.msra.mxu0 0.0
  %115 = vmatprep.subr.mxu0 0.0
  %116 = vmatpush1.msra.mxu0 0.0
  %117 = vmatprep.subr.mxu0 0.0
  %118 = vmatpush1.msra.mxu0 0.0
  %119 = vmatprep.subr.mxu0 0.0
  %120 = vmatpush1.msra.mxu0 0.0
  %121 = vmatprep.subr.mxu0 0.0
  %122 = vmatpush1.msra.mxu0 0.0
  %123 = vmatprep.subr.mxu0 0.0
  %124 = vmatpush1.msra.mxu0 0.0
  %125 = vmatprep.subr.mxu0 0.0
  %126 = vmatpush1.msra.mxu0 0.0
  %127 = vmatprep.subr.mxu0 0.0
  %128 = vmatpush1.msra.mxu0 0.0
  %129 = vmatprep.subr.mxu0 0.0
  %130 = vmatpush1.msra.mxu0 0.0
  %131 = vmatprep.subr.mxu0 0.0
  %132 = vmatpush1.msra.mxu0 0.0
  %133 = vmatprep.subr.mxu0 0.0
  %134 = vmatpush1.msra.mxu0 0.0
  %135 = vmatprep.subr.mxu0 0.0
  %136 = vmatpush1.msra.mxu0 0.0
  %137 = vmatprep.subr.mxu0 0.0
  %138 = vmatpush1.msra.mxu0 0.0
  %139 = vmatprep.subr.mxu0 0.0
  %140 = vmatpush1.msra.mxu0 0.0
  %141 = vmatprep.subr.mxu0 0.0
  %142 = vmatpush1.msra.mxu0 0.0
  %143 = vmatprep.subr.mxu0 0.0
  %144 = vmatpush1.msra.mxu0 0.0
  %145 = vmatprep.subr.mxu0 0.0
  %146 = vmatpush1.msra.mxu0 0.0
  %147 = vmatprep.subr.mxu0 0.0
  %148 = vmatpush1.msra.mxu0 0.0
  %149 = vmatprep.subr.mxu0 0.0
  %150 = vmatpush1.msra.mxu0 0.0
  %151 = vmatprep.subr.mxu0 0.0
  %152 = vmatpush1.msra.mxu0 0.0
  %153 = vmatprep.subr.mxu0 0.0
  %154 = vmatpush1.msra.mxu0 0.0
  %155 = vmatprep.subr.mxu0 0.0
  %156 = vmatpush1.msra.mxu0 0.0
  %157 = vmatprep.subr.mxu0 0.0
  %158 = vmatpush1.msra.mxu0 0.0
  %159 = vmatprep.subr.mxu0 0.0
  %160 = vmatpush1.msra.mxu0 0.0
  %161 = vmatprep.subr.mxu0 0.0
  %162 = vmatpush1.msra.mxu0 0.0
  %163 = vmatprep.mubr.f32.mxu0 0.0
  %164 = vmatmul.mubr.f32.gmra.mrb[0].mxu0 %v94
  %v165 = vpop.f32.mrb[0].mxu0
  %v166 = vadd.f32 %v91, %v165
  %v167 = vpop.f32.mrb[0].mxu0
  %168 = vmatprep.mubr.f32.mxu0 0.0
  %169 = vmatmul.mubr.f32.gmra.mrb[0].mxu0 %v97
  %v170 = vpop.f32.mrb[0].mxu0
  %v171 = vadd.f32 %v91, %v170
  %v172 = vpop.f32.mrb[0].mxu0
  %173 = vdwg.mxu0
  %v174 = vmax.f32 %v166, 0.0
  %v175 = vmax.f32 %v171, 0.0
  %vm176 = vcmask 523264
  %177 = vst.msk [vmem:[%s5] sm:$0xff] %vm176, %v174
  %178 = vst.msk [vmem:[%s5 + $0x8] sm:$0xff] %vm176, %v175
  // Predicated region
  $region22: #{decoder_forward.26} parent=0 // pred_check
    _
  $region23: #{decoder_forward.26} parent=0 // pred_check_branch
    %180 = sbr.rel (0) target = $region25
  $region24: #{decoder_forward.26} parent=0 // pred_region
    _
  $region25: #{decoder_forward.26} parent=0 // pred_fallthru
    _
  // Predicated region
  $region26: #{decoder_forward.26} parent=0 // pred_check
    _
  $region27: #{decoder_forward.26} parent=0 // pred_check_branch
    %182 = sbr.rel (0) target = $region29
  $region28: #{decoder_forward.26} parent=0 // pred_region
    _
  $region29: #{decoder_forward.26} parent=0 // pred_fallthru
    _

// kernel: decoder_forward.27
$region0: #{decoder_forward.27}
  #allocation0 [shape = 'u32[]', space=smem, size = 0x4, offset = 0x4, fixed_abs, tag = 'smem constant byte address 0x4 - core index']
  #allocation1 [shape = 'u32[144,128]{1,0:T(1,128)}', space=vmem, size = 0x12000, scoped, tag = 'internal scratch']
  #allocation2 [shape = 'f32[16,32]{1,0:T(8,128)}', space=vmem, size = 0x2000, scoped, tag = 'scratch operand']
  %s0 = inlined_call_operand.vmem [shape: f32[16,64], index: 0, kind: input, shape index: {}]
  %s1 = inlined_call_operand.vmem [shape: f32[64,32], index: 1, kind: input, shape index: {}]
  %s2 = inlined_call_operand.vmem [shape: f32[1,32], index: 2, kind: input, shape index: {}]
  %s3 = inlined_call_operand.vmem [shape: f32[16,32], index: 3, kind: input, shape index: {}]
  %s4 = inlined_call_operand.vmem [shape: f32[16,32], index: 4, kind: output, shape index: {}]
  %s5 = sld [smem:[#allocation0]]
  $region34: #{decoder_forward.27} parent=0
    _
  %s7 = ssub.s32 1, %s5
  %s8 = scalar_select 0, %s7, %s5
  // Predicated region
  $region2: #{decoder_forward.27} parent=0 // pred_check
    _
  $region3: #{decoder_forward.27} parent=0 // pred_check_branch
    %10 = sbr.rel (0) target = $region5
  $region4: #{decoder_forward.27} parent=0 // pred_region
    _
  $region5: #{decoder_forward.27} parent=0 // pred_fallthru
    _
  // Predicated region
  $region6: #{decoder_forward.27} parent=0 // pred_check
    _
  $region7: #{decoder_forward.27} parent=0 // pred_check_branch
    %12 = sbr.rel (0) target = $region9
  $region8: #{decoder_forward.27} parent=0 // pred_region
    _
  $region9: #{decoder_forward.27} parent=0 // pred_fallthru
    _
  // Predicated region
  $region10: #{decoder_forward.27} parent=0 // pred_check
    _
  $region11: #{decoder_forward.27} parent=0 // pred_check_branch
    %14 = sbr.rel (0) target = $region13
  $region12: #{decoder_forward.27} parent=0 // pred_region
    _
  $region13: #{decoder_forward.27} parent=0 // pred_fallthru
    _
  // Predicated region
  $region14: #{decoder_forward.27} parent=0 // pred_check
    _
  $region15: #{decoder_forward.27} parent=0 // pred_check_branch
    %16 = sbr.rel (0) target = $region17
  $region16: #{decoder_forward.27} parent=0 // pred_region
    _
  $region17: #{decoder_forward.27} parent=0 // pred_fallthru
    _
  %p17 = scmp.eq.s32.totalorder 0, 0
  // Predicated region
  $region18: #{decoder_forward.27} parent=0 // pred_check
    %p18 = pneg %p17
  $region19: #{decoder_forward.27} parent=0 // pred_check_branch
    %20 = sbr.rel (%p18) target = $region21
  $region20: #{decoder_forward.27} parent=0 // pred_region
    %vm21 = vcmask 261120
    %22 = vst.msk [vmem:[#allocation2] sm:$0xff] %vm21, 0.0
    %23 = vst.msk [vmem:[#allocation2 + $0x8] sm:$0xff] %vm21, 0.0
  $region21: #{decoder_forward.27} parent=0 // pred_fallthru
    _
  %v24 = vld [vmem:[#allocation2] sm:$0xff]
  %v25 = vld [vmem:[#allocation2 + $0x8] sm:$0xff]
  %v26 = vld [vmem:[%s0] sm:$0xff]
  %v27 = vld [vmem:[%s0 + $0x8] sm:$0xff]
  %v28 = vld [vmem:[%s1] sm:$0xff]
  %v29 = vld [vmem:[%s1 + $0x8] sm:$0xff]
  %v30 = vld [vmem:[%s1 + $0x10] sm:$0xff]
  %v31 = vld [vmem:[%s1 + $0x18] sm:$0xff]
  %v32 = vld [vmem:[%s1 + $0x20] sm:$0xff]
  %v33 = vld [vmem:[%s1 + $0x28] sm:$0xff]
  %v34 = vld [vmem:[%s1 + $0x30] sm:$0xff]
  %v35 = vld [vmem:[%s1 + $0x38] sm:$0xff]
  %vm36 = vcmask 523264
  %v38 = vsel %vm36, %v26, 0
  %v41 = vsel %vm36, %v27, 0
  %43 = vmatprep.subr.mxu0 0.0
  %44 = vmatpush1.msra.mxu0 %v28
  %45 = vmatprep.subr.mxu0 0.0
  %46 = vmatpush1.msra.mxu0 %v29
  %47 = vmatprep.subr.mxu0 0.0
  %48 = vmatpush1.msra.mxu0 %v30
  %49 = vmatprep.subr.mxu0 0.0
  %50 = vmatpush1.msra.mxu0 %v31
  %51 = vmatprep.subr.mxu0 0.0
  %52 = vmatpush1.msra.mxu0 %v32
  %53 = vmatprep.subr.mxu0 0.0
  %54 = vmatpush1.msra.mxu0 %v33
  %55 = vmatprep.subr.mxu0 0.0
  %56 = vmatpush1.msra.mxu0 %v34
  %57 = vmatprep.subr.mxu0 0.0
  %58 = vmatpush1.msra.mxu0 %v35
  %59 = vmatprep.subr.mxu0 0.0
  %60 = vmatpush1.msra.mxu0 0.0
  %61 = vmatprep.subr.mxu0 0.0
  %62 = vmatpush1.msra.mxu0 0.0
  %63 = vmatprep.subr.mxu0 0.0
  %64 = vmatpush1.msra.mxu0 0.0
  %65 = vmatprep.subr.mxu0 0.0
  %66 = vmatpush1.msra.mxu0 0.0
  %67 = vmatprep.subr.mxu0 0.0
  %68 = vmatpush1.msra.mxu0 0.0
  %69 = vmatprep.subr.mxu0 0.0
  %70 = vmatpush1.msra.mxu0 0.0
  %71 = vmatprep.subr.mxu0 0.0
  %72 = vmatpush1.msra.mxu0 0.0
  %73 = vmatprep.subr.mxu0 0.0
  %74 = vmatpush1.msra.mxu0 0.0
  %75 = vmatprep.subr.mxu0 0.0
  %76 = vmatpush1.msra.mxu0 0.0
  %77 = vmatprep.subr.mxu0 0.0
  %78 = vmatpush1.msra.mxu0 0.0
  %79 = vmatprep.subr.mxu0 0.0
  %80 = vmatpush1.msra.mxu0 0.0
  %81 = vmatprep.subr.mxu0 0.0
  %82 = vmatpush1.msra.mxu0 0.0
  %83 = vmatprep.subr.mxu0 0.0
  %84 = vmatpush1.msra.mxu0 0.0
  %85 = vmatprep.subr.mxu0 0.0
  %86 = vmatpush1.msra.mxu0 0.0
  %87 = vmatprep.subr.mxu0 0.0
  %88 = vmatpush1.msra.mxu0 0.0
  %89 = vmatprep.subr.mxu0 0.0
  %90 = vmatpush1.msra.mxu0 0.0
  %91 = vmatprep.subr.mxu0 0.0
  %92 = vmatpush1.msra.mxu0 0.0
  %93 = vmatprep.subr.mxu0 0.0
  %94 = vmatpush1.msra.mxu0 0.0
  %95 = vmatprep.subr.mxu0 0.0
  %96 = vmatpush1.msra.mxu0 0.0
  %97 = vmatprep.subr.mxu0 0.0
  %98 = vmatpush1.msra.mxu0 0.0
  %99 = vmatprep.subr.mxu0 0.0
  %100 = vmatpush1.msra.mxu0 0.0
  %101 = vmatprep.subr.mxu0 0.0
  %102 = vmatpush1.msra.mxu0 0.0
  %103 = vmatprep.subr.mxu0 0.0
  %104 = vmatpush1.msra.mxu0 0.0
  %105 = vmatprep.subr.mxu0 0.0
  %106 = vmatpush1.msra.mxu0 0.0
  %107 = vmatprep.mubr.f32.mxu0 0.0
  %108 = vmatmul.mubr.f32.gmra.mrb[0].mxu0 %v38
  %v109 = vpop.f32.mrb[0].mxu0
  %v110 = vadd.f32 0.0, %v109
  %v111 = vpop.f32.mrb[0].mxu0
  %112 = vmatprep.mubr.f32.mxu0 0.0
  %113 = vmatmul.mubr.f32.gmra.mrb[0].mxu0 %v41
  %v114 = vpop.f32.mrb[0].mxu0
  %v115 = vadd.f32 0.0, %v114
  %v116 = vpop.f32.mrb[0].mxu0
  %117 = vdwg.mxu0
  %v118 = vadd.f32 %v24, %v110
  %v119 = vadd.f32 %v25, %v115
  %vm120 = vcmask 261120
  %121 = vst.msk [vmem:[#allocation2] sm:$0xff] %vm120, %v118
  %122 = vst.msk [vmem:[#allocation2 + $0x8] sm:$0xff] %vm120, %v119
  // Predicated region
  $region22: #{decoder_forward.27} parent=0 // pred_check
    %p123 = pneg %p17
  $region23: #{decoder_forward.27} parent=0 // pred_check_branch
    %125 = sbr.rel (%p123) target = $region25
  $region24: #{decoder_forward.27} parent=0 // pred_region
    %v126 = vld [vmem:[#allocation2] sm:$0xff]
    %v127 = vld [vmem:[#allocation2 + $0x8] sm:$0xff]
    %v128 = vld [vmem:[%s2] sm:$0x1]
    %v130 = vlaneseq
    %v131 = vshrl.u32 %v130, 7
    %v132 = vsub.s32 0, %v131
    %v133 = vrot.slane %v128, %v132
    %v135 = vadd.f32 %v126, %v133
    %v136 = vadd.f32 %v127, %v133
    %v137 = vld [vmem:[%s3] sm:$0xff]
    %v138 = vld [vmem:[%s3 + $0x8] sm:$0xff]
    %v139 = vadd.f32 %v135, %v137
    %v140 = vadd.f32 %v136, %v138
    %141 = vst.msk [vmem:[%s4] sm:$0xff] %vm120, %v139
    %142 = vst.msk [vmem:[%s4 + $0x8] sm:$0xff] %vm120, %v140
  $region25: #{decoder_forward.27} parent=0 // pred_fallthru
    _
  // Predicated region
  $region26: #{decoder_forward.27} parent=0 // pred_check
    _
  $region27: #{decoder_forward.27} parent=0 // pred_check_branch
    %144 = sbr.rel (0) target = $region29
  $region28: #{decoder_forward.27} parent=0 // pred_region
    _
  $region29: #{decoder_forward.27} parent=0 // pred_fallthru
    _
  // Predicated region
  $region30: #{decoder_forward.27} parent=0 // pred_check
    _
  $region31: #{decoder_forward.27} parent=0 // pred_check_branch
    %146 = sbr.rel (0) target = $region33
  $region32: #{decoder_forward.27} parent=0 // pred_region
    _
  $region33: #{decoder_forward.27} parent=0 // pred_fallthru
    _

</llo_original>
